<compile_context>
chip_gen: v6e
topology: v6e:2x2x1
jax: 0.10.0
libtpu: 0.0.40
codegen_flags: <defaults>
</compile_context>

<pallas_src>
import functools

import jax
import jax.numpy as jnp
from jax.experimental import pallas as pl
from jax.experimental.pallas import tpu as pltpu

LANE = 128


def _project_kernel(x_ref, w_ref, o_ref):
    # x_ref: (B, Kp)        padded activations (+ bias column of ones), resident
    # w_ref: (1, Kp, TN)    one contiguous, lane-dense output-column weight tile
    # o_ref: (B, TN)        lane-dense f32 output tile
    o_ref[...] = jnp.dot(
        x_ref[...], w_ref[0], preferred_element_type=jnp.float32
    ).astype(o_ref.dtype)


def default_tile_n(N):
    """Generation-specific tiling: one weight tile per TensorCore."""
    try:
        kind = jax.devices()[0].device_kind.lower()
    except Exception:  # pragma: no cover - defensive fallback
        kind = ""
    if ("v7" in kind or "7x" in kind) and N % (2 * LANE) == 0:
        return N // 2          # v7x: 2 TCs -> grid=(2,) "parallel", 1 step/core
    return N                   # v5e/v6e: single TC -> grid=(1,), 1 step total


def prepare_params(w_t, b, *, tile_n, weight_dtype=jnp.bfloat16):
    """One-time parameter prep (kept OUT of the per-call hot path).

    w_t: (K, N) pre-transposed Linear weight (in_features, out_features)
    b:   (N,)   Linear bias

    Returns a (grid_n, Kp, tile_n) weight in `weight_dtype`:
      * K zero-padded up to the sublane granule (16 for bf16, 8 for f32),
        with the bias folded into row K (x must carry a 1.0 in column K),
      * pre-split along the output columns so each grid step's tile is one
        contiguous run in HBM (single flat DMA per step).
    """
    K, N = w_t.shape
    assert N % tile_n == 0 and tile_n % LANE == 0
    granule = 16 if weight_dtype == jnp.bfloat16 else 8
    Kp = ((K + 1 + granule - 1) // granule) * granule  # room for the bias row
    w_aug = jnp.zeros((Kp, N), dtype=jnp.float32)
    w_aug = w_aug.at[:K, :].set(w_t.astype(jnp.float32))
    w_aug = w_aug.at[K, :].set(b.astype(jnp.float32))
    grid_n = N // tile_n
    # tile j = columns [j*tile_n, (j+1)*tile_n), made contiguous per tile
    w_tiled = w_aug.reshape(Kp, grid_n, tile_n).transpose(1, 0, 2)
    return w_tiled.astype(weight_dtype)


def project_forward(x, w_tiled, *, latent_dimension, dimension,
                    dimension_multiplier, scale):
    """x: (B, latent_dimension) f32; w_tiled: (grid_n, Kp, tile_n) from prepare_params."""
    B, K = x.shape
    assert K == latent_dimension
    grid_n, Kp, tile_n = w_tiled.shape
    N = grid_n * tile_n
    assert N == dimension * scale
    compute_dtype = w_tiled.dtype

    # Per-call activation prep: append the bias column of ones, zero-pad K to
    # Kp, cast to the streaming dtype.  x is ~1 KB so this is negligible.
    ones_col = jnp.ones((B, 1), dtype=x.dtype)
    zero_pad = jnp.zeros((B, Kp - K - 1), dtype=x.dtype)
    x_aug = jnp.concatenate([x, ones_col, zero_pad], axis=1).astype(compute_dtype)

    out_flat = pl.pallas_call(
        _project_kernel,
        out_shape=jax.ShapeDtypeStruct((B, N), jnp.float32),
        grid_spec=pltpu.PrefetchScalarGridSpec(
            num_scalar_prefetch=0,
            grid=(grid_n,),
            in_specs=[
                # activations: constant block index -> fetched once, resident
                pl.BlockSpec((B, Kp), lambda j: (0, 0)),
                # weight: one contiguous (Kp, tile_n) tile per grid step
                pl.BlockSpec((1, Kp, tile_n), lambda j: (j, 0, 0)),
            ],
            out_specs=pl.BlockSpec((B, tile_n), lambda j: (0, j)),
        ),
        compiler_params=pltpu.CompilerParams(
            dimension_semantics=("parallel",),
        ),
    )(x_aug, w_tiled)

    # Pure-metadata reshape (glue), matches torch .reshape semantics.
    return out_flat.reshape(B, scale * 32, dimension_multiplier,
                            dimension_multiplier // 2)


if __name__ == "__main__":
    # Module hyperparameters (defaults of Project)
    latent_dimension = 100
    dimension = 256
    dimension_multiplier = 4
    scale = 32
    out_features = dimension * scale  # 8192

    batch = 2

    key = jax.random.PRNGKey(0)
    kx, kw, kb = jax.random.split(key, 3)

    # Deterministic parameter init (PyTorch Linear-style uniform bound).
    bound = 1.0 / (latent_dimension ** 0.5)
    # weight stored pre-transposed: (in_features, out_features)
    w_t = jax.random.uniform(kw, (latent_dimension, out_features),
                             dtype=jnp.float32, minval=-bound, maxval=bound)
    bias = jax.random.uniform(kb, (out_features,),
                              dtype=jnp.float32, minval=-bound, maxval=bound)

    x = jax.random.normal(kx, (batch, latent_dimension), dtype=jnp.float32)

    # Generation-specific tile size (v7x: one tile per TC; v5e/v6e: grid=1).
    tile_n = default_tile_n(out_features)

    # One-time parameter prep (pad + bias fold + bf16 + contiguous tiling).
    w_tiled = jax.block_until_ready(
        prepare_params(w_t, bias, tile_n=tile_n, weight_dtype=jnp.bfloat16))

    fwd = jax.jit(functools.partial(
        project_forward,
        latent_dimension=latent_dimension,
        dimension=dimension,
        dimension_multiplier=dimension_multiplier,
        scale=scale,
    ))

    out = fwd(x, w_tiled)
    jax.block_until_ready(out)

    out_shape = (batch, scale * 32, dimension_multiplier, dimension_multiplier // 2)
    assert out.shape == out_shape

    # (1) Tight check against a reference that uses the SAME bf16-streamed
    #     parameters -> validates the kernel itself (tiling, bias fold, pad).
    grid_n = out_features // tile_n
    Kp = w_tiled.shape[1]
    w_aug_bf16 = jnp.transpose(w_tiled, (1, 0, 2)).reshape(Kp, out_features)
    ones_col = jnp.ones((batch, 1), dtype=x.dtype)
    zero_pad = jnp.zeros((batch, Kp - latent_dimension - 1), dtype=x.dtype)
    x_aug_bf16 = jnp.concatenate([x, ones_col, zero_pad], axis=1).astype(jnp.bfloat16)
    ref_bf16 = jnp.dot(x_aug_bf16, w_aug_bf16,
                       preferred_element_type=jnp.float32).reshape(out_shape)
    assert jnp.allclose(out, ref_bf16, atol=1e-5, rtol=1e-5)

    # (2) Loose check against exact f32 nn.Linear semantics (bf16 weight
    #     streaming trades ~1e-3-level error for ~2x less HBM traffic).
    ref_f32 = (x @ w_t + bias).reshape(out_shape)
    assert jnp.allclose(out, ref_f32, atol=3e-2, rtol=3e-2)

    print("KERNEL_OK")
</pallas_src>

<mosaic_0001>
module attributes {stable_mosaic.version = 11 : i64} {
  func.func @_project_kernel(%arg0: i32, %arg1: memref<2x112xbf16, #tpu.memory_space<vmem>>, %arg2: memref<1x112x8192xbf16, #tpu.memory_space<vmem>>, %arg3: memref<2x8192xf32, #tpu.memory_space<vmem>>) attributes {dimension_semantics = [#tpu.dimension_semantics<parallel>], iteration_bounds = array<i64: 1>, scalar_prefetch = 0 : i64, scratch_operands = 0 : i64, tpu.core_type = #tpu.core_type<tc>, window_params = [{pipeline_mode = #tpu.pipeline_mode<synchronous>, transform_indices = @transform_0, window_bounds = array<i64: 2, 112>}, {transform_indices = @transform_1, window_bounds = array<i64: 1, 112, 8192>}, {transform_indices = @transform_2, window_bounds = array<i64: 2, 8192>}]} {
    %c0 = arith.constant 0 : index
    %c0_0 = arith.constant 0 : index
    %0 = vector.load %arg1[%c0, %c0_0] : memref<2x112xbf16, #tpu.memory_space<vmem>>, vector<2x112xbf16>
    %c0_1 = arith.constant 0 : index
    %c0_2 = arith.constant 0 : index
    %c0_3 = arith.constant 0 : index
    %1 = vector.load %arg2[%c0_1, %c0_2, %c0_3] : memref<1x112x8192xbf16, #tpu.memory_space<vmem>>, vector<1x112x8192xbf16>
    %2 = vector.shape_cast %1 : vector<1x112x8192xbf16> to vector<112x8192xbf16>
    %cst = arith.constant dense<0.000000e+00> : vector<2x8192xf32>
    %3 = tpu.matmul %0, %2, %cst {dimension_numbers = #tpu.dot_dimension_numbers<[1], [0], [0], [1], [0, 0, 1, 1], [], []>} : vector<2x112xbf16>, vector<112x8192xbf16>, vector<2x8192xf32> -> vector<2x8192xf32>
    %c0_4 = arith.constant 0 : index
    %c0_5 = arith.constant 0 : index
    %4 = vector.load %arg3[%c0_4, %c0_5] : memref<2x8192xf32, #tpu.memory_space<vmem>>, vector<2x8192xf32>
    tpu.vector_store %arg3[%c0_4, %c0_5], %3 {strides = array<i32>} : memref<2x8192xf32, #tpu.memory_space<vmem>>, vector<2x8192xf32>,
    return
  }
  func.func @transform_0(%arg0: i32) -> (i32, i32) {
    %c0_i32 = arith.constant 0 : i32
    %c0_i32_0 = arith.constant 0 : i32
    %c0_i32_1 = arith.constant 0 : i32
    return %c0_i32, %c0_i32_0 : i32, i32
  }
  func.func @transform_1(%arg0: i32) -> (i32, i32, i32) {
    %c0_i32 = arith.constant 0 : i32
    %c0_i32_0 = arith.constant 0 : i32
    %c0_i32_1 = arith.constant 0 : i32
    return %arg0, %c0_i32, %c0_i32_0 : i32, i32, i32
  }
  func.func @transform_2(%arg0: i32) -> (i32, i32) {
    %c0_i32 = arith.constant 0 : i32
    %c0_i32_0 = arith.constant 0 : i32
    return %c0_i32, %arg0 : i32, i32
  }
}

</mosaic_0001>

<llo_original>
// kernel: project_forward.1
$region0: #{project_forward.1}
  #allocation0 [shape = 'u32[]', space=smem, size = 0x4, offset = 0x4, fixed_abs, tag = 'smem constant byte address 0x4 - core index']
  #allocation1 [shape = 'u32[144,128]{1,0:T(1,128)}', space=vmem, size = 0x12000, scoped, tag = 'internal scratch']
  %s0 = inlined_call_operand.vmem [shape: bf16[2,112], index: 0, kind: input, shape index: {}]
  %s1 = inlined_call_operand.hbm [shape: bf16[1,112,8192], index: 1, kind: input, shape index: {}]
  %s2 = inlined_call_operand.vmem [shape: f32[2,8192], index: 2, kind: output, shape index: {}]
  %s3 = sld [smem:[#allocation0]]
  $region22: #{project_forward.1} parent=0
    _
  %s5 = ssub.s32 1, %s3
  %s6 = scalar_select 0, %s5, %s3
  $region1: #{project_forward.1} parent=0
    #allocation2 [shape = 'u8[1835008]{0}', space=vmem, size = 0x1c0000, scoped, tag = 'input window, operand 1, single buffered']
    #allocation3 [shape = 's32[1]{0}', space=sflag, size = 0x4, scoped, tag = 'scoped memory for project_forward.1']
    %7 = vsyncpa [#allocation3], 0
    // Predicated region
    $region2: #{project_forward.1} parent=1 // pred_check
      _
    $region3: #{project_forward.1} parent=1 // pred_check_branch
      %9 = sbr.rel (0) target = $region5
    $region4: #{project_forward.1} parent=1 // pred_region
      _
    $region5: #{project_forward.1} parent=1 // pred_fallthru
      _
    // Predicated region
    $region6: #{project_forward.1} parent=1 // pred_check
      _
    $region7: #{project_forward.1} parent=1 // pred_check_branch
      %11 = sbr.rel (0) target = $region9
    $region8: #{project_forward.1} parent=1 // pred_region
      %s13 = ssub.s32 57344, 57344
      %14 = vsyncadd [#allocation3], %s13
      %s15 = sshll.u32 [#allocation2], 4
      %s16 = int_to_ptr.vmem [resolvable:$true] %s15
      %21 = dma.hbm_to_vmem [thread:$0]  %s1, 57344, %s16, [#allocation3], 4096, 4096, 256
    $region9: #{project_forward.1} parent=1 // pred_fallthru
      _
    // Predicated region
    $region10: #{project_forward.1} parent=1 // pred_check
      _
    $region11: #{project_forward.1} parent=1 // pred_check_branch
      %23 = sbr.rel (0) target = $region13
    $region12: #{project_forward.1} parent=1 // pred_region
      %24 = dma.done [#allocation3], 57344
    $region13: #{project_forward.1} parent=1 // pred_fallthru
      _
    %v26 = vld [vmem:[%s0] sm:$0x1]
    %v27 = vld [vmem:[#allocation2] sm:$0xff]
    %v28 = vld [vmem:[#allocation2 + $0x8] sm:$0xff]
    %v29 = vld [vmem:[#allocation2 + $0x10] sm:$0xff]
    %v30 = vld [vmem:[#allocation2 + $0x18] sm:$0xff]
    %v31 = vld [vmem:[#allocation2 + $0x20] sm:$0xff]
    %v32 = vld [vmem:[#allocation2 + $0x28] sm:$0xff]
    %v33 = vld [vmem:[#allocation2 + $0x30] sm:$0xff]
    %v34 = vld [vmem:[#allocation2 + $0x38] sm:$0xff]
    %v35 = vld [vmem:[#allocation2 + $0x40] sm:$0xff]
    %v36 = vld [vmem:[#allocation2 + $0x48] sm:$0xff]
    %v37 = vld [vmem:[#allocation2 + $0x50] sm:$0xff]
    %v38 = vld [vmem:[#allocation2 + $0x58] sm:$0xff]
    %v39 = vld [vmem:[#allocation2 + $0x60] sm:$0xff]
    %v40 = vld [vmem:[#allocation2 + $0x68] sm:$0xff]
    %v41 = vld [vmem:[#allocation2 + $0x70] sm:$0xff]
    %v42 = vld [vmem:[#allocation2 + $0x78] sm:$0xff]
    %v43 = vld [vmem:[#allocation2 + $0x80] sm:$0xff]
    %v44 = vld [vmem:[#allocation2 + $0x88] sm:$0xff]
    %v45 = vld [vmem:[#allocation2 + $0x90] sm:$0xff]
    %v46 = vld [vmem:[#allocation2 + $0x98] sm:$0xff]
    %v47 = vld [vmem:[#allocation2 + $0xa0] sm:$0xff]
    %v48 = vld [vmem:[#allocation2 + $0xa8] sm:$0xff]
    %v49 = vld [vmem:[#allocation2 + $0xb0] sm:$0xff]
    %v50 = vld [vmem:[#allocation2 + $0xb8] sm:$0xff]
    %v51 = vld [vmem:[#allocation2 + $0xc0] sm:$0xff]
    %v52 = vld [vmem:[#allocation2 + $0xc8] sm:$0xff]
    %v53 = vld [vmem:[#allocation2 + $0xd0] sm:$0xff]
    %v54 = vld [vmem:[#allocation2 + $0xd8] sm:$0xff]
    %v55 = vld [vmem:[#allocation2 + $0xe0] sm:$0xff]
    %v56 = vld [vmem:[#allocation2 + $0xe8] sm:$0xff]
    %v57 = vld [vmem:[#allocation2 + $0xf0] sm:$0xff]
    %v58 = vld [vmem:[#allocation2 + $0xf8] sm:$0xff]
    %v59 = vld [vmem:[#allocation2 + $0x100] sm:$0xff]
    %v60 = vld [vmem:[#allocation2 + $0x108] sm:$0xff]
    %v61 = vld [vmem:[#allocation2 + $0x110] sm:$0xff]
    %v62 = vld [vmem:[#allocation2 + $0x118] sm:$0xff]
    %v63 = vld [vmem:[#allocation2 + $0x120] sm:$0xff]
    %v64 = vld [vmem:[#allocation2 + $0x128] sm:$0xff]
    %v65 = vld [vmem:[#allocation2 + $0x130] sm:$0xff]
    %v66 = vld [vmem:[#allocation2 + $0x138] sm:$0xff]
    %v67 = vld [vmem:[#allocation2 + $0x140] sm:$0xff]
    %v68 = vld [vmem:[#allocation2 + $0x148] sm:$0xff]
    %v69 = vld [vmem:[#allocation2 + $0x150] sm:$0xff]
    %v70 = vld [vmem:[#allocation2 + $0x158] sm:$0xff]
    %v71 = vld [vmem:[#allocation2 + $0x160] sm:$0xff]
    %v72 = vld [vmem:[#allocation2 + $0x168] sm:$0xff]
    %v73 = vld [vmem:[#allocation2 + $0x170] sm:$0xff]
    %v74 = vld [vmem:[#allocation2 + $0x178] sm:$0xff]
    %v75 = vld [vmem:[#allocation2 + $0x180] sm:$0xff]
    %v76 = vld [vmem:[#allocation2 + $0x188] sm:$0xff]
    %v77 = vld [vmem:[#allocation2 + $0x190] sm:$0xff]
    %v78 = vld [vmem:[#allocation2 + $0x198] sm:$0xff]
    %v79 = vld [vmem:[#allocation2 + $0x1a0] sm:$0xff]
    %v80 = vld [vmem:[#allocation2 + $0x1a8] sm:$0xff]
    %v81 = vld [vmem:[#allocation2 + $0x1b0] sm:$0xff]
    %v82 = vld [vmem:[#allocation2 + $0x1b8] sm:$0xff]
    %v83 = vld [vmem:[#allocation2 + $0x1c0] sm:$0xff]
    %v84 = vld [vmem:[#allocation2 + $0x1c8] sm:$0xff]
    %v85 = vld [vmem:[#allocation2 + $0x1d0] sm:$0xff]
    %v86 = vld [vmem:[#allocation2 + $0x1d8] sm:$0xff]
    %v87 = vld [vmem:[#allocation2 + $0x1e0] sm:$0xff]
    %v88 = vld [vmem:[#allocation2 + $0x1e8] sm:$0xff]
    %v89 = vld [vmem:[#allocation2 + $0x1f0] sm:$0xff]
    %v90 = vld [vmem:[#allocation2 + $0x1f8] sm:$0xff]
    %v91 = vld [vmem:[#allocation2 + $0x200] sm:$0xff]
    %v92 = vld [vmem:[#allocation2 + $0x208] sm:$0xff]
    %v93 = vld [vmem:[#allocation2 + $0x210] sm:$0xff]
    %v94 = vld [vmem:[#allocation2 + $0x218] sm:$0xff]
    %v95 = vld [vmem:[#allocation2 + $0x220] sm:$0xff]
    %v96 = vld [vmem:[#allocation2 + $0x228] sm:$0xff]
    %v97 = vld [vmem:[#allocation2 + $0x230] sm:$0xff]
    %v98 = vld [vmem:[#allocation2 + $0x238] sm:$0xff]
    %v99 = vld [vmem:[#allocation2 + $0x240] sm:$0xff]
    %v100 = vld [vmem:[#allocation2 + $0x248] sm:$0xff]
    %v101 = vld [vmem:[#allocation2 + $0x250] sm:$0xff]
    %v102 = vld [vmem:[#allocation2 + $0x258] sm:$0xff]
    %v103 = vld [vmem:[#allocation2 + $0x260] sm:$0xff]
    %v104 = vld [vmem:[#allocation2 + $0x268] sm:$0xff]
    %v105 = vld [vmem:[#allocation2 + $0x270] sm:$0xff]
    %v106 = vld [vmem:[#allocation2 + $0x278] sm:$0xff]
    %v107 = vld [vmem:[#allocation2 + $0x280] sm:$0xff]
    %v108 = vld [vmem:[#allocation2 + $0x288] sm:$0xff]
    %v109 = vld [vmem:[#allocation2 + $0x290] sm:$0xff]
    %v110 = vld [vmem:[#allocation2 + $0x298] sm:$0xff]
    %v111 = vld [vmem:[#allocation2 + $0x2a0] sm:$0xff]
    %v112 = vld [vmem:[#allocation2 + $0x2a8] sm:$0xff]
    %v113 = vld [vmem:[#allocation2 + $0x2b0] sm:$0xff]
    %v114 = vld [vmem:[#allocation2 + $0x2b8] sm:$0xff]
    %v115 = vld [vmem:[#allocation2 + $0x2c0] sm:$0xff]
    %v116 = vld [vmem:[#allocation2 + $0x2c8] sm:$0xff]
    %v117 = vld [vmem:[#allocation2 + $0x2d0] sm:$0xff]
    %v118 = vld [vmem:[#allocation2 + $0x2d8] sm:$0xff]
    %v119 = vld [vmem:[#allocation2 + $0x2e0] sm:$0xff]
    %v120 = vld [vmem:[#allocation2 + $0x2e8] sm:$0xff]
    %v121 = vld [vmem:[#allocation2 + $0x2f0] sm:$0xff]
    %v122 = vld [vmem:[#allocation2 + $0x2f8] sm:$0xff]
    %v123 = vld [vmem:[#allocation2 + $0x300] sm:$0xff]
    %v124 = vld [vmem:[#allocation2 + $0x308] sm:$0xff]
    %v125 = vld [vmem:[#allocation2 + $0x310] sm:$0xff]
    %v126 = vld [vmem:[#allocation2 + $0x318] sm:$0xff]
    %v127 = vld [vmem:[#allocation2 + $0x320] sm:$0xff]
    %v128 = vld [vmem:[#allocation2 + $0x328] sm:$0xff]
    %v129 = vld [vmem:[#allocation2 + $0x330] sm:$0xff]
    %v130 = vld [vmem:[#allocation2 + $0x338] sm:$0xff]
    %v131 = vld [vmem:[#allocation2 + $0x340] sm:$0xff]
    %v132 = vld [vmem:[#allocation2 + $0x348] sm:$0xff]
    %v133 = vld [vmem:[#allocation2 + $0x350] sm:$0xff]
    %v134 = vld [vmem:[#allocation2 + $0x358] sm:$0xff]
    %v135 = vld [vmem:[#allocation2 + $0x360] sm:$0xff]
    %v136 = vld [vmem:[#allocation2 + $0x368] sm:$0xff]
    %v137 = vld [vmem:[#allocation2 + $0x370] sm:$0xff]
    %v138 = vld [vmem:[#allocation2 + $0x378] sm:$0xff]
    %v139 = vld [vmem:[#allocation2 + $0x380] sm:$0xff]
    %v140 = vld [vmem:[#allocation2 + $0x388] sm:$0xff]
    %v141 = vld [vmem:[#allocation2 + $0x390] sm:$0xff]
    %v142 = vld [vmem:[#allocation2 + $0x398] sm:$0xff]
    %v143 = vld [vmem:[#allocation2 + $0x3a0] sm:$0xff]
    %v144 = vld [vmem:[#allocation2 + $0x3a8] sm:$0xff]
    %v145 = vld [vmem:[#allocation2 + $0x3b0] sm:$0xff]
    %v146 = vld [vmem:[#allocation2 + $0x3b8] sm:$0xff]
    %v147 = vld [vmem:[#allocation2 + $0x3c0] sm:$0xff]
    %v148 = vld [vmem:[#allocation2 + $0x3c8] sm:$0xff]
    %v149 = vld [vmem:[#allocation2 + $0x3d0] sm:$0xff]
    %v150 = vld [vmem:[#allocation2 + $0x3d8] sm:$0xff]
    %v151 = vld [vmem:[#allocation2 + $0x3e0] sm:$0xff]
    %v152 = vld [vmem:[#allocation2 + $0x3e8] sm:$0xff]
    %v153 = vld [vmem:[#allocation2 + $0x3f0] sm:$0xff]
    %v154 = vld [vmem:[#allocation2 + $0x3f8] sm:$0xff]
    %v155 = vld [vmem:[#allocation2 + $0x400] sm:$0xff]
    %v156 = vld [vmem:[#allocation2 + $0x408] sm:$0xff]
    %v157 = vld [vmem:[#allocation2 + $0x410] sm:$0xff]
    %v158 = vld [vmem:[#allocation2 + $0x418] sm:$0xff]
    %v159 = vld [vmem:[#allocation2 + $0x420] sm:$0xff]
    %v160 = vld [vmem:[#allocation2 + $0x428] sm:$0xff]
    %v161 = vld [vmem:[#allocation2 + $0x430] sm:$0xff]
    %v162 = vld [vmem:[#allocation2 + $0x438] sm:$0xff]
    %v163 = vld [vmem:[#allocation2 + $0x440] sm:$0xff]
    %v164 = vld [vmem:[#allocation2 + $0x448] sm:$0xff]
    %v165 = vld [vmem:[#allocation2 + $0x450] sm:$0xff]
    %v166 = vld [vmem:[#allocation2 + $0x458] sm:$0xff]
    %v167 = vld [vmem:[#allocation2 + $0x460] sm:$0xff]
    %v168 = vld [vmem:[#allocation2 + $0x468] sm:$0xff]
    %v169 = vld [vmem:[#allocation2 + $0x470] sm:$0xff]
    %v170 = vld [vmem:[#allocation2 + $0x478] sm:$0xff]
    %v171 = vld [vmem:[#allocation2 + $0x480] sm:$0xff]
    %v172 = vld [vmem:[#allocation2 + $0x488] sm:$0xff]
    %v173 = vld [vmem:[#allocation2 + $0x490] sm:$0xff]
    %v174 = vld [vmem:[#allocation2 + $0x498] sm:$0xff]
    %v175 = vld [vmem:[#allocation2 + $0x4a0] sm:$0xff]
    %v176 = vld [vmem:[#allocation2 + $0x4a8] sm:$0xff]
    %v177 = vld [vmem:[#allocation2 + $0x4b0] sm:$0xff]
    %v178 = vld [vmem:[#allocation2 + $0x4b8] sm:$0xff]
    %v179 = vld [vmem:[#allocation2 + $0x4c0] sm:$0xff]
    %v180 = vld [vmem:[#allocation2 + $0x4c8] sm:$0xff]
    %v181 = vld [vmem:[#allocation2 + $0x4d0] sm:$0xff]
    %v182 = vld [vmem:[#allocation2 + $0x4d8] sm:$0xff]
    %v183 = vld [vmem:[#allocation2 + $0x4e0] sm:$0xff]
    %v184 = vld [vmem:[#allocation2 + $0x4e8] sm:$0xff]
    %v185 = vld [vmem:[#allocation2 + $0x4f0] sm:$0xff]
    %v186 = vld [vmem:[#allocation2 + $0x4f8] sm:$0xff]
    %v187 = vld [vmem:[#allocation2 + $0x500] sm:$0xff]
    %v188 = vld [vmem:[#allocation2 + $0x508] sm:$0xff]
    %v189 = vld [vmem:[#allocation2 + $0x510] sm:$0xff]
    %v190 = vld [vmem:[#allocation2 + $0x518] sm:$0xff]
    %v191 = vld [vmem:[#allocation2 + $0x520] sm:$0xff]
    %v192 = vld [vmem:[#allocation2 + $0x528] sm:$0xff]
    %v193 = vld [vmem:[#allocation2 + $0x530] sm:$0xff]
    %v194 = vld [vmem:[#allocation2 + $0x538] sm:$0xff]
    %v195 = vld [vmem:[#allocation2 + $0x540] sm:$0xff]
    %v196 = vld [vmem:[#allocation2 + $0x548] sm:$0xff]
    %v197 = vld [vmem:[#allocation2 + $0x550] sm:$0xff]
    %v198 = vld [vmem:[#allocation2 + $0x558] sm:$0xff]
    %v199 = vld [vmem:[#allocation2 + $0x560] sm:$0xff]
    %v200 = vld [vmem:[#allocation2 + $0x568] sm:$0xff]
    %v201 = vld [vmem:[#allocation2 + $0x570] sm:$0xff]
    %v202 = vld [vmem:[#allocation2 + $0x578] sm:$0xff]
    %v203 = vld [vmem:[#allocation2 + $0x580] sm:$0xff]
    %v204 = vld [vmem:[#allocation2 + $0x588] sm:$0xff]
    %v205 = vld [vmem:[#allocation2 + $0x590] sm:$0xff]
    %v206 = vld [vmem:[#allocation2 + $0x598] sm:$0xff]
    %v207 = vld [vmem:[#allocation2 + $0x5a0] sm:$0xff]
    %v208 = vld [vmem:[#allocation2 + $0x5a8] sm:$0xff]
    %v209 = vld [vmem:[#allocation2 + $0x5b0] sm:$0xff]
    %v210 = vld [vmem:[#allocation2 + $0x5b8] sm:$0xff]
    %v211 = vld [vmem:[#allocation2 + $0x5c0] sm:$0xff]
    %v212 = vld [vmem:[#allocation2 + $0x5c8] sm:$0xff]
    %v213 = vld [vmem:[#allocation2 + $0x5d0] sm:$0xff]
    %v214 = vld [vmem:[#allocation2 + $0x5d8] sm:$0xff]
    %v215 = vld [vmem:[#allocation2 + $0x5e0] sm:$0xff]
    %v216 = vld [vmem:[#allocation2 + $0x5e8] sm:$0xff]
    %v217 = vld [vmem:[#allocation2 + $0x5f0] sm:$0xff]
    %v218 = vld [vmem:[#allocation2 + $0x5f8] sm:$0xff]
    %v219 = vld [vmem:[#allocation2 + $0x600] sm:$0xff]
    %v220 = vld [vmem:[#allocation2 + $0x608] sm:$0xff]
    %v221 = vld [vmem:[#allocation2 + $0x610] sm:$0xff]
    %v222 = vld [vmem:[#allocation2 + $0x618] sm:$0xff]
    %v223 = vld [vmem:[#allocation2 + $0x620] sm:$0xff]
    %v224 = vld [vmem:[#allocation2 + $0x628] sm:$0xff]
    %v225 = vld [vmem:[#allocation2 + $0x630] sm:$0xff]
    %v226 = vld [vmem:[#allocation2 + $0x638] sm:$0xff]
    %v227 = vld [vmem:[#allocation2 + $0x640] sm:$0xff]
    %v228 = vld [vmem:[#allocation2 + $0x648] sm:$0xff]
    %v229 = vld [vmem:[#allocation2 + $0x650] sm:$0xff]
    %v230 = vld [vmem:[#allocation2 + $0x658] sm:$0xff]
    %v231 = vld [vmem:[#allocation2 + $0x660] sm:$0xff]
    %v232 = vld [vmem:[#allocation2 + $0x668] sm:$0xff]
    %v233 = vld [vmem:[#allocation2 + $0x670] sm:$0xff]
    %v234 = vld [vmem:[#allocation2 + $0x678] sm:$0xff]
    %v235 = vld [vmem:[#allocation2 + $0x680] sm:$0xff]
    %v236 = vld [vmem:[#allocation2 + $0x688] sm:$0xff]
    %v237 = vld [vmem:[#allocation2 + $0x690] sm:$0xff]
    %v238 = vld [vmem:[#allocation2 + $0x698] sm:$0xff]
    %v239 = vld [vmem:[#allocation2 + $0x6a0] sm:$0xff]
    %v240 = vld [vmem:[#allocation2 + $0x6a8] sm:$0xff]
    %v241 = vld [vmem:[#allocation2 + $0x6b0] sm:$0xff]
    %v242 = vld [vmem:[#allocation2 + $0x6b8] sm:$0xff]
    %v243 = vld [vmem:[#allocation2 + $0x6c0] sm:$0xff]
    %v244 = vld [vmem:[#allocation2 + $0x6c8] sm:$0xff]
    %v245 = vld [vmem:[#allocation2 + $0x6d0] sm:$0xff]
    %v246 = vld [vmem:[#allocation2 + $0x6d8] sm:$0xff]
    %v247 = vld [vmem:[#allocation2 + $0x6e0] sm:$0xff]
    %v248 = vld [vmem:[#allocation2 + $0x6e8] sm:$0xff]
    %v249 = vld [vmem:[#allocation2 + $0x6f0] sm:$0xff]
    %v250 = vld [vmem:[#allocation2 + $0x6f8] sm:$0xff]
    %v251 = vld [vmem:[#allocation2 + $0x700] sm:$0xff]
    %v252 = vld [vmem:[#allocation2 + $0x708] sm:$0xff]
    %v253 = vld [vmem:[#allocation2 + $0x710] sm:$0xff]
    %v254 = vld [vmem:[#allocation2 + $0x718] sm:$0xff]
    %v255 = vld [vmem:[#allocation2 + $0x720] sm:$0xff]
    %v256 = vld [vmem:[#allocation2 + $0x728] sm:$0xff]
    %v257 = vld [vmem:[#allocation2 + $0x730] sm:$0xff]
    %v258 = vld [vmem:[#allocation2 + $0x738] sm:$0xff]
    %v259 = vld [vmem:[#allocation2 + $0x740] sm:$0xff]
    %v260 = vld [vmem:[#allocation2 + $0x748] sm:$0xff]
    %v261 = vld [vmem:[#allocation2 + $0x750] sm:$0xff]
    %v262 = vld [vmem:[#allocation2 + $0x758] sm:$0xff]
    %v263 = vld [vmem:[#allocation2 + $0x760] sm:$0xff]
    %v264 = vld [vmem:[#allocation2 + $0x768] sm:$0xff]
    %v265 = vld [vmem:[#allocation2 + $0x770] sm:$0xff]
    %v266 = vld [vmem:[#allocation2 + $0x778] sm:$0xff]
    %v267 = vld [vmem:[#allocation2 + $0x780] sm:$0xff]
    %v268 = vld [vmem:[#allocation2 + $0x788] sm:$0xff]
    %v269 = vld [vmem:[#allocation2 + $0x790] sm:$0xff]
    %v270 = vld [vmem:[#allocation2 + $0x798] sm:$0xff]
    %v271 = vld [vmem:[#allocation2 + $0x7a0] sm:$0xff]
    %v272 = vld [vmem:[#allocation2 + $0x7a8] sm:$0xff]
    %v273 = vld [vmem:[#allocation2 + $0x7b0] sm:$0xff]
    %v274 = vld [vmem:[#allocation2 + $0x7b8] sm:$0xff]
    %v275 = vld [vmem:[#allocation2 + $0x7c0] sm:$0xff]
    %v276 = vld [vmem:[#allocation2 + $0x7c8] sm:$0xff]
    %v277 = vld [vmem:[#allocation2 + $0x7d0] sm:$0xff]
    %v278 = vld [vmem:[#allocation2 + $0x7d8] sm:$0xff]
    %v279 = vld [vmem:[#allocation2 + $0x7e0] sm:$0xff]
    %v280 = vld [vmem:[#allocation2 + $0x7e8] sm:$0xff]
    %v281 = vld [vmem:[#allocation2 + $0x7f0] sm:$0xff]
    %v282 = vld [vmem:[#allocation2 + $0x7f8] sm:$0xff]
    %v283 = vld [vmem:[#allocation2 + $0x800] sm:$0xff]
    %v284 = vld [vmem:[#allocation2 + $0x808] sm:$0xff]
    %v285 = vld [vmem:[#allocation2 + $0x810] sm:$0xff]
    %v286 = vld [vmem:[#allocation2 + $0x818] sm:$0xff]
    %v287 = vld [vmem:[#allocation2 + $0x820] sm:$0xff]
    %v288 = vld [vmem:[#allocation2 + $0x828] sm:$0xff]
    %v289 = vld [vmem:[#allocation2 + $0x830] sm:$0xff]
    %v290 = vld [vmem:[#allocation2 + $0x838] sm:$0xff]
    %v291 = vld [vmem:[#allocation2 + $0x840] sm:$0xff]
    %v292 = vld [vmem:[#allocation2 + $0x848] sm:$0xff]
    %v293 = vld [vmem:[#allocation2 + $0x850] sm:$0xff]
    %v294 = vld [vmem:[#allocation2 + $0x858] sm:$0xff]
    %v295 = vld [vmem:[#allocation2 + $0x860] sm:$0xff]
    %v296 = vld [vmem:[#allocation2 + $0x868] sm:$0xff]
    %v297 = vld [vmem:[#allocation2 + $0x870] sm:$0xff]
    %v298 = vld [vmem:[#allocation2 + $0x878] sm:$0xff]
    %v299 = vld [vmem:[#allocation2 + $0x880] sm:$0xff]
    %v300 = vld [vmem:[#allocation2 + $0x888] sm:$0xff]
    %v301 = vld [vmem:[#allocation2 + $0x890] sm:$0xff]
    %v302 = vld [vmem:[#allocation2 + $0x898] sm:$0xff]
    %v303 = vld [vmem:[#allocation2 + $0x8a0] sm:$0xff]
    %v304 = vld [vmem:[#allocation2 + $0x8a8] sm:$0xff]
    %v305 = vld [vmem:[#allocation2 + $0x8b0] sm:$0xff]
    %v306 = vld [vmem:[#allocation2 + $0x8b8] sm:$0xff]
    %v307 = vld [vmem:[#allocation2 + $0x8c0] sm:$0xff]
    %v308 = vld [vmem:[#allocation2 + $0x8c8] sm:$0xff]
    %v309 = vld [vmem:[#allocation2 + $0x8d0] sm:$0xff]
    %v310 = vld [vmem:[#allocation2 + $0x8d8] sm:$0xff]
    %v311 = vld [vmem:[#allocation2 + $0x8e0] sm:$0xff]
    %v312 = vld [vmem:[#allocation2 + $0x8e8] sm:$0xff]
    %v313 = vld [vmem:[#allocation2 + $0x8f0] sm:$0xff]
    %v314 = vld [vmem:[#allocation2 + $0x8f8] sm:$0xff]
    %v315 = vld [vmem:[#allocation2 + $0x900] sm:$0xff]
    %v316 = vld [vmem:[#allocation2 + $0x908] sm:$0xff]
    %v317 = vld [vmem:[#allocation2 + $0x910] sm:$0xff]
    %v318 = vld [vmem:[#allocation2 + $0x918] sm:$0xff]
    %v319 = vld [vmem:[#allocation2 + $0x920] sm:$0xff]
    %v320 = vld [vmem:[#allocation2 + $0x928] sm:$0xff]
    %v321 = vld [vmem:[#allocation2 + $0x930] sm:$0xff]
    %v322 = vld [vmem:[#allocation2 + $0x938] sm:$0xff]
    %v323 = vld [vmem:[#allocation2 + $0x940] sm:$0xff]
    %v324 = vld [vmem:[#allocation2 + $0x948] sm:$0xff]
    %v325 = vld [vmem:[#allocation2 + $0x950] sm:$0xff]
    %v326 = vld [vmem:[#allocation2 + $0x958] sm:$0xff]
    %v327 = vld [vmem:[#allocation2 + $0x960] sm:$0xff]
    %v328 = vld [vmem:[#allocation2 + $0x968] sm:$0xff]
    %v329 = vld [vmem:[#allocation2 + $0x970] sm:$0xff]
    %v330 = vld [vmem:[#allocation2 + $0x978] sm:$0xff]
    %v331 = vld [vmem:[#allocation2 + $0x980] sm:$0xff]
    %v332 = vld [vmem:[#allocation2 + $0x988] sm:$0xff]
    %v333 = vld [vmem:[#allocation2 + $0x990] sm:$0xff]
    %v334 = vld [vmem:[#allocation2 + $0x998] sm:$0xff]
    %v335 = vld [vmem:[#allocation2 + $0x9a0] sm:$0xff]
    %v336 = vld [vmem:[#allocation2 + $0x9a8] sm:$0xff]
    %v337 = vld [vmem:[#allocation2 + $0x9b0] sm:$0xff]
    %v338 = vld [vmem:[#allocation2 + $0x9b8] sm:$0xff]
    %v339 = vld [vmem:[#allocation2 + $0x9c0] sm:$0xff]
    %v340 = vld [vmem:[#allocation2 + $0x9c8] sm:$0xff]
    %v341 = vld [vmem:[#allocation2 + $0x9d0] sm:$0xff]
    %v342 = vld [vmem:[#allocation2 + $0x9d8] sm:$0xff]
    %v343 = vld [vmem:[#allocation2 + $0x9e0] sm:$0xff]
    %v344 = vld [vmem:[#allocation2 + $0x9e8] sm:$0xff]
    %v345 = vld [vmem:[#allocation2 + $0x9f0] sm:$0xff]
    %v346 = vld [vmem:[#allocation2 + $0x9f8] sm:$0xff]
    %v347 = vld [vmem:[#allocation2 + $0xa00] sm:$0xff]
    %v348 = vld [vmem:[#allocation2 + $0xa08] sm:$0xff]
    %v349 = vld [vmem:[#allocation2 + $0xa10] sm:$0xff]
    %v350 = vld [vmem:[#allocation2 + $0xa18] sm:$0xff]
    %v351 = vld [vmem:[#allocation2 + $0xa20] sm:$0xff]
    %v352 = vld [vmem:[#allocation2 + $0xa28] sm:$0xff]
    %v353 = vld [vmem:[#allocation2 + $0xa30] sm:$0xff]
    %v354 = vld [vmem:[#allocation2 + $0xa38] sm:$0xff]
    %v355 = vld [vmem:[#allocation2 + $0xa40] sm:$0xff]
    %v356 = vld [vmem:[#allocation2 + $0xa48] sm:$0xff]
    %v357 = vld [vmem:[#allocation2 + $0xa50] sm:$0xff]
    %v358 = vld [vmem:[#allocation2 + $0xa58] sm:$0xff]
    %v359 = vld [vmem:[#allocation2 + $0xa60] sm:$0xff]
    %v360 = vld [vmem:[#allocation2 + $0xa68] sm:$0xff]
    %v361 = vld [vmem:[#allocation2 + $0xa70] sm:$0xff]
    %v362 = vld [vmem:[#allocation2 + $0xa78] sm:$0xff]
    %v363 = vld [vmem:[#allocation2 + $0xa80] sm:$0xff]
    %v364 = vld [vmem:[#allocation2 + $0xa88] sm:$0xff]
    %v365 = vld [vmem:[#allocation2 + $0xa90] sm:$0xff]
    %v366 = vld [vmem:[#allocation2 + $0xa98] sm:$0xff]
    %v367 = vld [vmem:[#allocation2 + $0xaa0] sm:$0xff]
    %v368 = vld [vmem:[#allocation2 + $0xaa8] sm:$0xff]
    %v369 = vld [vmem:[#allocation2 + $0xab0] sm:$0xff]
    %v370 = vld [vmem:[#allocation2 + $0xab8] sm:$0xff]
    %v371 = vld [vmem:[#allocation2 + $0xac0] sm:$0xff]
    %v372 = vld [vmem:[#allocation2 + $0xac8] sm:$0xff]
    %v373 = vld [vmem:[#allocation2 + $0xad0] sm:$0xff]
    %v374 = vld [vmem:[#allocation2 + $0xad8] sm:$0xff]
    %v375 = vld [vmem:[#allocation2 + $0xae0] sm:$0xff]
    %v376 = vld [vmem:[#allocation2 + $0xae8] sm:$0xff]
    %v377 = vld [vmem:[#allocation2 + $0xaf0] sm:$0xff]
    %v378 = vld [vmem:[#allocation2 + $0xaf8] sm:$0xff]
    %v379 = vld [vmem:[#allocation2 + $0xb00] sm:$0xff]
    %v380 = vld [vmem:[#allocation2 + $0xb08] sm:$0xff]
    %v381 = vld [vmem:[#allocation2 + $0xb10] sm:$0xff]
    %v382 = vld [vmem:[#allocation2 + $0xb18] sm:$0xff]
    %v383 = vld [vmem:[#allocation2 + $0xb20] sm:$0xff]
    %v384 = vld [vmem:[#allocation2 + $0xb28] sm:$0xff]
    %v385 = vld [vmem:[#allocation2 + $0xb30] sm:$0xff]
    %v386 = vld [vmem:[#allocation2 + $0xb38] sm:$0xff]
    %v387 = vld [vmem:[#allocation2 + $0xb40] sm:$0xff]
    %v388 = vld [vmem:[#allocation2 + $0xb48] sm:$0xff]
    %v389 = vld [vmem:[#allocation2 + $0xb50] sm:$0xff]
    %v390 = vld [vmem:[#allocation2 + $0xb58] sm:$0xff]
    %v391 = vld [vmem:[#allocation2 + $0xb60] sm:$0xff]
    %v392 = vld [vmem:[#allocation2 + $0xb68] sm:$0xff]
    %v393 = vld [vmem:[#allocation2 + $0xb70] sm:$0xff]
    %v394 = vld [vmem:[#allocation2 + $0xb78] sm:$0xff]
    %v395 = vld [vmem:[#allocation2 + $0xb80] sm:$0xff]
    %v396 = vld [vmem:[#allocation2 + $0xb88] sm:$0xff]
    %v397 = vld [vmem:[#allocation2 + $0xb90] sm:$0xff]
    %v398 = vld [vmem:[#allocation2 + $0xb98] sm:$0xff]
    %v399 = vld [vmem:[#allocation2 + $0xba0] sm:$0xff]
    %v400 = vld [vmem:[#allocation2 + $0xba8] sm:$0xff]
    %v401 = vld [vmem:[#allocation2 + $0xbb0] sm:$0xff]
    %v402 = vld [vmem:[#allocation2 + $0xbb8] sm:$0xff]
    %v403 = vld [vmem:[#allocation2 + $0xbc0] sm:$0xff]
    %v404 = vld [vmem:[#allocation2 + $0xbc8] sm:$0xff]
    %v405 = vld [vmem:[#allocation2 + $0xbd0] sm:$0xff]
    %v406 = vld [vmem:[#allocation2 + $0xbd8] sm:$0xff]
    %v407 = vld [vmem:[#allocation2 + $0xbe0] sm:$0xff]
    %v408 = vld [vmem:[#allocation2 + $0xbe8] sm:$0xff]
    %v409 = vld [vmem:[#allocation2 + $0xbf0] sm:$0xff]
    %v410 = vld [vmem:[#allocation2 + $0xbf8] sm:$0xff]
    %v411 = vld [vmem:[#allocation2 + $0xc00] sm:$0xff]
    %v412 = vld [vmem:[#allocation2 + $0xc08] sm:$0xff]
    %v413 = vld [vmem:[#allocation2 + $0xc10] sm:$0xff]
    %v414 = vld [vmem:[#allocation2 + $0xc18] sm:$0xff]
    %v415 = vld [vmem:[#allocation2 + $0xc20] sm:$0xff]
    %v416 = vld [vmem:[#allocation2 + $0xc28] sm:$0xff]
    %v417 = vld [vmem:[#allocation2 + $0xc30] sm:$0xff]
    %v418 = vld [vmem:[#allocation2 + $0xc38] sm:$0xff]
    %v419 = vld [vmem:[#allocation2 + $0xc40] sm:$0xff]
    %v420 = vld [vmem:[#allocation2 + $0xc48] sm:$0xff]
    %v421 = vld [vmem:[#allocation2 + $0xc50] sm:$0xff]
    %v422 = vld [vmem:[#allocation2 + $0xc58] sm:$0xff]
    %v423 = vld [vmem:[#allocation2 + $0xc60] sm:$0xff]
    %v424 = vld [vmem:[#allocation2 + $0xc68] sm:$0xff]
    %v425 = vld [vmem:[#allocation2 + $0xc70] sm:$0xff]
    %v426 = vld [vmem:[#allocation2 + $0xc78] sm:$0xff]
    %v427 = vld [vmem:[#allocation2 + $0xc80] sm:$0xff]
    %v428 = vld [vmem:[#allocation2 + $0xc88] sm:$0xff]
    %v429 = vld [vmem:[#allocation2 + $0xc90] sm:$0xff]
    %v430 = vld [vmem:[#allocation2 + $0xc98] sm:$0xff]
    %v431 = vld [vmem:[#allocation2 + $0xca0] sm:$0xff]
    %v432 = vld [vmem:[#allocation2 + $0xca8] sm:$0xff]
    %v433 = vld [vmem:[#allocation2 + $0xcb0] sm:$0xff]
    %v434 = vld [vmem:[#allocation2 + $0xcb8] sm:$0xff]
    %v435 = vld [vmem:[#allocation2 + $0xcc0] sm:$0xff]
    %v436 = vld [vmem:[#allocation2 + $0xcc8] sm:$0xff]
    %v437 = vld [vmem:[#allocation2 + $0xcd0] sm:$0xff]
    %v438 = vld [vmem:[#allocation2 + $0xcd8] sm:$0xff]
    %v439 = vld [vmem:[#allocation2 + $0xce0] sm:$0xff]
    %v440 = vld [vmem:[#allocation2 + $0xce8] sm:$0xff]
    %v441 = vld [vmem:[#allocation2 + $0xcf0] sm:$0xff]
    %v442 = vld [vmem:[#allocation2 + $0xcf8] sm:$0xff]
    %v443 = vld [vmem:[#allocation2 + $0xd00] sm:$0xff]
    %v444 = vld [vmem:[#allocation2 + $0xd08] sm:$0xff]
    %v445 = vld [vmem:[#allocation2 + $0xd10] sm:$0xff]
    %v446 = vld [vmem:[#allocation2 + $0xd18] sm:$0xff]
    %v447 = vld [vmem:[#allocation2 + $0xd20] sm:$0xff]
    %v448 = vld [vmem:[#allocation2 + $0xd28] sm:$0xff]
    %v449 = vld [vmem:[#allocation2 + $0xd30] sm:$0xff]
    %v450 = vld [vmem:[#allocation2 + $0xd38] sm:$0xff]
    %v451 = vld [vmem:[#allocation2 + $0xd40] sm:$0xff]
    %v452 = vld [vmem:[#allocation2 + $0xd48] sm:$0xff]
    %v453 = vld [vmem:[#allocation2 + $0xd50] sm:$0xff]
    %v454 = vld [vmem:[#allocation2 + $0xd58] sm:$0xff]
    %v455 = vld [vmem:[#allocation2 + $0xd60] sm:$0xff]
    %v456 = vld [vmem:[#allocation2 + $0xd68] sm:$0xff]
    %v457 = vld [vmem:[#allocation2 + $0xd70] sm:$0xff]
    %v458 = vld [vmem:[#allocation2 + $0xd78] sm:$0xff]
    %v459 = vld [vmem:[#allocation2 + $0xd80] sm:$0xff]
    %v460 = vld [vmem:[#allocation2 + $0xd88] sm:$0xff]
    %v461 = vld [vmem:[#allocation2 + $0xd90] sm:$0xff]
    %v462 = vld [vmem:[#allocation2 + $0xd98] sm:$0xff]
    %v463 = vld [vmem:[#allocation2 + $0xda0] sm:$0xff]
    %v464 = vld [vmem:[#allocation2 + $0xda8] sm:$0xff]
    %v465 = vld [vmem:[#allocation2 + $0xdb0] sm:$0xff]
    %v466 = vld [vmem:[#allocation2 + $0xdb8] sm:$0xff]
    %v467 = vld [vmem:[#allocation2 + $0xdc0] sm:$0xff]
    %v468 = vld [vmem:[#allocation2 + $0xdc8] sm:$0xff]
    %v469 = vld [vmem:[#allocation2 + $0xdd0] sm:$0xff]
    %v470 = vld [vmem:[#allocation2 + $0xdd8] sm:$0xff]
    %v471 = vld [vmem:[#allocation2 + $0xde0] sm:$0xff]
    %v472 = vld [vmem:[#allocation2 + $0xde8] sm:$0xff]
    %v473 = vld [vmem:[#allocation2 + $0xdf0] sm:$0xff]
    %v474 = vld [vmem:[#allocation2 + $0xdf8] sm:$0xff]
    %v923 = vunpack.c.l.b16 %v27
    %v924 = vunpack.c.h.b16 %v27
    %v925 = vunpack.c.l.b16 %v28
    %v926 = vunpack.c.h.b16 %v28
    %v927 = vunpack.c.l.b16 %v29
    %v928 = vunpack.c.h.b16 %v29
    %v929 = vunpack.c.l.b16 %v30
    %v930 = vunpack.c.h.b16 %v30
    %v931 = vunpack.c.l.b16 %v31
    %v932 = vunpack.c.h.b16 %v31
    %v933 = vunpack.c.l.b16 %v32
    %v934 = vunpack.c.h.b16 %v32
    %v935 = vunpack.c.l.b16 %v33
    %v936 = vunpack.c.h.b16 %v33
    %v937 = vunpack.c.l.b16 %v34
    %v938 = vunpack.c.h.b16 %v34
    %v939 = vunpack.c.l.b16 %v35
    %v940 = vunpack.c.h.b16 %v35
    %v941 = vunpack.c.l.b16 %v36
    %v942 = vunpack.c.h.b16 %v36
    %v943 = vunpack.c.l.b16 %v37
    %v944 = vunpack.c.h.b16 %v37
    %v945 = vunpack.c.l.b16 %v38
    %v946 = vunpack.c.h.b16 %v38
    %v947 = vunpack.c.l.b16 %v39
    %v948 = vunpack.c.h.b16 %v39
    %v949 = vunpack.c.l.b16 %v40
    %v950 = vunpack.c.h.b16 %v40
    %v951 = vunpack.c.l.b16 %v41
    %v952 = vunpack.c.h.b16 %v41
    %v953 = vunpack.c.l.b16 %v42
    %v954 = vunpack.c.h.b16 %v42
    %v955 = vunpack.c.l.b16 %v43
    %v956 = vunpack.c.h.b16 %v43
    %v957 = vunpack.c.l.b16 %v44
    %v958 = vunpack.c.h.b16 %v44
    %v959 = vunpack.c.l.b16 %v45
    %v960 = vunpack.c.h.b16 %v45
    %v961 = vunpack.c.l.b16 %v46
    %v962 = vunpack.c.h.b16 %v46
    %v963 = vunpack.c.l.b16 %v47
    %v964 = vunpack.c.h.b16 %v47
    %v965 = vunpack.c.l.b16 %v48
    %v966 = vunpack.c.h.b16 %v48
    %v967 = vunpack.c.l.b16 %v49
    %v968 = vunpack.c.h.b16 %v49
    %v969 = vunpack.c.l.b16 %v50
    %v970 = vunpack.c.h.b16 %v50
    %v971 = vunpack.c.l.b16 %v51
    %v972 = vunpack.c.h.b16 %v51
    %v973 = vunpack.c.l.b16 %v52
    %v974 = vunpack.c.h.b16 %v52
    %v975 = vunpack.c.l.b16 %v53
    %v976 = vunpack.c.h.b16 %v53
    %v977 = vunpack.c.l.b16 %v54
    %v978 = vunpack.c.h.b16 %v54
    %v979 = vunpack.c.l.b16 %v55
    %v980 = vunpack.c.h.b16 %v55
    %v981 = vunpack.c.l.b16 %v56
    %v982 = vunpack.c.h.b16 %v56
    %v983 = vunpack.c.l.b16 %v57
    %v984 = vunpack.c.h.b16 %v57
    %v985 = vunpack.c.l.b16 %v58
    %v986 = vunpack.c.h.b16 %v58
    %v987 = vunpack.c.l.b16 %v59
    %v988 = vunpack.c.h.b16 %v59
    %v989 = vunpack.c.l.b16 %v60
    %v990 = vunpack.c.h.b16 %v60
    %v991 = vunpack.c.l.b16 %v61
    %v992 = vunpack.c.h.b16 %v61
    %v993 = vunpack.c.l.b16 %v62
    %v994 = vunpack.c.h.b16 %v62
    %v995 = vunpack.c.l.b16 %v63
    %v996 = vunpack.c.h.b16 %v63
    %v997 = vunpack.c.l.b16 %v64
    %v998 = vunpack.c.h.b16 %v64
    %v999 = vunpack.c.l.b16 %v65
    %v1000 = vunpack.c.h.b16 %v65
    %v1001 = vunpack.c.l.b16 %v66
    %v1002 = vunpack.c.h.b16 %v66
    %v1003 = vunpack.c.l.b16 %v67
    %v1004 = vunpack.c.h.b16 %v67
    %v1005 = vunpack.c.l.b16 %v68
    %v1006 = vunpack.c.h.b16 %v68
    %v1007 = vunpack.c.l.b16 %v69
    %v1008 = vunpack.c.h.b16 %v69
    %v1009 = vunpack.c.l.b16 %v70
    %v1010 = vunpack.c.h.b16 %v70
    %v1011 = vunpack.c.l.b16 %v71
    %v1012 = vunpack.c.h.b16 %v71
    %v1013 = vunpack.c.l.b16 %v72
    %v1014 = vunpack.c.h.b16 %v72
    %v1015 = vunpack.c.l.b16 %v73
    %v1016 = vunpack.c.h.b16 %v73
    %v1017 = vunpack.c.l.b16 %v74
    %v1018 = vunpack.c.h.b16 %v74
    %v1019 = vunpack.c.l.b16 %v75
    %v1020 = vunpack.c.h.b16 %v75
    %v1021 = vunpack.c.l.b16 %v76
    %v1022 = vunpack.c.h.b16 %v76
    %v1023 = vunpack.c.l.b16 %v77
    %v1024 = vunpack.c.h.b16 %v77
    %v1025 = vunpack.c.l.b16 %v78
    %v1026 = vunpack.c.h.b16 %v78
    %v1027 = vunpack.c.l.b16 %v79
    %v1028 = vunpack.c.h.b16 %v79
    %v1029 = vunpack.c.l.b16 %v80
    %v1030 = vunpack.c.h.b16 %v80
    %v1031 = vunpack.c.l.b16 %v81
    %v1032 = vunpack.c.h.b16 %v81
    %v1033 = vunpack.c.l.b16 %v82
    %v1034 = vunpack.c.h.b16 %v82
    %v1035 = vunpack.c.l.b16 %v83
    %v1036 = vunpack.c.h.b16 %v83
    %v1037 = vunpack.c.l.b16 %v84
    %v1038 = vunpack.c.h.b16 %v84
    %v1039 = vunpack.c.l.b16 %v85
    %v1040 = vunpack.c.h.b16 %v85
    %v1041 = vunpack.c.l.b16 %v86
    %v1042 = vunpack.c.h.b16 %v86
    %v1043 = vunpack.c.l.b16 %v87
    %v1044 = vunpack.c.h.b16 %v87
    %v1045 = vunpack.c.l.b16 %v88
    %v1046 = vunpack.c.h.b16 %v88
    %v1047 = vunpack.c.l.b16 %v89
    %v1048 = vunpack.c.h.b16 %v89
    %v1049 = vunpack.c.l.b16 %v90
    %v1050 = vunpack.c.h.b16 %v90
    %v1051 = vunpack.c.l.b16 %v91
    %v1052 = vunpack.c.h.b16 %v91
    %v1053 = vunpack.c.l.b16 %v92
    %v1054 = vunpack.c.h.b16 %v92
    %v1055 = vunpack.c.l.b16 %v93
    %v1056 = vunpack.c.h.b16 %v93
    %v1057 = vunpack.c.l.b16 %v94
    %v1058 = vunpack.c.h.b16 %v94
    %v1059 = vunpack.c.l.b16 %v95
    %v1060 = vunpack.c.h.b16 %v95
    %v1061 = vunpack.c.l.b16 %v96
    %v1062 = vunpack.c.h.b16 %v96
    %v1063 = vunpack.c.l.b16 %v97
    %v1064 = vunpack.c.h.b16 %v97
    %v1065 = vunpack.c.l.b16 %v98
    %v1066 = vunpack.c.h.b16 %v98
    %v1067 = vunpack.c.l.b16 %v99
    %v1068 = vunpack.c.h.b16 %v99
    %v1069 = vunpack.c.l.b16 %v100
    %v1070 = vunpack.c.h.b16 %v100
    %v1071 = vunpack.c.l.b16 %v101
    %v1072 = vunpack.c.h.b16 %v101
    %v1073 = vunpack.c.l.b16 %v102
    %v1074 = vunpack.c.h.b16 %v102
    %v1075 = vunpack.c.l.b16 %v103
    %v1076 = vunpack.c.h.b16 %v103
    %v1077 = vunpack.c.l.b16 %v104
    %v1078 = vunpack.c.h.b16 %v104
    %v1079 = vunpack.c.l.b16 %v105
    %v1080 = vunpack.c.h.b16 %v105
    %v1081 = vunpack.c.l.b16 %v106
    %v1082 = vunpack.c.h.b16 %v106
    %v1083 = vunpack.c.l.b16 %v107
    %v1084 = vunpack.c.h.b16 %v107
    %v1085 = vunpack.c.l.b16 %v108
    %v1086 = vunpack.c.h.b16 %v108
    %v1087 = vunpack.c.l.b16 %v109
    %v1088 = vunpack.c.h.b16 %v109
    %v1089 = vunpack.c.l.b16 %v110
    %v1090 = vunpack.c.h.b16 %v110
    %v1091 = vunpack.c.l.b16 %v111
    %v1092 = vunpack.c.h.b16 %v111
    %v1093 = vunpack.c.l.b16 %v112
    %v1094 = vunpack.c.h.b16 %v112
    %v1095 = vunpack.c.l.b16 %v113
    %v1096 = vunpack.c.h.b16 %v113
    %v1097 = vunpack.c.l.b16 %v114
    %v1098 = vunpack.c.h.b16 %v114
    %v1099 = vunpack.c.l.b16 %v115
    %v1100 = vunpack.c.h.b16 %v115
    %v1101 = vunpack.c.l.b16 %v116
    %v1102 = vunpack.c.h.b16 %v116
    %v1103 = vunpack.c.l.b16 %v117
    %v1104 = vunpack.c.h.b16 %v117
    %v1105 = vunpack.c.l.b16 %v118
    %v1106 = vunpack.c.h.b16 %v118
    %v1107 = vunpack.c.l.b16 %v119
    %v1108 = vunpack.c.h.b16 %v119
    %v1109 = vunpack.c.l.b16 %v120
    %v1110 = vunpack.c.h.b16 %v120
    %v1111 = vunpack.c.l.b16 %v121
    %v1112 = vunpack.c.h.b16 %v121
    %v1113 = vunpack.c.l.b16 %v122
    %v1114 = vunpack.c.h.b16 %v122
    %v1115 = vunpack.c.l.b16 %v123
    %v1116 = vunpack.c.h.b16 %v123
    %v1117 = vunpack.c.l.b16 %v124
    %v1118 = vunpack.c.h.b16 %v124
    %v1119 = vunpack.c.l.b16 %v125
    %v1120 = vunpack.c.h.b16 %v125
    %v1121 = vunpack.c.l.b16 %v126
    %v1122 = vunpack.c.h.b16 %v126
    %v1123 = vunpack.c.l.b16 %v127
    %v1124 = vunpack.c.h.b16 %v127
    %v1125 = vunpack.c.l.b16 %v128
    %v1126 = vunpack.c.h.b16 %v128
    %v1127 = vunpack.c.l.b16 %v129
    %v1128 = vunpack.c.h.b16 %v129
    %v1129 = vunpack.c.l.b16 %v130
    %v1130 = vunpack.c.h.b16 %v130
    %v1131 = vunpack.c.l.b16 %v131
    %v1132 = vunpack.c.h.b16 %v131
    %v1133 = vunpack.c.l.b16 %v132
    %v1134 = vunpack.c.h.b16 %v132
    %v1135 = vunpack.c.l.b16 %v133
    %v1136 = vunpack.c.h.b16 %v133
    %v1137 = vunpack.c.l.b16 %v134
    %v1138 = vunpack.c.h.b16 %v134
    %v1139 = vunpack.c.l.b16 %v135
    %v1140 = vunpack.c.h.b16 %v135
    %v1141 = vunpack.c.l.b16 %v136
    %v1142 = vunpack.c.h.b16 %v136
    %v1143 = vunpack.c.l.b16 %v137
    %v1144 = vunpack.c.h.b16 %v137
    %v1145 = vunpack.c.l.b16 %v138
    %v1146 = vunpack.c.h.b16 %v138
    %v1147 = vunpack.c.l.b16 %v139
    %v1148 = vunpack.c.h.b16 %v139
    %v1149 = vunpack.c.l.b16 %v140
    %v1150 = vunpack.c.h.b16 %v140
    %v1151 = vunpack.c.l.b16 %v141
    %v1152 = vunpack.c.h.b16 %v141
    %v1153 = vunpack.c.l.b16 %v142
    %v1154 = vunpack.c.h.b16 %v142
    %v1155 = vunpack.c.l.b16 %v143
    %v1156 = vunpack.c.h.b16 %v143
    %v1157 = vunpack.c.l.b16 %v144
    %v1158 = vunpack.c.h.b16 %v144
    %v1159 = vunpack.c.l.b16 %v145
    %v1160 = vunpack.c.h.b16 %v145
    %v1161 = vunpack.c.l.b16 %v146
    %v1162 = vunpack.c.h.b16 %v146
    %v1163 = vunpack.c.l.b16 %v147
    %v1164 = vunpack.c.h.b16 %v147
    %v1165 = vunpack.c.l.b16 %v148
    %v1166 = vunpack.c.h.b16 %v148
    %v1167 = vunpack.c.l.b16 %v149
    %v1168 = vunpack.c.h.b16 %v149
    %v1169 = vunpack.c.l.b16 %v150
    %v1170 = vunpack.c.h.b16 %v150
    %v1171 = vunpack.c.l.b16 %v151
    %v1172 = vunpack.c.h.b16 %v151
    %v1173 = vunpack.c.l.b16 %v152
    %v1174 = vunpack.c.h.b16 %v152
    %v1175 = vunpack.c.l.b16 %v153
    %v1176 = vunpack.c.h.b16 %v153
    %v1177 = vunpack.c.l.b16 %v154
    %v1178 = vunpack.c.h.b16 %v154
    %v1179 = vunpack.c.l.b16 %v155
    %v1180 = vunpack.c.h.b16 %v155
    %v1181 = vunpack.c.l.b16 %v156
    %v1182 = vunpack.c.h.b16 %v156
    %v1183 = vunpack.c.l.b16 %v157
    %v1184 = vunpack.c.h.b16 %v157
    %v1185 = vunpack.c.l.b16 %v158
    %v1186 = vunpack.c.h.b16 %v158
    %v1187 = vunpack.c.l.b16 %v159
    %v1188 = vunpack.c.h.b16 %v159
    %v1189 = vunpack.c.l.b16 %v160
    %v1190 = vunpack.c.h.b16 %v160
    %v1191 = vunpack.c.l.b16 %v161
    %v1192 = vunpack.c.h.b16 %v161
    %v1193 = vunpack.c.l.b16 %v162
    %v1194 = vunpack.c.h.b16 %v162
    %v1195 = vunpack.c.l.b16 %v163
    %v1196 = vunpack.c.h.b16 %v163
    %v1197 = vunpack.c.l.b16 %v164
    %v1198 = vunpack.c.h.b16 %v164
    %v1199 = vunpack.c.l.b16 %v165
    %v1200 = vunpack.c.h.b16 %v165
    %v1201 = vunpack.c.l.b16 %v166
    %v1202 = vunpack.c.h.b16 %v166
    %v1203 = vunpack.c.l.b16 %v167
    %v1204 = vunpack.c.h.b16 %v167
    %v1205 = vunpack.c.l.b16 %v168
    %v1206 = vunpack.c.h.b16 %v168
    %v1207 = vunpack.c.l.b16 %v169
    %v1208 = vunpack.c.h.b16 %v169
    %v1209 = vunpack.c.l.b16 %v170
    %v1210 = vunpack.c.h.b16 %v170
    %v1211 = vunpack.c.l.b16 %v171
    %v1212 = vunpack.c.h.b16 %v171
    %v1213 = vunpack.c.l.b16 %v172
    %v1214 = vunpack.c.h.b16 %v172
    %v1215 = vunpack.c.l.b16 %v173
    %v1216 = vunpack.c.h.b16 %v173
    %v1217 = vunpack.c.l.b16 %v174
    %v1218 = vunpack.c.h.b16 %v174
    %v1219 = vunpack.c.l.b16 %v175
    %v1220 = vunpack.c.h.b16 %v175
    %v1221 = vunpack.c.l.b16 %v176
    %v1222 = vunpack.c.h.b16 %v176
    %v1223 = vunpack.c.l.b16 %v177
    %v1224 = vunpack.c.h.b16 %v177
    %v1225 = vunpack.c.l.b16 %v178
    %v1226 = vunpack.c.h.b16 %v178
    %v1227 = vunpack.c.l.b16 %v179
    %v1228 = vunpack.c.h.b16 %v179
    %v1229 = vunpack.c.l.b16 %v180
    %v1230 = vunpack.c.h.b16 %v180
    %v1231 = vunpack.c.l.b16 %v181
    %v1232 = vunpack.c.h.b16 %v181
    %v1233 = vunpack.c.l.b16 %v182
    %v1234 = vunpack.c.h.b16 %v182
    %v1235 = vunpack.c.l.b16 %v183
    %v1236 = vunpack.c.h.b16 %v183
    %v1237 = vunpack.c.l.b16 %v184
    %v1238 = vunpack.c.h.b16 %v184
    %v1239 = vunpack.c.l.b16 %v185
    %v1240 = vunpack.c.h.b16 %v185
    %v1241 = vunpack.c.l.b16 %v186
    %v1242 = vunpack.c.h.b16 %v186
    %v1243 = vunpack.c.l.b16 %v187
    %v1244 = vunpack.c.h.b16 %v187
    %v1245 = vunpack.c.l.b16 %v188
    %v1246 = vunpack.c.h.b16 %v188
    %v1247 = vunpack.c.l.b16 %v189
    %v1248 = vunpack.c.h.b16 %v189
    %v1249 = vunpack.c.l.b16 %v190
    %v1250 = vunpack.c.h.b16 %v190
    %v1251 = vunpack.c.l.b16 %v191
    %v1252 = vunpack.c.h.b16 %v191
    %v1253 = vunpack.c.l.b16 %v192
    %v1254 = vunpack.c.h.b16 %v192
    %v1255 = vunpack.c.l.b16 %v193
    %v1256 = vunpack.c.h.b16 %v193
    %v1257 = vunpack.c.l.b16 %v194
    %v1258 = vunpack.c.h.b16 %v194
    %v1259 = vunpack.c.l.b16 %v195
    %v1260 = vunpack.c.h.b16 %v195
    %v1261 = vunpack.c.l.b16 %v196
    %v1262 = vunpack.c.h.b16 %v196
    %v1263 = vunpack.c.l.b16 %v197
    %v1264 = vunpack.c.h.b16 %v197
    %v1265 = vunpack.c.l.b16 %v198
    %v1266 = vunpack.c.h.b16 %v198
    %v1267 = vunpack.c.l.b16 %v199
    %v1268 = vunpack.c.h.b16 %v199
    %v1269 = vunpack.c.l.b16 %v200
    %v1270 = vunpack.c.h.b16 %v200
    %v1271 = vunpack.c.l.b16 %v201
    %v1272 = vunpack.c.h.b16 %v201
    %v1273 = vunpack.c.l.b16 %v202
    %v1274 = vunpack.c.h.b16 %v202
    %v1275 = vunpack.c.l.b16 %v203
    %v1276 = vunpack.c.h.b16 %v203
    %v1277 = vunpack.c.l.b16 %v204
    %v1278 = vunpack.c.h.b16 %v204
    %v1279 = vunpack.c.l.b16 %v205
    %v1280 = vunpack.c.h.b16 %v205
    %v1281 = vunpack.c.l.b16 %v206
    %v1282 = vunpack.c.h.b16 %v206
    %v1283 = vunpack.c.l.b16 %v207
    %v1284 = vunpack.c.h.b16 %v207
    %v1285 = vunpack.c.l.b16 %v208
    %v1286 = vunpack.c.h.b16 %v208
    %v1287 = vunpack.c.l.b16 %v209
    %v1288 = vunpack.c.h.b16 %v209
    %v1289 = vunpack.c.l.b16 %v210
    %v1290 = vunpack.c.h.b16 %v210
    %v1291 = vunpack.c.l.b16 %v211
    %v1292 = vunpack.c.h.b16 %v211
    %v1293 = vunpack.c.l.b16 %v212
    %v1294 = vunpack.c.h.b16 %v212
    %v1295 = vunpack.c.l.b16 %v213
    %v1296 = vunpack.c.h.b16 %v213
    %v1297 = vunpack.c.l.b16 %v214
    %v1298 = vunpack.c.h.b16 %v214
    %v1299 = vunpack.c.l.b16 %v215
    %v1300 = vunpack.c.h.b16 %v215
    %v1301 = vunpack.c.l.b16 %v216
    %v1302 = vunpack.c.h.b16 %v216
    %v1303 = vunpack.c.l.b16 %v217
    %v1304 = vunpack.c.h.b16 %v217
    %v1305 = vunpack.c.l.b16 %v218
    %v1306 = vunpack.c.h.b16 %v218
    %v1307 = vunpack.c.l.b16 %v219
    %v1308 = vunpack.c.h.b16 %v219
    %v1309 = vunpack.c.l.b16 %v220
    %v1310 = vunpack.c.h.b16 %v220
    %v1311 = vunpack.c.l.b16 %v221
    %v1312 = vunpack.c.h.b16 %v221
    %v1313 = vunpack.c.l.b16 %v222
    %v1314 = vunpack.c.h.b16 %v222
    %v1315 = vunpack.c.l.b16 %v223
    %v1316 = vunpack.c.h.b16 %v223
    %v1317 = vunpack.c.l.b16 %v224
    %v1318 = vunpack.c.h.b16 %v224
    %v1319 = vunpack.c.l.b16 %v225
    %v1320 = vunpack.c.h.b16 %v225
    %v1321 = vunpack.c.l.b16 %v226
    %v1322 = vunpack.c.h.b16 %v226
    %v1323 = vunpack.c.l.b16 %v227
    %v1324 = vunpack.c.h.b16 %v227
    %v1325 = vunpack.c.l.b16 %v228
    %v1326 = vunpack.c.h.b16 %v228
    %v1327 = vunpack.c.l.b16 %v229
    %v1328 = vunpack.c.h.b16 %v229
    %v1329 = vunpack.c.l.b16 %v230
    %v1330 = vunpack.c.h.b16 %v230
    %v1331 = vunpack.c.l.b16 %v231
    %v1332 = vunpack.c.h.b16 %v231
    %v1333 = vunpack.c.l.b16 %v232
    %v1334 = vunpack.c.h.b16 %v232
    %v1335 = vunpack.c.l.b16 %v233
    %v1336 = vunpack.c.h.b16 %v233
    %v1337 = vunpack.c.l.b16 %v234
    %v1338 = vunpack.c.h.b16 %v234
    %v1339 = vunpack.c.l.b16 %v235
    %v1340 = vunpack.c.h.b16 %v235
    %v1341 = vunpack.c.l.b16 %v236
    %v1342 = vunpack.c.h.b16 %v236
    %v1343 = vunpack.c.l.b16 %v237
    %v1344 = vunpack.c.h.b16 %v237
    %v1345 = vunpack.c.l.b16 %v238
    %v1346 = vunpack.c.h.b16 %v238
    %v1347 = vunpack.c.l.b16 %v239
    %v1348 = vunpack.c.h.b16 %v239
    %v1349 = vunpack.c.l.b16 %v240
    %v1350 = vunpack.c.h.b16 %v240
    %v1351 = vunpack.c.l.b16 %v241
    %v1352 = vunpack.c.h.b16 %v241
    %v1353 = vunpack.c.l.b16 %v242
    %v1354 = vunpack.c.h.b16 %v242
    %v1355 = vunpack.c.l.b16 %v243
    %v1356 = vunpack.c.h.b16 %v243
    %v1357 = vunpack.c.l.b16 %v244
    %v1358 = vunpack.c.h.b16 %v244
    %v1359 = vunpack.c.l.b16 %v245
    %v1360 = vunpack.c.h.b16 %v245
    %v1361 = vunpack.c.l.b16 %v246
    %v1362 = vunpack.c.h.b16 %v246
    %v1363 = vunpack.c.l.b16 %v247
    %v1364 = vunpack.c.h.b16 %v247
    %v1365 = vunpack.c.l.b16 %v248
    %v1366 = vunpack.c.h.b16 %v248
    %v1367 = vunpack.c.l.b16 %v249
    %v1368 = vunpack.c.h.b16 %v249
    %v1369 = vunpack.c.l.b16 %v250
    %v1370 = vunpack.c.h.b16 %v250
    %v1371 = vunpack.c.l.b16 %v251
    %v1372 = vunpack.c.h.b16 %v251
    %v1373 = vunpack.c.l.b16 %v252
    %v1374 = vunpack.c.h.b16 %v252
    %v1375 = vunpack.c.l.b16 %v253
    %v1376 = vunpack.c.h.b16 %v253
    %v1377 = vunpack.c.l.b16 %v254
    %v1378 = vunpack.c.h.b16 %v254
    %v1379 = vunpack.c.l.b16 %v255
    %v1380 = vunpack.c.h.b16 %v255
    %v1381 = vunpack.c.l.b16 %v256
    %v1382 = vunpack.c.h.b16 %v256
    %v1383 = vunpack.c.l.b16 %v257
    %v1384 = vunpack.c.h.b16 %v257
    %v1385 = vunpack.c.l.b16 %v258
    %v1386 = vunpack.c.h.b16 %v258
    %v1387 = vunpack.c.l.b16 %v259
    %v1388 = vunpack.c.h.b16 %v259
    %v1389 = vunpack.c.l.b16 %v260
    %v1390 = vunpack.c.h.b16 %v260
    %v1391 = vunpack.c.l.b16 %v261
    %v1392 = vunpack.c.h.b16 %v261
    %v1393 = vunpack.c.l.b16 %v262
    %v1394 = vunpack.c.h.b16 %v262
    %v1395 = vunpack.c.l.b16 %v263
    %v1396 = vunpack.c.h.b16 %v263
    %v1397 = vunpack.c.l.b16 %v264
    %v1398 = vunpack.c.h.b16 %v264
    %v1399 = vunpack.c.l.b16 %v265
    %v1400 = vunpack.c.h.b16 %v265
    %v1401 = vunpack.c.l.b16 %v266
    %v1402 = vunpack.c.h.b16 %v266
    %v1403 = vunpack.c.l.b16 %v267
    %v1404 = vunpack.c.h.b16 %v267
    %v1405 = vunpack.c.l.b16 %v268
    %v1406 = vunpack.c.h.b16 %v268
    %v1407 = vunpack.c.l.b16 %v269
    %v1408 = vunpack.c.h.b16 %v269
    %v1409 = vunpack.c.l.b16 %v270
    %v1410 = vunpack.c.h.b16 %v270
    %v1411 = vunpack.c.l.b16 %v271
    %v1412 = vunpack.c.h.b16 %v271
    %v1413 = vunpack.c.l.b16 %v272
    %v1414 = vunpack.c.h.b16 %v272
    %v1415 = vunpack.c.l.b16 %v273
    %v1416 = vunpack.c.h.b16 %v273
    %v1417 = vunpack.c.l.b16 %v274
    %v1418 = vunpack.c.h.b16 %v274
    %v1419 = vunpack.c.l.b16 %v275
    %v1420 = vunpack.c.h.b16 %v275
    %v1421 = vunpack.c.l.b16 %v276
    %v1422 = vunpack.c.h.b16 %v276
    %v1423 = vunpack.c.l.b16 %v277
    %v1424 = vunpack.c.h.b16 %v277
    %v1425 = vunpack.c.l.b16 %v278
    %v1426 = vunpack.c.h.b16 %v278
    %v1427 = vunpack.c.l.b16 %v279
    %v1428 = vunpack.c.h.b16 %v279
    %v1429 = vunpack.c.l.b16 %v280
    %v1430 = vunpack.c.h.b16 %v280
    %v1431 = vunpack.c.l.b16 %v281
    %v1432 = vunpack.c.h.b16 %v281
    %v1433 = vunpack.c.l.b16 %v282
    %v1434 = vunpack.c.h.b16 %v282
    %v1435 = vunpack.c.l.b16 %v283
    %v1436 = vunpack.c.h.b16 %v283
    %v1437 = vunpack.c.l.b16 %v284
    %v1438 = vunpack.c.h.b16 %v284
    %v1439 = vunpack.c.l.b16 %v285
    %v1440 = vunpack.c.h.b16 %v285
    %v1441 = vunpack.c.l.b16 %v286
    %v1442 = vunpack.c.h.b16 %v286
    %v1443 = vunpack.c.l.b16 %v287
    %v1444 = vunpack.c.h.b16 %v287
    %v1445 = vunpack.c.l.b16 %v288
    %v1446 = vunpack.c.h.b16 %v288
    %v1447 = vunpack.c.l.b16 %v289
    %v1448 = vunpack.c.h.b16 %v289
    %v1449 = vunpack.c.l.b16 %v290
    %v1450 = vunpack.c.h.b16 %v290
    %v1451 = vunpack.c.l.b16 %v291
    %v1452 = vunpack.c.h.b16 %v291
    %v1453 = vunpack.c.l.b16 %v292
    %v1454 = vunpack.c.h.b16 %v292
    %v1455 = vunpack.c.l.b16 %v293
    %v1456 = vunpack.c.h.b16 %v293
    %v1457 = vunpack.c.l.b16 %v294
    %v1458 = vunpack.c.h.b16 %v294
    %v1459 = vunpack.c.l.b16 %v295
    %v1460 = vunpack.c.h.b16 %v295
    %v1461 = vunpack.c.l.b16 %v296
    %v1462 = vunpack.c.h.b16 %v296
    %v1463 = vunpack.c.l.b16 %v297
    %v1464 = vunpack.c.h.b16 %v297
    %v1465 = vunpack.c.l.b16 %v298
    %v1466 = vunpack.c.h.b16 %v298
    %v1467 = vunpack.c.l.b16 %v299
    %v1468 = vunpack.c.h.b16 %v299
    %v1469 = vunpack.c.l.b16 %v300
    %v1470 = vunpack.c.h.b16 %v300
    %v1471 = vunpack.c.l.b16 %v301
    %v1472 = vunpack.c.h.b16 %v301
    %v1473 = vunpack.c.l.b16 %v302
    %v1474 = vunpack.c.h.b16 %v302
    %v1475 = vunpack.c.l.b16 %v303
    %v1476 = vunpack.c.h.b16 %v303
    %v1477 = vunpack.c.l.b16 %v304
    %v1478 = vunpack.c.h.b16 %v304
    %v1479 = vunpack.c.l.b16 %v305
    %v1480 = vunpack.c.h.b16 %v305
    %v1481 = vunpack.c.l.b16 %v306
    %v1482 = vunpack.c.h.b16 %v306
    %v1483 = vunpack.c.l.b16 %v307
    %v1484 = vunpack.c.h.b16 %v307
    %v1485 = vunpack.c.l.b16 %v308
    %v1486 = vunpack.c.h.b16 %v308
    %v1487 = vunpack.c.l.b16 %v309
    %v1488 = vunpack.c.h.b16 %v309
    %v1489 = vunpack.c.l.b16 %v310
    %v1490 = vunpack.c.h.b16 %v310
    %v1491 = vunpack.c.l.b16 %v311
    %v1492 = vunpack.c.h.b16 %v311
    %v1493 = vunpack.c.l.b16 %v312
    %v1494 = vunpack.c.h.b16 %v312
    %v1495 = vunpack.c.l.b16 %v313
    %v1496 = vunpack.c.h.b16 %v313
    %v1497 = vunpack.c.l.b16 %v314
    %v1498 = vunpack.c.h.b16 %v314
    %v1499 = vunpack.c.l.b16 %v315
    %v1500 = vunpack.c.h.b16 %v315
    %v1501 = vunpack.c.l.b16 %v316
    %v1502 = vunpack.c.h.b16 %v316
    %v1503 = vunpack.c.l.b16 %v317
    %v1504 = vunpack.c.h.b16 %v317
    %v1505 = vunpack.c.l.b16 %v318
    %v1506 = vunpack.c.h.b16 %v318
    %v1507 = vunpack.c.l.b16 %v319
    %v1508 = vunpack.c.h.b16 %v319
    %v1509 = vunpack.c.l.b16 %v320
    %v1510 = vunpack.c.h.b16 %v320
    %v1511 = vunpack.c.l.b16 %v321
    %v1512 = vunpack.c.h.b16 %v321
    %v1513 = vunpack.c.l.b16 %v322
    %v1514 = vunpack.c.h.b16 %v322
    %v1515 = vunpack.c.l.b16 %v323
    %v1516 = vunpack.c.h.b16 %v323
    %v1517 = vunpack.c.l.b16 %v324
    %v1518 = vunpack.c.h.b16 %v324
    %v1519 = vunpack.c.l.b16 %v325
    %v1520 = vunpack.c.h.b16 %v325
    %v1521 = vunpack.c.l.b16 %v326
    %v1522 = vunpack.c.h.b16 %v326
    %v1523 = vunpack.c.l.b16 %v327
    %v1524 = vunpack.c.h.b16 %v327
    %v1525 = vunpack.c.l.b16 %v328
    %v1526 = vunpack.c.h.b16 %v328
    %v1527 = vunpack.c.l.b16 %v329
    %v1528 = vunpack.c.h.b16 %v329
    %v1529 = vunpack.c.l.b16 %v330
    %v1530 = vunpack.c.h.b16 %v330
    %v1531 = vunpack.c.l.b16 %v331
    %v1532 = vunpack.c.h.b16 %v331
    %v1533 = vunpack.c.l.b16 %v332
    %v1534 = vunpack.c.h.b16 %v332
    %v1535 = vunpack.c.l.b16 %v333
    %v1536 = vunpack.c.h.b16 %v333
    %v1537 = vunpack.c.l.b16 %v334
    %v1538 = vunpack.c.h.b16 %v334
    %v1539 = vunpack.c.l.b16 %v335
    %v1540 = vunpack.c.h.b16 %v335
    %v1541 = vunpack.c.l.b16 %v336
    %v1542 = vunpack.c.h.b16 %v336
    %v1543 = vunpack.c.l.b16 %v337
    %v1544 = vunpack.c.h.b16 %v337
    %v1545 = vunpack.c.l.b16 %v338
    %v1546 = vunpack.c.h.b16 %v338
    %v1547 = vunpack.c.l.b16 %v339
    %v1548 = vunpack.c.h.b16 %v339
    %v1549 = vunpack.c.l.b16 %v340
    %v1550 = vunpack.c.h.b16 %v340
    %v1551 = vunpack.c.l.b16 %v341
    %v1552 = vunpack.c.h.b16 %v341
    %v1553 = vunpack.c.l.b16 %v342
    %v1554 = vunpack.c.h.b16 %v342
    %v1555 = vunpack.c.l.b16 %v343
    %v1556 = vunpack.c.h.b16 %v343
    %v1557 = vunpack.c.l.b16 %v344
    %v1558 = vunpack.c.h.b16 %v344
    %v1559 = vunpack.c.l.b16 %v345
    %v1560 = vunpack.c.h.b16 %v345
    %v1561 = vunpack.c.l.b16 %v346
    %v1562 = vunpack.c.h.b16 %v346
    %v1563 = vunpack.c.l.b16 %v347
    %v1564 = vunpack.c.h.b16 %v347
    %v1565 = vunpack.c.l.b16 %v348
    %v1566 = vunpack.c.h.b16 %v348
    %v1567 = vunpack.c.l.b16 %v349
    %v1568 = vunpack.c.h.b16 %v349
    %v1569 = vunpack.c.l.b16 %v350
    %v1570 = vunpack.c.h.b16 %v350
    %v1571 = vunpack.c.l.b16 %v351
    %v1572 = vunpack.c.h.b16 %v351
    %v1573 = vunpack.c.l.b16 %v352
    %v1574 = vunpack.c.h.b16 %v352
    %v1575 = vunpack.c.l.b16 %v353
    %v1576 = vunpack.c.h.b16 %v353
    %v1577 = vunpack.c.l.b16 %v354
    %v1578 = vunpack.c.h.b16 %v354
    %v1579 = vunpack.c.l.b16 %v355
    %v1580 = vunpack.c.h.b16 %v355
    %v1581 = vunpack.c.l.b16 %v356
    %v1582 = vunpack.c.h.b16 %v356
    %v1583 = vunpack.c.l.b16 %v357
    %v1584 = vunpack.c.h.b16 %v357
    %v1585 = vunpack.c.l.b16 %v358
    %v1586 = vunpack.c.h.b16 %v358
    %v1587 = vunpack.c.l.b16 %v359
    %v1588 = vunpack.c.h.b16 %v359
    %v1589 = vunpack.c.l.b16 %v360
    %v1590 = vunpack.c.h.b16 %v360
    %v1591 = vunpack.c.l.b16 %v361
    %v1592 = vunpack.c.h.b16 %v361
    %v1593 = vunpack.c.l.b16 %v362
    %v1594 = vunpack.c.h.b16 %v362
    %v1595 = vunpack.c.l.b16 %v363
    %v1596 = vunpack.c.h.b16 %v363
    %v1597 = vunpack.c.l.b16 %v364
    %v1598 = vunpack.c.h.b16 %v364
    %v1599 = vunpack.c.l.b16 %v365
    %v1600 = vunpack.c.h.b16 %v365
    %v1601 = vunpack.c.l.b16 %v366
    %v1602 = vunpack.c.h.b16 %v366
    %v1603 = vunpack.c.l.b16 %v367
    %v1604 = vunpack.c.h.b16 %v367
    %v1605 = vunpack.c.l.b16 %v368
    %v1606 = vunpack.c.h.b16 %v368
    %v1607 = vunpack.c.l.b16 %v369
    %v1608 = vunpack.c.h.b16 %v369
    %v1609 = vunpack.c.l.b16 %v370
    %v1610 = vunpack.c.h.b16 %v370
    %v1611 = vunpack.c.l.b16 %v371
    %v1612 = vunpack.c.h.b16 %v371
    %v1613 = vunpack.c.l.b16 %v372
    %v1614 = vunpack.c.h.b16 %v372
    %v1615 = vunpack.c.l.b16 %v373
    %v1616 = vunpack.c.h.b16 %v373
    %v1617 = vunpack.c.l.b16 %v374
    %v1618 = vunpack.c.h.b16 %v374
    %v1619 = vunpack.c.l.b16 %v375
    %v1620 = vunpack.c.h.b16 %v375
    %v1621 = vunpack.c.l.b16 %v376
    %v1622 = vunpack.c.h.b16 %v376
    %v1623 = vunpack.c.l.b16 %v377
    %v1624 = vunpack.c.h.b16 %v377
    %v1625 = vunpack.c.l.b16 %v378
    %v1626 = vunpack.c.h.b16 %v378
    %v1627 = vunpack.c.l.b16 %v379
    %v1628 = vunpack.c.h.b16 %v379
    %v1629 = vunpack.c.l.b16 %v380
    %v1630 = vunpack.c.h.b16 %v380
    %v1631 = vunpack.c.l.b16 %v381
    %v1632 = vunpack.c.h.b16 %v381
    %v1633 = vunpack.c.l.b16 %v382
    %v1634 = vunpack.c.h.b16 %v382
    %v1635 = vunpack.c.l.b16 %v383
    %v1636 = vunpack.c.h.b16 %v383
    %v1637 = vunpack.c.l.b16 %v384
    %v1638 = vunpack.c.h.b16 %v384
    %v1639 = vunpack.c.l.b16 %v385
    %v1640 = vunpack.c.h.b16 %v385
    %v1641 = vunpack.c.l.b16 %v386
    %v1642 = vunpack.c.h.b16 %v386
    %v1643 = vunpack.c.l.b16 %v387
    %v1644 = vunpack.c.h.b16 %v387
    %v1645 = vunpack.c.l.b16 %v388
    %v1646 = vunpack.c.h.b16 %v388
    %v1647 = vunpack.c.l.b16 %v389
    %v1648 = vunpack.c.h.b16 %v389
    %v1649 = vunpack.c.l.b16 %v390
    %v1650 = vunpack.c.h.b16 %v390
    %v1651 = vunpack.c.l.b16 %v391
    %v1652 = vunpack.c.h.b16 %v391
    %v1653 = vunpack.c.l.b16 %v392
    %v1654 = vunpack.c.h.b16 %v392
    %v1655 = vunpack.c.l.b16 %v393
    %v1656 = vunpack.c.h.b16 %v393
    %v1657 = vunpack.c.l.b16 %v394
    %v1658 = vunpack.c.h.b16 %v394
    %v1659 = vunpack.c.l.b16 %v395
    %v1660 = vunpack.c.h.b16 %v395
    %v1661 = vunpack.c.l.b16 %v396
    %v1662 = vunpack.c.h.b16 %v396
    %v1663 = vunpack.c.l.b16 %v397
    %v1664 = vunpack.c.h.b16 %v397
    %v1665 = vunpack.c.l.b16 %v398
    %v1666 = vunpack.c.h.b16 %v398
    %v1667 = vunpack.c.l.b16 %v399
    %v1668 = vunpack.c.h.b16 %v399
    %v1669 = vunpack.c.l.b16 %v400
    %v1670 = vunpack.c.h.b16 %v400
    %v1671 = vunpack.c.l.b16 %v401
    %v1672 = vunpack.c.h.b16 %v401
    %v1673 = vunpack.c.l.b16 %v402
    %v1674 = vunpack.c.h.b16 %v402
    %v1675 = vunpack.c.l.b16 %v403
    %v1676 = vunpack.c.h.b16 %v403
    %v1677 = vunpack.c.l.b16 %v404
    %v1678 = vunpack.c.h.b16 %v404
    %v1679 = vunpack.c.l.b16 %v405
    %v1680 = vunpack.c.h.b16 %v405
    %v1681 = vunpack.c.l.b16 %v406
    %v1682 = vunpack.c.h.b16 %v406
    %v1683 = vunpack.c.l.b16 %v407
    %v1684 = vunpack.c.h.b16 %v407
    %v1685 = vunpack.c.l.b16 %v408
    %v1686 = vunpack.c.h.b16 %v408
    %v1687 = vunpack.c.l.b16 %v409
    %v1688 = vunpack.c.h.b16 %v409
    %v1689 = vunpack.c.l.b16 %v410
    %v1690 = vunpack.c.h.b16 %v410
    %v1691 = vunpack.c.l.b16 %v411
    %v1692 = vunpack.c.h.b16 %v411
    %v1693 = vunpack.c.l.b16 %v412
    %v1694 = vunpack.c.h.b16 %v412
    %v1695 = vunpack.c.l.b16 %v413
    %v1696 = vunpack.c.h.b16 %v413
    %v1697 = vunpack.c.l.b16 %v414
    %v1698 = vunpack.c.h.b16 %v414
    %v1699 = vunpack.c.l.b16 %v415
    %v1700 = vunpack.c.h.b16 %v415
    %v1701 = vunpack.c.l.b16 %v416
    %v1702 = vunpack.c.h.b16 %v416
    %v1703 = vunpack.c.l.b16 %v417
    %v1704 = vunpack.c.h.b16 %v417
    %v1705 = vunpack.c.l.b16 %v418
    %v1706 = vunpack.c.h.b16 %v418
    %v1707 = vunpack.c.l.b16 %v419
    %v1708 = vunpack.c.h.b16 %v419
    %v1709 = vunpack.c.l.b16 %v420
    %v1710 = vunpack.c.h.b16 %v420
    %v1711 = vunpack.c.l.b16 %v421
    %v1712 = vunpack.c.h.b16 %v421
    %v1713 = vunpack.c.l.b16 %v422
    %v1714 = vunpack.c.h.b16 %v422
    %v1715 = vunpack.c.l.b16 %v423
    %v1716 = vunpack.c.h.b16 %v423
    %v1717 = vunpack.c.l.b16 %v424
    %v1718 = vunpack.c.h.b16 %v424
    %v1719 = vunpack.c.l.b16 %v425
    %v1720 = vunpack.c.h.b16 %v425
    %v1721 = vunpack.c.l.b16 %v426
    %v1722 = vunpack.c.h.b16 %v426
    %v1723 = vunpack.c.l.b16 %v427
    %v1724 = vunpack.c.h.b16 %v427
    %v1725 = vunpack.c.l.b16 %v428
    %v1726 = vunpack.c.h.b16 %v428
    %v1727 = vunpack.c.l.b16 %v429
    %v1728 = vunpack.c.h.b16 %v429
    %v1729 = vunpack.c.l.b16 %v430
    %v1730 = vunpack.c.h.b16 %v430
    %v1731 = vunpack.c.l.b16 %v431
    %v1732 = vunpack.c.h.b16 %v431
    %v1733 = vunpack.c.l.b16 %v432
    %v1734 = vunpack.c.h.b16 %v432
    %v1735 = vunpack.c.l.b16 %v433
    %v1736 = vunpack.c.h.b16 %v433
    %v1737 = vunpack.c.l.b16 %v434
    %v1738 = vunpack.c.h.b16 %v434
    %v1739 = vunpack.c.l.b16 %v435
    %v1740 = vunpack.c.h.b16 %v435
    %v1741 = vunpack.c.l.b16 %v436
    %v1742 = vunpack.c.h.b16 %v436
    %v1743 = vunpack.c.l.b16 %v437
    %v1744 = vunpack.c.h.b16 %v437
    %v1745 = vunpack.c.l.b16 %v438
    %v1746 = vunpack.c.h.b16 %v438
    %v1747 = vunpack.c.l.b16 %v439
    %v1748 = vunpack.c.h.b16 %v439
    %v1749 = vunpack.c.l.b16 %v440
    %v1750 = vunpack.c.h.b16 %v440
    %v1751 = vunpack.c.l.b16 %v441
    %v1752 = vunpack.c.h.b16 %v441
    %v1753 = vunpack.c.l.b16 %v442
    %v1754 = vunpack.c.h.b16 %v442
    %v1755 = vunpack.c.l.b16 %v443
    %v1756 = vunpack.c.h.b16 %v443
    %v1757 = vunpack.c.l.b16 %v444
    %v1758 = vunpack.c.h.b16 %v444
    %v1759 = vunpack.c.l.b16 %v445
    %v1760 = vunpack.c.h.b16 %v445
    %v1761 = vunpack.c.l.b16 %v446
    %v1762 = vunpack.c.h.b16 %v446
    %v1763 = vunpack.c.l.b16 %v447
    %v1764 = vunpack.c.h.b16 %v447
    %v1765 = vunpack.c.l.b16 %v448
    %v1766 = vunpack.c.h.b16 %v448
    %v1767 = vunpack.c.l.b16 %v449
    %v1768 = vunpack.c.h.b16 %v449
    %v1769 = vunpack.c.l.b16 %v450
    %v1770 = vunpack.c.h.b16 %v450
    %v1771 = vunpack.c.l.b16 %v451
    %v1772 = vunpack.c.h.b16 %v451
    %v1773 = vunpack.c.l.b16 %v452
    %v1774 = vunpack.c.h.b16 %v452
    %v1775 = vunpack.c.l.b16 %v453
    %v1776 = vunpack.c.h.b16 %v453
    %v1777 = vunpack.c.l.b16 %v454
    %v1778 = vunpack.c.h.b16 %v454
    %v1779 = vunpack.c.l.b16 %v455
    %v1780 = vunpack.c.h.b16 %v455
    %v1781 = vunpack.c.l.b16 %v456
    %v1782 = vunpack.c.h.b16 %v456
    %v1783 = vunpack.c.l.b16 %v457
    %v1784 = vunpack.c.h.b16 %v457
    %v1785 = vunpack.c.l.b16 %v458
    %v1786 = vunpack.c.h.b16 %v458
    %v1787 = vunpack.c.l.b16 %v459
    %v1788 = vunpack.c.h.b16 %v459
    %v1789 = vunpack.c.l.b16 %v460
    %v1790 = vunpack.c.h.b16 %v460
    %v1791 = vunpack.c.l.b16 %v461
    %v1792 = vunpack.c.h.b16 %v461
    %v1793 = vunpack.c.l.b16 %v462
    %v1794 = vunpack.c.h.b16 %v462
    %v1795 = vunpack.c.l.b16 %v463
    %v1796 = vunpack.c.h.b16 %v463
    %v1797 = vunpack.c.l.b16 %v464
    %v1798 = vunpack.c.h.b16 %v464
    %v1799 = vunpack.c.l.b16 %v465
    %v1800 = vunpack.c.h.b16 %v465
    %v1801 = vunpack.c.l.b16 %v466
    %v1802 = vunpack.c.h.b16 %v466
    %v1803 = vunpack.c.l.b16 %v467
    %v1804 = vunpack.c.h.b16 %v467
    %v1805 = vunpack.c.l.b16 %v468
    %v1806 = vunpack.c.h.b16 %v468
    %v1807 = vunpack.c.l.b16 %v469
    %v1808 = vunpack.c.h.b16 %v469
    %v1809 = vunpack.c.l.b16 %v470
    %v1810 = vunpack.c.h.b16 %v470
    %v1811 = vunpack.c.l.b16 %v471
    %v1812 = vunpack.c.h.b16 %v471
    %v1813 = vunpack.c.l.b16 %v472
    %v1814 = vunpack.c.h.b16 %v472
    %v1815 = vunpack.c.l.b16 %v473
    %v1816 = vunpack.c.h.b16 %v473
    %v1817 = vunpack.c.l.b16 %v474
    %v1818 = vunpack.c.h.b16 %v474
    %v1819 = vpack.c.b16 %v987, %v923
    %v1820 = vpack.c.b16 %v988, %v924
    %v1821 = vpack.c.b16 %v989, %v925
    %v1822 = vpack.c.b16 %v990, %v926
    %v1823 = vpack.c.b16 %v991, %v927
    %v1824 = vpack.c.b16 %v992, %v928
    %v1825 = vpack.c.b16 %v993, %v929
    %v1826 = vpack.c.b16 %v994, %v930
    %v1827 = vpack.c.b16 %v995, %v931
    %v1828 = vpack.c.b16 %v996, %v932
    %v1829 = vpack.c.b16 %v997, %v933
    %v1830 = vpack.c.b16 %v998, %v934
    %v1831 = vpack.c.b16 %v999, %v935
    %v1832 = vpack.c.b16 %v1000, %v936
    %v1833 = vpack.c.b16 %v1001, %v937
    %v1834 = vpack.c.b16 %v1002, %v938
    %v1835 = vpack.c.b16 %v1003, %v939
    %v1836 = vpack.c.b16 %v1004, %v940
    %v1837 = vpack.c.b16 %v1005, %v941
    %v1838 = vpack.c.b16 %v1006, %v942
    %v1839 = vpack.c.b16 %v1007, %v943
    %v1840 = vpack.c.b16 %v1008, %v944
    %v1841 = vpack.c.b16 %v1009, %v945
    %v1842 = vpack.c.b16 %v1010, %v946
    %v1843 = vpack.c.b16 %v1011, %v947
    %v1844 = vpack.c.b16 %v1012, %v948
    %v1845 = vpack.c.b16 %v1013, %v949
    %v1846 = vpack.c.b16 %v1014, %v950
    %v1847 = vpack.c.b16 %v1015, %v951
    %v1848 = vpack.c.b16 %v1016, %v952
    %v1849 = vpack.c.b16 %v1017, %v953
    %v1850 = vpack.c.b16 %v1018, %v954
    %v1851 = vpack.c.b16 %v1019, %v955
    %v1852 = vpack.c.b16 %v1020, %v956
    %v1853 = vpack.c.b16 %v1021, %v957
    %v1854 = vpack.c.b16 %v1022, %v958
    %v1855 = vpack.c.b16 %v1023, %v959
    %v1856 = vpack.c.b16 %v1024, %v960
    %v1857 = vpack.c.b16 %v1025, %v961
    %v1858 = vpack.c.b16 %v1026, %v962
    %v1859 = vpack.c.b16 %v1027, %v963
    %v1860 = vpack.c.b16 %v1028, %v964
    %v1861 = vpack.c.b16 %v1029, %v965
    %v1862 = vpack.c.b16 %v1030, %v966
    %v1863 = vpack.c.b16 %v1031, %v967
    %v1864 = vpack.c.b16 %v1032, %v968
    %v1865 = vpack.c.b16 %v1033, %v969
    %v1866 = vpack.c.b16 %v1034, %v970
    %v1867 = vpack.c.b16 %v1035, %v971
    %v1868 = vpack.c.b16 %v1036, %v972
    %v1869 = vpack.c.b16 %v1037, %v973
    %v1870 = vpack.c.b16 %v1038, %v974
    %v1871 = vpack.c.b16 %v1039, %v975
    %v1872 = vpack.c.b16 %v1040, %v976
    %v1873 = vpack.c.b16 %v1041, %v977
    %v1874 = vpack.c.b16 %v1042, %v978
    %v1875 = vpack.c.b16 %v1043, %v979
    %v1876 = vpack.c.b16 %v1044, %v980
    %v1877 = vpack.c.b16 %v1045, %v981
    %v1878 = vpack.c.b16 %v1046, %v982
    %v1879 = vpack.c.b16 %v1047, %v983
    %v1880 = vpack.c.b16 %v1048, %v984
    %v1881 = vpack.c.b16 %v1049, %v985
    %v1882 = vpack.c.b16 %v1050, %v986
    %v1883 = vpack.c.b16 %v1115, %v1051
    %v1884 = vpack.c.b16 %v1116, %v1052
    %v1885 = vpack.c.b16 %v1117, %v1053
    %v1886 = vpack.c.b16 %v1118, %v1054
    %v1887 = vpack.c.b16 %v1119, %v1055
    %v1888 = vpack.c.b16 %v1120, %v1056
    %v1889 = vpack.c.b16 %v1121, %v1057
    %v1890 = vpack.c.b16 %v1122, %v1058
    %v1891 = vpack.c.b16 %v1123, %v1059
    %v1892 = vpack.c.b16 %v1124, %v1060
    %v1893 = vpack.c.b16 %v1125, %v1061
    %v1894 = vpack.c.b16 %v1126, %v1062
    %v1895 = vpack.c.b16 %v1127, %v1063
    %v1896 = vpack.c.b16 %v1128, %v1064
    %v1897 = vpack.c.b16 %v1129, %v1065
    %v1898 = vpack.c.b16 %v1130, %v1066
    %v1899 = vpack.c.b16 %v1131, %v1067
    %v1900 = vpack.c.b16 %v1132, %v1068
    %v1901 = vpack.c.b16 %v1133, %v1069
    %v1902 = vpack.c.b16 %v1134, %v1070
    %v1903 = vpack.c.b16 %v1135, %v1071
    %v1904 = vpack.c.b16 %v1136, %v1072
    %v1905 = vpack.c.b16 %v1137, %v1073
    %v1906 = vpack.c.b16 %v1138, %v1074
    %v1907 = vpack.c.b16 %v1139, %v1075
    %v1908 = vpack.c.b16 %v1140, %v1076
    %v1909 = vpack.c.b16 %v1141, %v1077
    %v1910 = vpack.c.b16 %v1142, %v1078
    %v1911 = vpack.c.b16 %v1143, %v1079
    %v1912 = vpack.c.b16 %v1144, %v1080
    %v1913 = vpack.c.b16 %v1145, %v1081
    %v1914 = vpack.c.b16 %v1146, %v1082
    %v1915 = vpack.c.b16 %v1147, %v1083
    %v1916 = vpack.c.b16 %v1148, %v1084
    %v1917 = vpack.c.b16 %v1149, %v1085
    %v1918 = vpack.c.b16 %v1150, %v1086
    %v1919 = vpack.c.b16 %v1151, %v1087
    %v1920 = vpack.c.b16 %v1152, %v1088
    %v1921 = vpack.c.b16 %v1153, %v1089
    %v1922 = vpack.c.b16 %v1154, %v1090
    %v1923 = vpack.c.b16 %v1155, %v1091
    %v1924 = vpack.c.b16 %v1156, %v1092
    %v1925 = vpack.c.b16 %v1157, %v1093
    %v1926 = vpack.c.b16 %v1158, %v1094
    %v1927 = vpack.c.b16 %v1159, %v1095
    %v1928 = vpack.c.b16 %v1160, %v1096
    %v1929 = vpack.c.b16 %v1161, %v1097
    %v1930 = vpack.c.b16 %v1162, %v1098
    %v1931 = vpack.c.b16 %v1163, %v1099
    %v1932 = vpack.c.b16 %v1164, %v1100
    %v1933 = vpack.c.b16 %v1165, %v1101
    %v1934 = vpack.c.b16 %v1166, %v1102
    %v1935 = vpack.c.b16 %v1167, %v1103
    %v1936 = vpack.c.b16 %v1168, %v1104
    %v1937 = vpack.c.b16 %v1169, %v1105
    %v1938 = vpack.c.b16 %v1170, %v1106
    %v1939 = vpack.c.b16 %v1171, %v1107
    %v1940 = vpack.c.b16 %v1172, %v1108
    %v1941 = vpack.c.b16 %v1173, %v1109
    %v1942 = vpack.c.b16 %v1174, %v1110
    %v1943 = vpack.c.b16 %v1175, %v1111
    %v1944 = vpack.c.b16 %v1176, %v1112
    %v1945 = vpack.c.b16 %v1177, %v1113
    %v1946 = vpack.c.b16 %v1178, %v1114
    %v1947 = vpack.c.b16 %v1243, %v1179
    %v1948 = vpack.c.b16 %v1244, %v1180
    %v1949 = vpack.c.b16 %v1245, %v1181
    %v1950 = vpack.c.b16 %v1246, %v1182
    %v1951 = vpack.c.b16 %v1247, %v1183
    %v1952 = vpack.c.b16 %v1248, %v1184
    %v1953 = vpack.c.b16 %v1249, %v1185
    %v1954 = vpack.c.b16 %v1250, %v1186
    %v1955 = vpack.c.b16 %v1251, %v1187
    %v1956 = vpack.c.b16 %v1252, %v1188
    %v1957 = vpack.c.b16 %v1253, %v1189
    %v1958 = vpack.c.b16 %v1254, %v1190
    %v1959 = vpack.c.b16 %v1255, %v1191
    %v1960 = vpack.c.b16 %v1256, %v1192
    %v1961 = vpack.c.b16 %v1257, %v1193
    %v1962 = vpack.c.b16 %v1258, %v1194
    %v1963 = vpack.c.b16 %v1259, %v1195
    %v1964 = vpack.c.b16 %v1260, %v1196
    %v1965 = vpack.c.b16 %v1261, %v1197
    %v1966 = vpack.c.b16 %v1262, %v1198
    %v1967 = vpack.c.b16 %v1263, %v1199
    %v1968 = vpack.c.b16 %v1264, %v1200
    %v1969 = vpack.c.b16 %v1265, %v1201
    %v1970 = vpack.c.b16 %v1266, %v1202
    %v1971 = vpack.c.b16 %v1267, %v1203
    %v1972 = vpack.c.b16 %v1268, %v1204
    %v1973 = vpack.c.b16 %v1269, %v1205
    %v1974 = vpack.c.b16 %v1270, %v1206
    %v1975 = vpack.c.b16 %v1271, %v1207
    %v1976 = vpack.c.b16 %v1272, %v1208
    %v1977 = vpack.c.b16 %v1273, %v1209
    %v1978 = vpack.c.b16 %v1274, %v1210
    %v1979 = vpack.c.b16 %v1275, %v1211
    %v1980 = vpack.c.b16 %v1276, %v1212
    %v1981 = vpack.c.b16 %v1277, %v1213
    %v1982 = vpack.c.b16 %v1278, %v1214
    %v1983 = vpack.c.b16 %v1279, %v1215
    %v1984 = vpack.c.b16 %v1280, %v1216
    %v1985 = vpack.c.b16 %v1281, %v1217
    %v1986 = vpack.c.b16 %v1282, %v1218
    %v1987 = vpack.c.b16 %v1283, %v1219
    %v1988 = vpack.c.b16 %v1284, %v1220
    %v1989 = vpack.c.b16 %v1285, %v1221
    %v1990 = vpack.c.b16 %v1286, %v1222
    %v1991 = vpack.c.b16 %v1287, %v1223
    %v1992 = vpack.c.b16 %v1288, %v1224
    %v1993 = vpack.c.b16 %v1289, %v1225
    %v1994 = vpack.c.b16 %v1290, %v1226
    %v1995 = vpack.c.b16 %v1291, %v1227
    %v1996 = vpack.c.b16 %v1292, %v1228
    %v1997 = vpack.c.b16 %v1293, %v1229
    %v1998 = vpack.c.b16 %v1294, %v1230
    %v1999 = vpack.c.b16 %v1295, %v1231
    %v2000 = vpack.c.b16 %v1296, %v1232
    %v2001 = vpack.c.b16 %v1297, %v1233
    %v2002 = vpack.c.b16 %v1298, %v1234
    %v2003 = vpack.c.b16 %v1299, %v1235
    %v2004 = vpack.c.b16 %v1300, %v1236
    %v2005 = vpack.c.b16 %v1301, %v1237
    %v2006 = vpack.c.b16 %v1302, %v1238
    %v2007 = vpack.c.b16 %v1303, %v1239
    %v2008 = vpack.c.b16 %v1304, %v1240
    %v2009 = vpack.c.b16 %v1305, %v1241
    %v2010 = vpack.c.b16 %v1306, %v1242
    %v2011 = vpack.c.b16 %v1371, %v1307
    %v2012 = vpack.c.b16 %v1372, %v1308
    %v2013 = vpack.c.b16 %v1373, %v1309
    %v2014 = vpack.c.b16 %v1374, %v1310
    %v2015 = vpack.c.b16 %v1375, %v1311
    %v2016 = vpack.c.b16 %v1376, %v1312
    %v2017 = vpack.c.b16 %v1377, %v1313
    %v2018 = vpack.c.b16 %v1378, %v1314
    %v2019 = vpack.c.b16 %v1379, %v1315
    %v2020 = vpack.c.b16 %v1380, %v1316
    %v2021 = vpack.c.b16 %v1381, %v1317
    %v2022 = vpack.c.b16 %v1382, %v1318
    %v2023 = vpack.c.b16 %v1383, %v1319
    %v2024 = vpack.c.b16 %v1384, %v1320
    %v2025 = vpack.c.b16 %v1385, %v1321
    %v2026 = vpack.c.b16 %v1386, %v1322
    %v2027 = vpack.c.b16 %v1387, %v1323
    %v2028 = vpack.c.b16 %v1388, %v1324
    %v2029 = vpack.c.b16 %v1389, %v1325
    %v2030 = vpack.c.b16 %v1390, %v1326
    %v2031 = vpack.c.b16 %v1391, %v1327
    %v2032 = vpack.c.b16 %v1392, %v1328
    %v2033 = vpack.c.b16 %v1393, %v1329
    %v2034 = vpack.c.b16 %v1394, %v1330
    %v2035 = vpack.c.b16 %v1395, %v1331
    %v2036 = vpack.c.b16 %v1396, %v1332
    %v2037 = vpack.c.b16 %v1397, %v1333
    %v2038 = vpack.c.b16 %v1398, %v1334
    %v2039 = vpack.c.b16 %v1399, %v1335
    %v2040 = vpack.c.b16 %v1400, %v1336
    %v2041 = vpack.c.b16 %v1401, %v1337
    %v2042 = vpack.c.b16 %v1402, %v1338
    %v2043 = vpack.c.b16 %v1403, %v1339
    %v2044 = vpack.c.b16 %v1404, %v1340
    %v2045 = vpack.c.b16 %v1405, %v1341
    %v2046 = vpack.c.b16 %v1406, %v1342
    %v2047 = vpack.c.b16 %v1407, %v1343
    %v2048 = vpack.c.b16 %v1408, %v1344
    %v2049 = vpack.c.b16 %v1409, %v1345
    %v2050 = vpack.c.b16 %v1410, %v1346
    %v2051 = vpack.c.b16 %v1411, %v1347
    %v2052 = vpack.c.b16 %v1412, %v1348
    %v2053 = vpack.c.b16 %v1413, %v1349
    %v2054 = vpack.c.b16 %v1414, %v1350
    %v2055 = vpack.c.b16 %v1415, %v1351
    %v2056 = vpack.c.b16 %v1416, %v1352
    %v2057 = vpack.c.b16 %v1417, %v1353
    %v2058 = vpack.c.b16 %v1418, %v1354
    %v2059 = vpack.c.b16 %v1419, %v1355
    %v2060 = vpack.c.b16 %v1420, %v1356
    %v2061 = vpack.c.b16 %v1421, %v1357
    %v2062 = vpack.c.b16 %v1422, %v1358
    %v2063 = vpack.c.b16 %v1423, %v1359
    %v2064 = vpack.c.b16 %v1424, %v1360
    %v2065 = vpack.c.b16 %v1425, %v1361
    %v2066 = vpack.c.b16 %v1426, %v1362
    %v2067 = vpack.c.b16 %v1427, %v1363
    %v2068 = vpack.c.b16 %v1428, %v1364
    %v2069 = vpack.c.b16 %v1429, %v1365
    %v2070 = vpack.c.b16 %v1430, %v1366
    %v2071 = vpack.c.b16 %v1431, %v1367
    %v2072 = vpack.c.b16 %v1432, %v1368
    %v2073 = vpack.c.b16 %v1433, %v1369
    %v2074 = vpack.c.b16 %v1434, %v1370
    %v2075 = vpack.c.b16 %v1499, %v1435
    %v2076 = vpack.c.b16 %v1500, %v1436
    %v2077 = vpack.c.b16 %v1501, %v1437
    %v2078 = vpack.c.b16 %v1502, %v1438
    %v2079 = vpack.c.b16 %v1503, %v1439
    %v2080 = vpack.c.b16 %v1504, %v1440
    %v2081 = vpack.c.b16 %v1505, %v1441
    %v2082 = vpack.c.b16 %v1506, %v1442
    %v2083 = vpack.c.b16 %v1507, %v1443
    %v2084 = vpack.c.b16 %v1508, %v1444
    %v2085 = vpack.c.b16 %v1509, %v1445
    %v2086 = vpack.c.b16 %v1510, %v1446
    %v2087 = vpack.c.b16 %v1511, %v1447
    %v2088 = vpack.c.b16 %v1512, %v1448
    %v2089 = vpack.c.b16 %v1513, %v1449
    %v2090 = vpack.c.b16 %v1514, %v1450
    %v2091 = vpack.c.b16 %v1515, %v1451
    %v2092 = vpack.c.b16 %v1516, %v1452
    %v2093 = vpack.c.b16 %v1517, %v1453
    %v2094 = vpack.c.b16 %v1518, %v1454
    %v2095 = vpack.c.b16 %v1519, %v1455
    %v2096 = vpack.c.b16 %v1520, %v1456
    %v2097 = vpack.c.b16 %v1521, %v1457
    %v2098 = vpack.c.b16 %v1522, %v1458
    %v2099 = vpack.c.b16 %v1523, %v1459
    %v2100 = vpack.c.b16 %v1524, %v1460
    %v2101 = vpack.c.b16 %v1525, %v1461
    %v2102 = vpack.c.b16 %v1526, %v1462
    %v2103 = vpack.c.b16 %v1527, %v1463
    %v2104 = vpack.c.b16 %v1528, %v1464
    %v2105 = vpack.c.b16 %v1529, %v1465
    %v2106 = vpack.c.b16 %v1530, %v1466
    %v2107 = vpack.c.b16 %v1531, %v1467
    %v2108 = vpack.c.b16 %v1532, %v1468
    %v2109 = vpack.c.b16 %v1533, %v1469
    %v2110 = vpack.c.b16 %v1534, %v1470
    %v2111 = vpack.c.b16 %v1535, %v1471
    %v2112 = vpack.c.b16 %v1536, %v1472
    %v2113 = vpack.c.b16 %v1537, %v1473
    %v2114 = vpack.c.b16 %v1538, %v1474
    %v2115 = vpack.c.b16 %v1539, %v1475
    %v2116 = vpack.c.b16 %v1540, %v1476
    %v2117 = vpack.c.b16 %v1541, %v1477
    %v2118 = vpack.c.b16 %v1542, %v1478
    %v2119 = vpack.c.b16 %v1543, %v1479
    %v2120 = vpack.c.b16 %v1544, %v1480
    %v2121 = vpack.c.b16 %v1545, %v1481
    %v2122 = vpack.c.b16 %v1546, %v1482
    %v2123 = vpack.c.b16 %v1547, %v1483
    %v2124 = vpack.c.b16 %v1548, %v1484
    %v2125 = vpack.c.b16 %v1549, %v1485
    %v2126 = vpack.c.b16 %v1550, %v1486
    %v2127 = vpack.c.b16 %v1551, %v1487
    %v2128 = vpack.c.b16 %v1552, %v1488
    %v2129 = vpack.c.b16 %v1553, %v1489
    %v2130 = vpack.c.b16 %v1554, %v1490
    %v2131 = vpack.c.b16 %v1555, %v1491
    %v2132 = vpack.c.b16 %v1556, %v1492
    %v2133 = vpack.c.b16 %v1557, %v1493
    %v2134 = vpack.c.b16 %v1558, %v1494
    %v2135 = vpack.c.b16 %v1559, %v1495
    %v2136 = vpack.c.b16 %v1560, %v1496
    %v2137 = vpack.c.b16 %v1561, %v1497
    %v2138 = vpack.c.b16 %v1562, %v1498
    %v2139 = vpack.c.b16 %v1627, %v1563
    %v2140 = vpack.c.b16 %v1628, %v1564
    %v2141 = vpack.c.b16 %v1629, %v1565
    %v2142 = vpack.c.b16 %v1630, %v1566
    %v2143 = vpack.c.b16 %v1631, %v1567
    %v2144 = vpack.c.b16 %v1632, %v1568
    %v2145 = vpack.c.b16 %v1633, %v1569
    %v2146 = vpack.c.b16 %v1634, %v1570
    %v2147 = vpack.c.b16 %v1635, %v1571
    %v2148 = vpack.c.b16 %v1636, %v1572
    %v2149 = vpack.c.b16 %v1637, %v1573
    %v2150 = vpack.c.b16 %v1638, %v1574
    %v2151 = vpack.c.b16 %v1639, %v1575
    %v2152 = vpack.c.b16 %v1640, %v1576
    %v2153 = vpack.c.b16 %v1641, %v1577
    %v2154 = vpack.c.b16 %v1642, %v1578
    %v2155 = vpack.c.b16 %v1643, %v1579
    %v2156 = vpack.c.b16 %v1644, %v1580
    %v2157 = vpack.c.b16 %v1645, %v1581
    %v2158 = vpack.c.b16 %v1646, %v1582
    %v2159 = vpack.c.b16 %v1647, %v1583
    %v2160 = vpack.c.b16 %v1648, %v1584
    %v2161 = vpack.c.b16 %v1649, %v1585
    %v2162 = vpack.c.b16 %v1650, %v1586
    %v2163 = vpack.c.b16 %v1651, %v1587
    %v2164 = vpack.c.b16 %v1652, %v1588
    %v2165 = vpack.c.b16 %v1653, %v1589
    %v2166 = vpack.c.b16 %v1654, %v1590
    %v2167 = vpack.c.b16 %v1655, %v1591
    %v2168 = vpack.c.b16 %v1656, %v1592
    %v2169 = vpack.c.b16 %v1657, %v1593
    %v2170 = vpack.c.b16 %v1658, %v1594
    %v2171 = vpack.c.b16 %v1659, %v1595
    %v2172 = vpack.c.b16 %v1660, %v1596
    %v2173 = vpack.c.b16 %v1661, %v1597
    %v2174 = vpack.c.b16 %v1662, %v1598
    %v2175 = vpack.c.b16 %v1663, %v1599
    %v2176 = vpack.c.b16 %v1664, %v1600
    %v2177 = vpack.c.b16 %v1665, %v1601
    %v2178 = vpack.c.b16 %v1666, %v1602
    %v2179 = vpack.c.b16 %v1667, %v1603
    %v2180 = vpack.c.b16 %v1668, %v1604
    %v2181 = vpack.c.b16 %v1669, %v1605
    %v2182 = vpack.c.b16 %v1670, %v1606
    %v2183 = vpack.c.b16 %v1671, %v1607
    %v2184 = vpack.c.b16 %v1672, %v1608
    %v2185 = vpack.c.b16 %v1673, %v1609
    %v2186 = vpack.c.b16 %v1674, %v1610
    %v2187 = vpack.c.b16 %v1675, %v1611
    %v2188 = vpack.c.b16 %v1676, %v1612
    %v2189 = vpack.c.b16 %v1677, %v1613
    %v2190 = vpack.c.b16 %v1678, %v1614
    %v2191 = vpack.c.b16 %v1679, %v1615
    %v2192 = vpack.c.b16 %v1680, %v1616
    %v2193 = vpack.c.b16 %v1681, %v1617
    %v2194 = vpack.c.b16 %v1682, %v1618
    %v2195 = vpack.c.b16 %v1683, %v1619
    %v2196 = vpack.c.b16 %v1684, %v1620
    %v2197 = vpack.c.b16 %v1685, %v1621
    %v2198 = vpack.c.b16 %v1686, %v1622
    %v2199 = vpack.c.b16 %v1687, %v1623
    %v2200 = vpack.c.b16 %v1688, %v1624
    %v2201 = vpack.c.b16 %v1689, %v1625
    %v2202 = vpack.c.b16 %v1690, %v1626
    %v2203 = vpack.c.b16 %v1755, %v1691
    %v2204 = vpack.c.b16 %v1756, %v1692
    %v2205 = vpack.c.b16 %v1757, %v1693
    %v2206 = vpack.c.b16 %v1758, %v1694
    %v2207 = vpack.c.b16 %v1759, %v1695
    %v2208 = vpack.c.b16 %v1760, %v1696
    %v2209 = vpack.c.b16 %v1761, %v1697
    %v2210 = vpack.c.b16 %v1762, %v1698
    %v2211 = vpack.c.b16 %v1763, %v1699
    %v2212 = vpack.c.b16 %v1764, %v1700
    %v2213 = vpack.c.b16 %v1765, %v1701
    %v2214 = vpack.c.b16 %v1766, %v1702
    %v2215 = vpack.c.b16 %v1767, %v1703
    %v2216 = vpack.c.b16 %v1768, %v1704
    %v2217 = vpack.c.b16 %v1769, %v1705
    %v2218 = vpack.c.b16 %v1770, %v1706
    %v2219 = vpack.c.b16 %v1771, %v1707
    %v2220 = vpack.c.b16 %v1772, %v1708
    %v2221 = vpack.c.b16 %v1773, %v1709
    %v2222 = vpack.c.b16 %v1774, %v1710
    %v2223 = vpack.c.b16 %v1775, %v1711
    %v2224 = vpack.c.b16 %v1776, %v1712
    %v2225 = vpack.c.b16 %v1777, %v1713
    %v2226 = vpack.c.b16 %v1778, %v1714
    %v2227 = vpack.c.b16 %v1779, %v1715
    %v2228 = vpack.c.b16 %v1780, %v1716
    %v2229 = vpack.c.b16 %v1781, %v1717
    %v2230 = vpack.c.b16 %v1782, %v1718
    %v2231 = vpack.c.b16 %v1783, %v1719
    %v2232 = vpack.c.b16 %v1784, %v1720
    %v2233 = vpack.c.b16 %v1785, %v1721
    %v2234 = vpack.c.b16 %v1786, %v1722
    %v2235 = vpack.c.b16 %v1787, %v1723
    %v2236 = vpack.c.b16 %v1788, %v1724
    %v2237 = vpack.c.b16 %v1789, %v1725
    %v2238 = vpack.c.b16 %v1790, %v1726
    %v2239 = vpack.c.b16 %v1791, %v1727
    %v2240 = vpack.c.b16 %v1792, %v1728
    %v2241 = vpack.c.b16 %v1793, %v1729
    %v2242 = vpack.c.b16 %v1794, %v1730
    %v2243 = vpack.c.b16 %v1795, %v1731
    %v2244 = vpack.c.b16 %v1796, %v1732
    %v2245 = vpack.c.b16 %v1797, %v1733
    %v2246 = vpack.c.b16 %v1798, %v1734
    %v2247 = vpack.c.b16 %v1799, %v1735
    %v2248 = vpack.c.b16 %v1800, %v1736
    %v2249 = vpack.c.b16 %v1801, %v1737
    %v2250 = vpack.c.b16 %v1802, %v1738
    %v2251 = vpack.c.b16 %v1803, %v1739
    %v2252 = vpack.c.b16 %v1804, %v1740
    %v2253 = vpack.c.b16 %v1805, %v1741
    %v2254 = vpack.c.b16 %v1806, %v1742
    %v2255 = vpack.c.b16 %v1807, %v1743
    %v2256 = vpack.c.b16 %v1808, %v1744
    %v2257 = vpack.c.b16 %v1809, %v1745
    %v2258 = vpack.c.b16 %v1810, %v1746
    %v2259 = vpack.c.b16 %v1811, %v1747
    %v2260 = vpack.c.b16 %v1812, %v1748
    %v2261 = vpack.c.b16 %v1813, %v1749
    %v2262 = vpack.c.b16 %v1814, %v1750
    %v2263 = vpack.c.b16 %v1815, %v1751
    %v2264 = vpack.c.b16 %v1816, %v1752
    %v2265 = vpack.c.b16 %v1817, %v1753
    %v2266 = vpack.c.b16 %v1818, %v1754
    %vm2715 = vcmask 916480
    %v2717 = vsel %vm2715, %v26, 0
    %2719 = vmatprep.subr.bf16.mxu0 0
    %2720 = vmatpush1.bf16.msra.mxu0 0
    %2721 = vmatprep.subr.bf16.mxu0 %v2204
    %2722 = vmatpush1.bf16.msra.mxu0 %v2203
    %2723 = vmatprep.subr.bf16.mxu0 %v2140
    %2724 = vmatpush1.bf16.msra.mxu0 %v2139
    %2725 = vmatprep.subr.bf16.mxu0 %v2076
    %2726 = vmatpush1.bf16.msra.mxu0 %v2075
    %2727 = vmatprep.subr.bf16.mxu0 %v2012
    %2728 = vmatpush1.bf16.msra.mxu0 %v2011
    %2729 = vmatprep.subr.bf16.mxu0 %v1948
    %2730 = vmatpush1.bf16.msra.mxu0 %v1947
    %2731 = vmatprep.subr.bf16.mxu0 %v1884
    %2732 = vmatpush1.bf16.msra.mxu0 %v1883
    %2733 = vmatprep.subr.bf16.mxu0 %v1820
    %2734 = vmatpush1.bf16.msra.mxu0 %v1819
    %2735 = vmatprep.subr.bf16.mxu0 0
    %2736 = vmatpush2.bf16.msra.mxu0 0
    %2737 = vmatprep.subr.bf16.mxu0 0
    %2738 = vmatpush2.bf16.msra.mxu0 0
    %2739 = vmatprep.subr.bf16.mxu0 0
    %2740 = vmatpush2.bf16.msra.mxu0 0
    %2741 = vmatprep.subr.bf16.mxu0 0
    %2742 = vmatpush2.bf16.msra.mxu0 0
    %2743 = vmatprep.subr.bf16.mxu0 0
    %2744 = vmatpush2.bf16.msra.mxu0 0
    %2745 = vmatprep.subr.bf16.mxu0 0
    %2746 = vmatpush2.bf16.msra.mxu0 0
    %2747 = vmatprep.subr.bf16.mxu0 0
    %2748 = vmatpush2.bf16.msra.mxu0 0
    %2749 = vmatprep.subr.bf16.mxu0 0
    %2750 = vmatpush2.bf16.msra.mxu0 0
    %2751 = vmatprep.mubr.bf16.mxu0 0
    %2752 = vmatmul.mubr.bf16.gmra.mxu0 %v2717
    %v2753 = vpop.f32.mrf.mxu0
    %v2754 = vadd.f32 0.0, %v2753
    %v2755 = vpop.f32.mrf.mxu0
    %v2756 = vadd.f32 0.0, %v2755
    %v2757 = vpop.f32.mrf.mxu0
    %v2758 = vpop.f32.mrf.mxu0
    %2759 = vdwg.mxu0
    %2760 = vmatprep.subr.bf16.mxu0 0
    %2761 = vmatpush1.bf16.msra.mxu0 0
    %2762 = vmatprep.subr.bf16.mxu0 %v2206
    %2763 = vmatpush1.bf16.msra.mxu0 %v2205
    %2764 = vmatprep.subr.bf16.mxu0 %v2142
    %2765 = vmatpush1.bf16.msra.mxu0 %v2141
    %2766 = vmatprep.subr.bf16.mxu0 %v2078
    %2767 = vmatpush1.bf16.msra.mxu0 %v2077
    %2768 = vmatprep.subr.bf16.mxu0 %v2014
    %2769 = vmatpush1.bf16.msra.mxu0 %v2013
    %2770 = vmatprep.subr.bf16.mxu0 %v1950
    %2771 = vmatpush1.bf16.msra.mxu0 %v1949
    %2772 = vmatprep.subr.bf16.mxu0 %v1886
    %2773 = vmatpush1.bf16.msra.mxu0 %v1885
    %2774 = vmatprep.subr.bf16.mxu0 %v1822
    %2775 = vmatpush1.bf16.msra.mxu0 %v1821
    %2776 = vmatprep.subr.bf16.mxu0 0
    %2777 = vmatpush2.bf16.msra.mxu0 0
    %2778 = vmatprep.subr.bf16.mxu0 0
    %2779 = vmatpush2.bf16.msra.mxu0 0
    %2780 = vmatprep.subr.bf16.mxu0 0
    %2781 = vmatpush2.bf16.msra.mxu0 0
    %2782 = vmatprep.subr.bf16.mxu0 0
    %2783 = vmatpush2.bf16.msra.mxu0 0
    %2784 = vmatprep.subr.bf16.mxu0 0
    %2785 = vmatpush2.bf16.msra.mxu0 0
    %2786 = vmatprep.subr.bf16.mxu0 0
    %2787 = vmatpush2.bf16.msra.mxu0 0
    %2788 = vmatprep.subr.bf16.mxu0 0
    %2789 = vmatpush2.bf16.msra.mxu0 0
    %2790 = vmatprep.subr.bf16.mxu0 0
    %2791 = vmatpush2.bf16.msra.mxu0 0
    %2792 = vmatprep.mubr.bf16.mxu0 0
    %2793 = vmatmul.mubr.bf16.gmra.mxu0 %v2717
    %v2794 = vpop.f32.mrf.mxu0
    %v2795 = vadd.f32 0.0, %v2794
    %v2796 = vpop.f32.mrf.mxu0
    %v2797 = vadd.f32 0.0, %v2796
    %v2798 = vpop.f32.mrf.mxu0
    %v2799 = vpop.f32.mrf.mxu0
    %2800 = vdwg.mxu0
    %2801 = vmatprep.subr.bf16.mxu0 0
    %2802 = vmatpush1.bf16.msra.mxu0 0
    %2803 = vmatprep.subr.bf16.mxu0 %v2208
    %2804 = vmatpush1.bf16.msra.mxu0 %v2207
    %2805 = vmatprep.subr.bf16.mxu0 %v2144
    %2806 = vmatpush1.bf16.msra.mxu0 %v2143
    %2807 = vmatprep.subr.bf16.mxu0 %v2080
    %2808 = vmatpush1.bf16.msra.mxu0 %v2079
    %2809 = vmatprep.subr.bf16.mxu0 %v2016
    %2810 = vmatpush1.bf16.msra.mxu0 %v2015
    %2811 = vmatprep.subr.bf16.mxu0 %v1952
    %2812 = vmatpush1.bf16.msra.mxu0 %v1951
    %2813 = vmatprep.subr.bf16.mxu0 %v1888
    %2814 = vmatpush1.bf16.msra.mxu0 %v1887
    %2815 = vmatprep.subr.bf16.mxu0 %v1824
    %2816 = vmatpush1.bf16.msra.mxu0 %v1823
    %2817 = vmatprep.subr.bf16.mxu0 0
    %2818 = vmatpush2.bf16.msra.mxu0 0
    %2819 = vmatprep.subr.bf16.mxu0 0
    %2820 = vmatpush2.bf16.msra.mxu0 0
    %2821 = vmatprep.subr.bf16.mxu0 0
    %2822 = vmatpush2.bf16.msra.mxu0 0
    %2823 = vmatprep.subr.bf16.mxu0 0
    %2824 = vmatpush2.bf16.msra.mxu0 0
    %2825 = vmatprep.subr.bf16.mxu0 0
    %2826 = vmatpush2.bf16.msra.mxu0 0
    %2827 = vmatprep.subr.bf16.mxu0 0
    %2828 = vmatpush2.bf16.msra.mxu0 0
    %2829 = vmatprep.subr.bf16.mxu0 0
    %2830 = vmatpush2.bf16.msra.mxu0 0
    %2831 = vmatprep.subr.bf16.mxu0 0
    %2832 = vmatpush2.bf16.msra.mxu0 0
    %2833 = vmatprep.mubr.bf16.mxu0 0
    %2834 = vmatmul.mubr.bf16.gmra.mxu0 %v2717
    %v2835 = vpop.f32.mrf.mxu0
    %v2836 = vadd.f32 0.0, %v2835
    %v2837 = vpop.f32.mrf.mxu0
    %v2838 = vadd.f32 0.0, %v2837
    %v2839 = vpop.f32.mrf.mxu0
    %v2840 = vpop.f32.mrf.mxu0
    %2841 = vdwg.mxu0
    %2842 = vmatprep.subr.bf16.mxu0 0
    %2843 = vmatpush1.bf16.msra.mxu0 0
    %2844 = vmatprep.subr.bf16.mxu0 %v2210
    %2845 = vmatpush1.bf16.msra.mxu0 %v2209
    %2846 = vmatprep.subr.bf16.mxu0 %v2146
    %2847 = vmatpush1.bf16.msra.mxu0 %v2145
    %2848 = vmatprep.subr.bf16.mxu0 %v2082
    %2849 = vmatpush1.bf16.msra.mxu0 %v2081
    %2850 = vmatprep.subr.bf16.mxu0 %v2018
    %2851 = vmatpush1.bf16.msra.mxu0 %v2017
    %2852 = vmatprep.subr.bf16.mxu0 %v1954
    %2853 = vmatpush1.bf16.msra.mxu0 %v1953
    %2854 = vmatprep.subr.bf16.mxu0 %v1890
    %2855 = vmatpush1.bf16.msra.mxu0 %v1889
    %2856 = vmatprep.subr.bf16.mxu0 %v1826
    %2857 = vmatpush1.bf16.msra.mxu0 %v1825
    %2858 = vmatprep.subr.bf16.mxu0 0
    %2859 = vmatpush2.bf16.msra.mxu0 0
    %2860 = vmatprep.subr.bf16.mxu0 0
    %2861 = vmatpush2.bf16.msra.mxu0 0
    %2862 = vmatprep.subr.bf16.mxu0 0
    %2863 = vmatpush2.bf16.msra.mxu0 0
    %2864 = vmatprep.subr.bf16.mxu0 0
    %2865 = vmatpush2.bf16.msra.mxu0 0
    %2866 = vmatprep.subr.bf16.mxu0 0
    %2867 = vmatpush2.bf16.msra.mxu0 0
    %2868 = vmatprep.subr.bf16.mxu0 0
    %2869 = vmatpush2.bf16.msra.mxu0 0
    %2870 = vmatprep.subr.bf16.mxu0 0
    %2871 = vmatpush2.bf16.msra.mxu0 0
    %2872 = vmatprep.subr.bf16.mxu0 0
    %2873 = vmatpush2.bf16.msra.mxu0 0
    %2874 = vmatprep.mubr.bf16.mxu0 0
    %2875 = vmatmul.mubr.bf16.gmra.mxu0 %v2717
    %v2876 = vpop.f32.mrf.mxu0
    %v2877 = vadd.f32 0.0, %v2876
    %v2878 = vpop.f32.mrf.mxu0
    %v2879 = vadd.f32 0.0, %v2878
    %v2880 = vpop.f32.mrf.mxu0
    %v2881 = vpop.f32.mrf.mxu0
    %2882 = vdwg.mxu0
    %2883 = vmatprep.subr.bf16.mxu0 0
    %2884 = vmatpush1.bf16.msra.mxu0 0
    %2885 = vmatprep.subr.bf16.mxu0 %v2212
    %2886 = vmatpush1.bf16.msra.mxu0 %v2211
    %2887 = vmatprep.subr.bf16.mxu0 %v2148
    %2888 = vmatpush1.bf16.msra.mxu0 %v2147
    %2889 = vmatprep.subr.bf16.mxu0 %v2084
    %2890 = vmatpush1.bf16.msra.mxu0 %v2083
    %2891 = vmatprep.subr.bf16.mxu0 %v2020
    %2892 = vmatpush1.bf16.msra.mxu0 %v2019
    %2893 = vmatprep.subr.bf16.mxu0 %v1956
    %2894 = vmatpush1.bf16.msra.mxu0 %v1955
    %2895 = vmatprep.subr.bf16.mxu0 %v1892
    %2896 = vmatpush1.bf16.msra.mxu0 %v1891
    %2897 = vmatprep.subr.bf16.mxu0 %v1828
    %2898 = vmatpush1.bf16.msra.mxu0 %v1827
    %2899 = vmatprep.subr.bf16.mxu0 0
    %2900 = vmatpush2.bf16.msra.mxu0 0
    %2901 = vmatprep.subr.bf16.mxu0 0
    %2902 = vmatpush2.bf16.msra.mxu0 0
    %2903 = vmatprep.subr.bf16.mxu0 0
    %2904 = vmatpush2.bf16.msra.mxu0 0
    %2905 = vmatprep.subr.bf16.mxu0 0
    %2906 = vmatpush2.bf16.msra.mxu0 0
    %2907 = vmatprep.subr.bf16.mxu0 0
    %2908 = vmatpush2.bf16.msra.mxu0 0
    %2909 = vmatprep.subr.bf16.mxu0 0
    %2910 = vmatpush2.bf16.msra.mxu0 0
    %2911 = vmatprep.subr.bf16.mxu0 0
    %2912 = vmatpush2.bf16.msra.mxu0 0
    %2913 = vmatprep.subr.bf16.mxu0 0
    %2914 = vmatpush2.bf16.msra.mxu0 0
    %2915 = vmatprep.mubr.bf16.mxu0 0
    %2916 = vmatmul.mubr.bf16.gmra.mxu0 %v2717
    %v2917 = vpop.f32.mrf.mxu0
    %v2918 = vadd.f32 0.0, %v2917
    %v2919 = vpop.f32.mrf.mxu0
    %v2920 = vadd.f32 0.0, %v2919
    %v2921 = vpop.f32.mrf.mxu0
    %v2922 = vpop.f32.mrf.mxu0
    %2923 = vdwg.mxu0
    %2924 = vmatprep.subr.bf16.mxu0 0
    %2925 = vmatpush1.bf16.msra.mxu0 0
    %2926 = vmatprep.subr.bf16.mxu0 %v2214
    %2927 = vmatpush1.bf16.msra.mxu0 %v2213
    %2928 = vmatprep.subr.bf16.mxu0 %v2150
    %2929 = vmatpush1.bf16.msra.mxu0 %v2149
    %2930 = vmatprep.subr.bf16.mxu0 %v2086
    %2931 = vmatpush1.bf16.msra.mxu0 %v2085
    %2932 = vmatprep.subr.bf16.mxu0 %v2022
    %2933 = vmatpush1.bf16.msra.mxu0 %v2021
    %2934 = vmatprep.subr.bf16.mxu0 %v1958
    %2935 = vmatpush1.bf16.msra.mxu0 %v1957
    %2936 = vmatprep.subr.bf16.mxu0 %v1894
    %2937 = vmatpush1.bf16.msra.mxu0 %v1893
    %2938 = vmatprep.subr.bf16.mxu0 %v1830
    %2939 = vmatpush1.bf16.msra.mxu0 %v1829
    %2940 = vmatprep.subr.bf16.mxu0 0
    %2941 = vmatpush2.bf16.msra.mxu0 0
    %2942 = vmatprep.subr.bf16.mxu0 0
    %2943 = vmatpush2.bf16.msra.mxu0 0
    %2944 = vmatprep.subr.bf16.mxu0 0
    %2945 = vmatpush2.bf16.msra.mxu0 0
    %2946 = vmatprep.subr.bf16.mxu0 0
    %2947 = vmatpush2.bf16.msra.mxu0 0
    %2948 = vmatprep.subr.bf16.mxu0 0
    %2949 = vmatpush2.bf16.msra.mxu0 0
    %2950 = vmatprep.subr.bf16.mxu0 0
    %2951 = vmatpush2.bf16.msra.mxu0 0
    %2952 = vmatprep.subr.bf16.mxu0 0
    %2953 = vmatpush2.bf16.msra.mxu0 0
    %2954 = vmatprep.subr.bf16.mxu0 0
    %2955 = vmatpush2.bf16.msra.mxu0 0
    %2956 = vmatprep.mubr.bf16.mxu0 0
    %2957 = vmatmul.mubr.bf16.gmra.mxu0 %v2717
    %v2958 = vpop.f32.mrf.mxu0
    %v2959 = vadd.f32 0.0, %v2958
    %v2960 = vpop.f32.mrf.mxu0
    %v2961 = vadd.f32 0.0, %v2960
    %v2962 = vpop.f32.mrf.mxu0
    %v2963 = vpop.f32.mrf.mxu0
    %2964 = vdwg.mxu0
    %2965 = vmatprep.subr.bf16.mxu0 0
    %2966 = vmatpush1.bf16.msra.mxu0 0
    %2967 = vmatprep.subr.bf16.mxu0 %v2216
    %2968 = vmatpush1.bf16.msra.mxu0 %v2215
    %2969 = vmatprep.subr.bf16.mxu0 %v2152
    %2970 = vmatpush1.bf16.msra.mxu0 %v2151
    %2971 = vmatprep.subr.bf16.mxu0 %v2088
    %2972 = vmatpush1.bf16.msra.mxu0 %v2087
    %2973 = vmatprep.subr.bf16.mxu0 %v2024
    %2974 = vmatpush1.bf16.msra.mxu0 %v2023
    %2975 = vmatprep.subr.bf16.mxu0 %v1960
    %2976 = vmatpush1.bf16.msra.mxu0 %v1959
    %2977 = vmatprep.subr.bf16.mxu0 %v1896
    %2978 = vmatpush1.bf16.msra.mxu0 %v1895
    %2979 = vmatprep.subr.bf16.mxu0 %v1832
    %2980 = vmatpush1.bf16.msra.mxu0 %v1831
    %2981 = vmatprep.subr.bf16.mxu0 0
    %2982 = vmatpush2.bf16.msra.mxu0 0
    %2983 = vmatprep.subr.bf16.mxu0 0
    %2984 = vmatpush2.bf16.msra.mxu0 0
    %2985 = vmatprep.subr.bf16.mxu0 0
    %2986 = vmatpush2.bf16.msra.mxu0 0
    %2987 = vmatprep.subr.bf16.mxu0 0
    %2988 = vmatpush2.bf16.msra.mxu0 0
    %2989 = vmatprep.subr.bf16.mxu0 0
    %2990 = vmatpush2.bf16.msra.mxu0 0
    %2991 = vmatprep.subr.bf16.mxu0 0
    %2992 = vmatpush2.bf16.msra.mxu0 0
    %2993 = vmatprep.subr.bf16.mxu0 0
    %2994 = vmatpush2.bf16.msra.mxu0 0
    %2995 = vmatprep.subr.bf16.mxu0 0
    %2996 = vmatpush2.bf16.msra.mxu0 0
    %2997 = vmatprep.mubr.bf16.mxu0 0
    %2998 = vmatmul.mubr.bf16.gmra.mxu0 %v2717
    %v2999 = vpop.f32.mrf.mxu0
    %v3000 = vadd.f32 0.0, %v2999
    %v3001 = vpop.f32.mrf.mxu0
    %v3002 = vadd.f32 0.0, %v3001
    %v3003 = vpop.f32.mrf.mxu0
    %v3004 = vpop.f32.mrf.mxu0
    %3005 = vdwg.mxu0
    %3006 = vmatprep.subr.bf16.mxu0 0
    %3007 = vmatpush1.bf16.msra.mxu0 0
    %3008 = vmatprep.subr.bf16.mxu0 %v2218
    %3009 = vmatpush1.bf16.msra.mxu0 %v2217
    %3010 = vmatprep.subr.bf16.mxu0 %v2154
    %3011 = vmatpush1.bf16.msra.mxu0 %v2153
    %3012 = vmatprep.subr.bf16.mxu0 %v2090
    %3013 = vmatpush1.bf16.msra.mxu0 %v2089
    %3014 = vmatprep.subr.bf16.mxu0 %v2026
    %3015 = vmatpush1.bf16.msra.mxu0 %v2025
    %3016 = vmatprep.subr.bf16.mxu0 %v1962
    %3017 = vmatpush1.bf16.msra.mxu0 %v1961
    %3018 = vmatprep.subr.bf16.mxu0 %v1898
    %3019 = vmatpush1.bf16.msra.mxu0 %v1897
    %3020 = vmatprep.subr.bf16.mxu0 %v1834
    %3021 = vmatpush1.bf16.msra.mxu0 %v1833
    %3022 = vmatprep.subr.bf16.mxu0 0
    %3023 = vmatpush2.bf16.msra.mxu0 0
    %3024 = vmatprep.subr.bf16.mxu0 0
    %3025 = vmatpush2.bf16.msra.mxu0 0
    %3026 = vmatprep.subr.bf16.mxu0 0
    %3027 = vmatpush2.bf16.msra.mxu0 0
    %3028 = vmatprep.subr.bf16.mxu0 0
    %3029 = vmatpush2.bf16.msra.mxu0 0
    %3030 = vmatprep.subr.bf16.mxu0 0
    %3031 = vmatpush2.bf16.msra.mxu0 0
    %3032 = vmatprep.subr.bf16.mxu0 0
    %3033 = vmatpush2.bf16.msra.mxu0 0
    %3034 = vmatprep.subr.bf16.mxu0 0
    %3035 = vmatpush2.bf16.msra.mxu0 0
    %3036 = vmatprep.subr.bf16.mxu0 0
    %3037 = vmatpush2.bf16.msra.mxu0 0
    %3038 = vmatprep.mubr.bf16.mxu0 0
    %3039 = vmatmul.mubr.bf16.gmra.mxu0 %v2717
    %v3040 = vpop.f32.mrf.mxu0
    %v3041 = vadd.f32 0.0, %v3040
    %v3042 = vpop.f32.mrf.mxu0
    %v3043 = vadd.f32 0.0, %v3042
    %v3044 = vpop.f32.mrf.mxu0
    %v3045 = vpop.f32.mrf.mxu0
    %3046 = vdwg.mxu0
    %3047 = vmatprep.subr.bf16.mxu0 0
    %3048 = vmatpush1.bf16.msra.mxu0 0
    %3049 = vmatprep.subr.bf16.mxu0 %v2220
    %3050 = vmatpush1.bf16.msra.mxu0 %v2219
    %3051 = vmatprep.subr.bf16.mxu0 %v2156
    %3052 = vmatpush1.bf16.msra.mxu0 %v2155
    %3053 = vmatprep.subr.bf16.mxu0 %v2092
    %3054 = vmatpush1.bf16.msra.mxu0 %v2091
    %3055 = vmatprep.subr.bf16.mxu0 %v2028
    %3056 = vmatpush1.bf16.msra.mxu0 %v2027
    %3057 = vmatprep.subr.bf16.mxu0 %v1964
    %3058 = vmatpush1.bf16.msra.mxu0 %v1963
    %3059 = vmatprep.subr.bf16.mxu0 %v1900
    %3060 = vmatpush1.bf16.msra.mxu0 %v1899
    %3061 = vmatprep.subr.bf16.mxu0 %v1836
    %3062 = vmatpush1.bf16.msra.mxu0 %v1835
    %3063 = vmatprep.subr.bf16.mxu0 0
    %3064 = vmatpush2.bf16.msra.mxu0 0
    %3065 = vmatprep.subr.bf16.mxu0 0
    %3066 = vmatpush2.bf16.msra.mxu0 0
    %3067 = vmatprep.subr.bf16.mxu0 0
    %3068 = vmatpush2.bf16.msra.mxu0 0
    %3069 = vmatprep.subr.bf16.mxu0 0
    %3070 = vmatpush2.bf16.msra.mxu0 0
    %3071 = vmatprep.subr.bf16.mxu0 0
    %3072 = vmatpush2.bf16.msra.mxu0 0
    %3073 = vmatprep.subr.bf16.mxu0 0
    %3074 = vmatpush2.bf16.msra.mxu0 0
    %3075 = vmatprep.subr.bf16.mxu0 0
    %3076 = vmatpush2.bf16.msra.mxu0 0
    %3077 = vmatprep.subr.bf16.mxu0 0
    %3078 = vmatpush2.bf16.msra.mxu0 0
    %3079 = vmatprep.mubr.bf16.mxu0 0
    %3080 = vmatmul.mubr.bf16.gmra.mxu0 %v2717
    %v3081 = vpop.f32.mrf.mxu0
    %v3082 = vadd.f32 0.0, %v3081
    %v3083 = vpop.f32.mrf.mxu0
    %v3084 = vadd.f32 0.0, %v3083
    %v3085 = vpop.f32.mrf.mxu0
    %v3086 = vpop.f32.mrf.mxu0
    %3087 = vdwg.mxu0
    %3088 = vmatprep.subr.bf16.mxu0 0
    %3089 = vmatpush1.bf16.msra.mxu0 0
    %3090 = vmatprep.subr.bf16.mxu0 %v2222
    %3091 = vmatpush1.bf16.msra.mxu0 %v2221
    %3092 = vmatprep.subr.bf16.mxu0 %v2158
    %3093 = vmatpush1.bf16.msra.mxu0 %v2157
    %3094 = vmatprep.subr.bf16.mxu0 %v2094
    %3095 = vmatpush1.bf16.msra.mxu0 %v2093
    %3096 = vmatprep.subr.bf16.mxu0 %v2030
    %3097 = vmatpush1.bf16.msra.mxu0 %v2029
    %3098 = vmatprep.subr.bf16.mxu0 %v1966
    %3099 = vmatpush1.bf16.msra.mxu0 %v1965
    %3100 = vmatprep.subr.bf16.mxu0 %v1902
    %3101 = vmatpush1.bf16.msra.mxu0 %v1901
    %3102 = vmatprep.subr.bf16.mxu0 %v1838
    %3103 = vmatpush1.bf16.msra.mxu0 %v1837
    %3104 = vmatprep.subr.bf16.mxu0 0
    %3105 = vmatpush2.bf16.msra.mxu0 0
    %3106 = vmatprep.subr.bf16.mxu0 0
    %3107 = vmatpush2.bf16.msra.mxu0 0
    %3108 = vmatprep.subr.bf16.mxu0 0
    %3109 = vmatpush2.bf16.msra.mxu0 0
    %3110 = vmatprep.subr.bf16.mxu0 0
    %3111 = vmatpush2.bf16.msra.mxu0 0
    %3112 = vmatprep.subr.bf16.mxu0 0
    %3113 = vmatpush2.bf16.msra.mxu0 0
    %3114 = vmatprep.subr.bf16.mxu0 0
    %3115 = vmatpush2.bf16.msra.mxu0 0
    %3116 = vmatprep.subr.bf16.mxu0 0
    %3117 = vmatpush2.bf16.msra.mxu0 0
    %3118 = vmatprep.subr.bf16.mxu0 0
    %3119 = vmatpush2.bf16.msra.mxu0 0
    %3120 = vmatprep.mubr.bf16.mxu0 0
    %3121 = vmatmul.mubr.bf16.gmra.mxu0 %v2717
    %v3122 = vpop.f32.mrf.mxu0
    %v3123 = vadd.f32 0.0, %v3122
    %v3124 = vpop.f32.mrf.mxu0
    %v3125 = vadd.f32 0.0, %v3124
    %v3126 = vpop.f32.mrf.mxu0
    %v3127 = vpop.f32.mrf.mxu0
    %3128 = vdwg.mxu0
    %3129 = vmatprep.subr.bf16.mxu0 0
    %3130 = vmatpush1.bf16.msra.mxu0 0
    %3131 = vmatprep.subr.bf16.mxu0 %v2224
    %3132 = vmatpush1.bf16.msra.mxu0 %v2223
    %3133 = vmatprep.subr.bf16.mxu0 %v2160
    %3134 = vmatpush1.bf16.msra.mxu0 %v2159
    %3135 = vmatprep.subr.bf16.mxu0 %v2096
    %3136 = vmatpush1.bf16.msra.mxu0 %v2095
    %3137 = vmatprep.subr.bf16.mxu0 %v2032
    %3138 = vmatpush1.bf16.msra.mxu0 %v2031
    %3139 = vmatprep.subr.bf16.mxu0 %v1968
    %3140 = vmatpush1.bf16.msra.mxu0 %v1967
    %3141 = vmatprep.subr.bf16.mxu0 %v1904
    %3142 = vmatpush1.bf16.msra.mxu0 %v1903
    %3143 = vmatprep.subr.bf16.mxu0 %v1840
    %3144 = vmatpush1.bf16.msra.mxu0 %v1839
    %3145 = vmatprep.subr.bf16.mxu0 0
    %3146 = vmatpush2.bf16.msra.mxu0 0
    %3147 = vmatprep.subr.bf16.mxu0 0
    %3148 = vmatpush2.bf16.msra.mxu0 0
    %3149 = vmatprep.subr.bf16.mxu0 0
    %3150 = vmatpush2.bf16.msra.mxu0 0
    %3151 = vmatprep.subr.bf16.mxu0 0
    %3152 = vmatpush2.bf16.msra.mxu0 0
    %3153 = vmatprep.subr.bf16.mxu0 0
    %3154 = vmatpush2.bf16.msra.mxu0 0
    %3155 = vmatprep.subr.bf16.mxu0 0
    %3156 = vmatpush2.bf16.msra.mxu0 0
    %3157 = vmatprep.subr.bf16.mxu0 0
    %3158 = vmatpush2.bf16.msra.mxu0 0
    %3159 = vmatprep.subr.bf16.mxu0 0
    %3160 = vmatpush2.bf16.msra.mxu0 0
    %3161 = vmatprep.mubr.bf16.mxu0 0
    %3162 = vmatmul.mubr.bf16.gmra.mxu0 %v2717
    %v3163 = vpop.f32.mrf.mxu0
    %v3164 = vadd.f32 0.0, %v3163
    %v3165 = vpop.f32.mrf.mxu0
    %v3166 = vadd.f32 0.0, %v3165
    %v3167 = vpop.f32.mrf.mxu0
    %v3168 = vpop.f32.mrf.mxu0
    %3169 = vdwg.mxu0
    %3170 = vmatprep.subr.bf16.mxu0 0
    %3171 = vmatpush1.bf16.msra.mxu0 0
    %3172 = vmatprep.subr.bf16.mxu0 %v2226
    %3173 = vmatpush1.bf16.msra.mxu0 %v2225
    %3174 = vmatprep.subr.bf16.mxu0 %v2162
    %3175 = vmatpush1.bf16.msra.mxu0 %v2161
    %3176 = vmatprep.subr.bf16.mxu0 %v2098
    %3177 = vmatpush1.bf16.msra.mxu0 %v2097
    %3178 = vmatprep.subr.bf16.mxu0 %v2034
    %3179 = vmatpush1.bf16.msra.mxu0 %v2033
    %3180 = vmatprep.subr.bf16.mxu0 %v1970
    %3181 = vmatpush1.bf16.msra.mxu0 %v1969
    %3182 = vmatprep.subr.bf16.mxu0 %v1906
    %3183 = vmatpush1.bf16.msra.mxu0 %v1905
    %3184 = vmatprep.subr.bf16.mxu0 %v1842
    %3185 = vmatpush1.bf16.msra.mxu0 %v1841
    %3186 = vmatprep.subr.bf16.mxu0 0
    %3187 = vmatpush2.bf16.msra.mxu0 0
    %3188 = vmatprep.subr.bf16.mxu0 0
    %3189 = vmatpush2.bf16.msra.mxu0 0
    %3190 = vmatprep.subr.bf16.mxu0 0
    %3191 = vmatpush2.bf16.msra.mxu0 0
    %3192 = vmatprep.subr.bf16.mxu0 0
    %3193 = vmatpush2.bf16.msra.mxu0 0
    %3194 = vmatprep.subr.bf16.mxu0 0
    %3195 = vmatpush2.bf16.msra.mxu0 0
    %3196 = vmatprep.subr.bf16.mxu0 0
    %3197 = vmatpush2.bf16.msra.mxu0 0
    %3198 = vmatprep.subr.bf16.mxu0 0
    %3199 = vmatpush2.bf16.msra.mxu0 0
    %3200 = vmatprep.subr.bf16.mxu0 0
    %3201 = vmatpush2.bf16.msra.mxu0 0
    %3202 = vmatprep.mubr.bf16.mxu0 0
    %3203 = vmatmul.mubr.bf16.gmra.mxu0 %v2717
    %v3204 = vpop.f32.mrf.mxu0
    %v3205 = vadd.f32 0.0, %v3204
    %v3206 = vpop.f32.mrf.mxu0
    %v3207 = vadd.f32 0.0, %v3206
    %v3208 = vpop.f32.mrf.mxu0
    %v3209 = vpop.f32.mrf.mxu0
    %3210 = vdwg.mxu0
    %3211 = vmatprep.subr.bf16.mxu0 0
    %3212 = vmatpush1.bf16.msra.mxu0 0
    %3213 = vmatprep.subr.bf16.mxu0 %v2228
    %3214 = vmatpush1.bf16.msra.mxu0 %v2227
    %3215 = vmatprep.subr.bf16.mxu0 %v2164
    %3216 = vmatpush1.bf16.msra.mxu0 %v2163
    %3217 = vmatprep.subr.bf16.mxu0 %v2100
    %3218 = vmatpush1.bf16.msra.mxu0 %v2099
    %3219 = vmatprep.subr.bf16.mxu0 %v2036
    %3220 = vmatpush1.bf16.msra.mxu0 %v2035
    %3221 = vmatprep.subr.bf16.mxu0 %v1972
    %3222 = vmatpush1.bf16.msra.mxu0 %v1971
    %3223 = vmatprep.subr.bf16.mxu0 %v1908
    %3224 = vmatpush1.bf16.msra.mxu0 %v1907
    %3225 = vmatprep.subr.bf16.mxu0 %v1844
    %3226 = vmatpush1.bf16.msra.mxu0 %v1843
    %3227 = vmatprep.subr.bf16.mxu0 0
    %3228 = vmatpush2.bf16.msra.mxu0 0
    %3229 = vmatprep.subr.bf16.mxu0 0
    %3230 = vmatpush2.bf16.msra.mxu0 0
    %3231 = vmatprep.subr.bf16.mxu0 0
    %3232 = vmatpush2.bf16.msra.mxu0 0
    %3233 = vmatprep.subr.bf16.mxu0 0
    %3234 = vmatpush2.bf16.msra.mxu0 0
    %3235 = vmatprep.subr.bf16.mxu0 0
    %3236 = vmatpush2.bf16.msra.mxu0 0
    %3237 = vmatprep.subr.bf16.mxu0 0
    %3238 = vmatpush2.bf16.msra.mxu0 0
    %3239 = vmatprep.subr.bf16.mxu0 0
    %3240 = vmatpush2.bf16.msra.mxu0 0
    %3241 = vmatprep.subr.bf16.mxu0 0
    %3242 = vmatpush2.bf16.msra.mxu0 0
    %3243 = vmatprep.mubr.bf16.mxu0 0
    %3244 = vmatmul.mubr.bf16.gmra.mxu0 %v2717
    %v3245 = vpop.f32.mrf.mxu0
    %v3246 = vadd.f32 0.0, %v3245
    %v3247 = vpop.f32.mrf.mxu0
    %v3248 = vadd.f32 0.0, %v3247
    %v3249 = vpop.f32.mrf.mxu0
    %v3250 = vpop.f32.mrf.mxu0
    %3251 = vdwg.mxu0
    %3252 = vmatprep.subr.bf16.mxu0 0
    %3253 = vmatpush1.bf16.msra.mxu0 0
    %3254 = vmatprep.subr.bf16.mxu0 %v2230
    %3255 = vmatpush1.bf16.msra.mxu0 %v2229
    %3256 = vmatprep.subr.bf16.mxu0 %v2166
    %3257 = vmatpush1.bf16.msra.mxu0 %v2165
    %3258 = vmatprep.subr.bf16.mxu0 %v2102
    %3259 = vmatpush1.bf16.msra.mxu0 %v2101
    %3260 = vmatprep.subr.bf16.mxu0 %v2038
    %3261 = vmatpush1.bf16.msra.mxu0 %v2037
    %3262 = vmatprep.subr.bf16.mxu0 %v1974
    %3263 = vmatpush1.bf16.msra.mxu0 %v1973
    %3264 = vmatprep.subr.bf16.mxu0 %v1910
    %3265 = vmatpush1.bf16.msra.mxu0 %v1909
    %3266 = vmatprep.subr.bf16.mxu0 %v1846
    %3267 = vmatpush1.bf16.msra.mxu0 %v1845
    %3268 = vmatprep.subr.bf16.mxu0 0
    %3269 = vmatpush2.bf16.msra.mxu0 0
    %3270 = vmatprep.subr.bf16.mxu0 0
    %3271 = vmatpush2.bf16.msra.mxu0 0
    %3272 = vmatprep.subr.bf16.mxu0 0
    %3273 = vmatpush2.bf16.msra.mxu0 0
    %3274 = vmatprep.subr.bf16.mxu0 0
    %3275 = vmatpush2.bf16.msra.mxu0 0
    %3276 = vmatprep.subr.bf16.mxu0 0
    %3277 = vmatpush2.bf16.msra.mxu0 0
    %3278 = vmatprep.subr.bf16.mxu0 0
    %3279 = vmatpush2.bf16.msra.mxu0 0
    %3280 = vmatprep.subr.bf16.mxu0 0
    %3281 = vmatpush2.bf16.msra.mxu0 0
    %3282 = vmatprep.subr.bf16.mxu0 0
    %3283 = vmatpush2.bf16.msra.mxu0 0
    %3284 = vmatprep.mubr.bf16.mxu0 0
    %3285 = vmatmul.mubr.bf16.gmra.mxu0 %v2717
    %v3286 = vpop.f32.mrf.mxu0
    %v3287 = vadd.f32 0.0, %v3286
    %v3288 = vpop.f32.mrf.mxu0
    %v3289 = vadd.f32 0.0, %v3288
    %v3290 = vpop.f32.mrf.mxu0
    %v3291 = vpop.f32.mrf.mxu0
    %3292 = vdwg.mxu0
    %3293 = vmatprep.subr.bf16.mxu0 0
    %3294 = vmatpush1.bf16.msra.mxu0 0
    %3295 = vmatprep.subr.bf16.mxu0 %v2232
    %3296 = vmatpush1.bf16.msra.mxu0 %v2231
    %3297 = vmatprep.subr.bf16.mxu0 %v2168
    %3298 = vmatpush1.bf16.msra.mxu0 %v2167
    %3299 = vmatprep.subr.bf16.mxu0 %v2104
    %3300 = vmatpush1.bf16.msra.mxu0 %v2103
    %3301 = vmatprep.subr.bf16.mxu0 %v2040
    %3302 = vmatpush1.bf16.msra.mxu0 %v2039
    %3303 = vmatprep.subr.bf16.mxu0 %v1976
    %3304 = vmatpush1.bf16.msra.mxu0 %v1975
    %3305 = vmatprep.subr.bf16.mxu0 %v1912
    %3306 = vmatpush1.bf16.msra.mxu0 %v1911
    %3307 = vmatprep.subr.bf16.mxu0 %v1848
    %3308 = vmatpush1.bf16.msra.mxu0 %v1847
    %3309 = vmatprep.subr.bf16.mxu0 0
    %3310 = vmatpush2.bf16.msra.mxu0 0
    %3311 = vmatprep.subr.bf16.mxu0 0
    %3312 = vmatpush2.bf16.msra.mxu0 0
    %3313 = vmatprep.subr.bf16.mxu0 0
    %3314 = vmatpush2.bf16.msra.mxu0 0
    %3315 = vmatprep.subr.bf16.mxu0 0
    %3316 = vmatpush2.bf16.msra.mxu0 0
    %3317 = vmatprep.subr.bf16.mxu0 0
    %3318 = vmatpush2.bf16.msra.mxu0 0
    %3319 = vmatprep.subr.bf16.mxu0 0
    %3320 = vmatpush2.bf16.msra.mxu0 0
    %3321 = vmatprep.subr.bf16.mxu0 0
    %3322 = vmatpush2.bf16.msra.mxu0 0
    %3323 = vmatprep.subr.bf16.mxu0 0
    %3324 = vmatpush2.bf16.msra.mxu0 0
    %3325 = vmatprep.mubr.bf16.mxu0 0
    %3326 = vmatmul.mubr.bf16.gmra.mxu0 %v2717
    %v3327 = vpop.f32.mrf.mxu0
    %v3328 = vadd.f32 0.0, %v3327
    %v3329 = vpop.f32.mrf.mxu0
    %v3330 = vadd.f32 0.0, %v3329
    %v3331 = vpop.f32.mrf.mxu0
    %v3332 = vpop.f32.mrf.mxu0
    %3333 = vdwg.mxu0
    %3334 = vmatprep.subr.bf16.mxu0 0
    %3335 = vmatpush1.bf16.msra.mxu0 0
    %3336 = vmatprep.subr.bf16.mxu0 %v2234
    %3337 = vmatpush1.bf16.msra.mxu0 %v2233
    %3338 = vmatprep.subr.bf16.mxu0 %v2170
    %3339 = vmatpush1.bf16.msra.mxu0 %v2169
    %3340 = vmatprep.subr.bf16.mxu0 %v2106
    %3341 = vmatpush1.bf16.msra.mxu0 %v2105
    %3342 = vmatprep.subr.bf16.mxu0 %v2042
    %3343 = vmatpush1.bf16.msra.mxu0 %v2041
    %3344 = vmatprep.subr.bf16.mxu0 %v1978
    %3345 = vmatpush1.bf16.msra.mxu0 %v1977
    %3346 = vmatprep.subr.bf16.mxu0 %v1914
    %3347 = vmatpush1.bf16.msra.mxu0 %v1913
    %3348 = vmatprep.subr.bf16.mxu0 %v1850
    %3349 = vmatpush1.bf16.msra.mxu0 %v1849
    %3350 = vmatprep.subr.bf16.mxu0 0
    %3351 = vmatpush2.bf16.msra.mxu0 0
    %3352 = vmatprep.subr.bf16.mxu0 0
    %3353 = vmatpush2.bf16.msra.mxu0 0
    %3354 = vmatprep.subr.bf16.mxu0 0
    %3355 = vmatpush2.bf16.msra.mxu0 0
    %3356 = vmatprep.subr.bf16.mxu0 0
    %3357 = vmatpush2.bf16.msra.mxu0 0
    %3358 = vmatprep.subr.bf16.mxu0 0
    %3359 = vmatpush2.bf16.msra.mxu0 0
    %3360 = vmatprep.subr.bf16.mxu0 0
    %3361 = vmatpush2.bf16.msra.mxu0 0
    %3362 = vmatprep.subr.bf16.mxu0 0
    %3363 = vmatpush2.bf16.msra.mxu0 0
    %3364 = vmatprep.subr.bf16.mxu0 0
    %3365 = vmatpush2.bf16.msra.mxu0 0
    %3366 = vmatprep.mubr.bf16.mxu0 0
    %3367 = vmatmul.mubr.bf16.gmra.mxu0 %v2717
    %v3368 = vpop.f32.mrf.mxu0
    %v3369 = vadd.f32 0.0, %v3368
    %v3370 = vpop.f32.mrf.mxu0
    %v3371 = vadd.f32 0.0, %v3370
    %v3372 = vpop.f32.mrf.mxu0
    %v3373 = vpop.f32.mrf.mxu0
    %3374 = vdwg.mxu0
    %3375 = vmatprep.subr.bf16.mxu0 0
    %3376 = vmatpush1.bf16.msra.mxu0 0
    %3377 = vmatprep.subr.bf16.mxu0 %v2236
    %3378 = vmatpush1.bf16.msra.mxu0 %v2235
    %3379 = vmatprep.subr.bf16.mxu0 %v2172
    %3380 = vmatpush1.bf16.msra.mxu0 %v2171
    %3381 = vmatprep.subr.bf16.mxu0 %v2108
    %3382 = vmatpush1.bf16.msra.mxu0 %v2107
    %3383 = vmatprep.subr.bf16.mxu0 %v2044
    %3384 = vmatpush1.bf16.msra.mxu0 %v2043
    %3385 = vmatprep.subr.bf16.mxu0 %v1980
    %3386 = vmatpush1.bf16.msra.mxu0 %v1979
    %3387 = vmatprep.subr.bf16.mxu0 %v1916
    %3388 = vmatpush1.bf16.msra.mxu0 %v1915
    %3389 = vmatprep.subr.bf16.mxu0 %v1852
    %3390 = vmatpush1.bf16.msra.mxu0 %v1851
    %3391 = vmatprep.subr.bf16.mxu0 0
    %3392 = vmatpush2.bf16.msra.mxu0 0
    %3393 = vmatprep.subr.bf16.mxu0 0
    %3394 = vmatpush2.bf16.msra.mxu0 0
    %3395 = vmatprep.subr.bf16.mxu0 0
    %3396 = vmatpush2.bf16.msra.mxu0 0
    %3397 = vmatprep.subr.bf16.mxu0 0
    %3398 = vmatpush2.bf16.msra.mxu0 0
    %3399 = vmatprep.subr.bf16.mxu0 0
    %3400 = vmatpush2.bf16.msra.mxu0 0
    %3401 = vmatprep.subr.bf16.mxu0 0
    %3402 = vmatpush2.bf16.msra.mxu0 0
    %3403 = vmatprep.subr.bf16.mxu0 0
    %3404 = vmatpush2.bf16.msra.mxu0 0
    %3405 = vmatprep.subr.bf16.mxu0 0
    %3406 = vmatpush2.bf16.msra.mxu0 0
    %3407 = vmatprep.mubr.bf16.mxu0 0
    %3408 = vmatmul.mubr.bf16.gmra.mxu0 %v2717
    %v3409 = vpop.f32.mrf.mxu0
    %v3410 = vadd.f32 0.0, %v3409
    %v3411 = vpop.f32.mrf.mxu0
    %v3412 = vadd.f32 0.0, %v3411
    %v3413 = vpop.f32.mrf.mxu0
    %v3414 = vpop.f32.mrf.mxu0
    %3415 = vdwg.mxu0
    %3416 = vmatprep.subr.bf16.mxu0 0
    %3417 = vmatpush1.bf16.msra.mxu0 0
    %3418 = vmatprep.subr.bf16.mxu0 %v2238
    %3419 = vmatpush1.bf16.msra.mxu0 %v2237
    %3420 = vmatprep.subr.bf16.mxu0 %v2174
    %3421 = vmatpush1.bf16.msra.mxu0 %v2173
    %3422 = vmatprep.subr.bf16.mxu0 %v2110
    %3423 = vmatpush1.bf16.msra.mxu0 %v2109
    %3424 = vmatprep.subr.bf16.mxu0 %v2046
    %3425 = vmatpush1.bf16.msra.mxu0 %v2045
    %3426 = vmatprep.subr.bf16.mxu0 %v1982
    %3427 = vmatpush1.bf16.msra.mxu0 %v1981
    %3428 = vmatprep.subr.bf16.mxu0 %v1918
    %3429 = vmatpush1.bf16.msra.mxu0 %v1917
    %3430 = vmatprep.subr.bf16.mxu0 %v1854
    %3431 = vmatpush1.bf16.msra.mxu0 %v1853
    %3432 = vmatprep.subr.bf16.mxu0 0
    %3433 = vmatpush2.bf16.msra.mxu0 0
    %3434 = vmatprep.subr.bf16.mxu0 0
    %3435 = vmatpush2.bf16.msra.mxu0 0
    %3436 = vmatprep.subr.bf16.mxu0 0
    %3437 = vmatpush2.bf16.msra.mxu0 0
    %3438 = vmatprep.subr.bf16.mxu0 0
    %3439 = vmatpush2.bf16.msra.mxu0 0
    %3440 = vmatprep.subr.bf16.mxu0 0
    %3441 = vmatpush2.bf16.msra.mxu0 0
    %3442 = vmatprep.subr.bf16.mxu0 0
    %3443 = vmatpush2.bf16.msra.mxu0 0
    %3444 = vmatprep.subr.bf16.mxu0 0
    %3445 = vmatpush2.bf16.msra.mxu0 0
    %3446 = vmatprep.subr.bf16.mxu0 0
    %3447 = vmatpush2.bf16.msra.mxu0 0
    %3448 = vmatprep.mubr.bf16.mxu0 0
    %3449 = vmatmul.mubr.bf16.gmra.mxu0 %v2717
    %v3450 = vpop.f32.mrf.mxu0
    %v3451 = vadd.f32 0.0, %v3450
    %v3452 = vpop.f32.mrf.mxu0
    %v3453 = vadd.f32 0.0, %v3452
    %v3454 = vpop.f32.mrf.mxu0
    %v3455 = vpop.f32.mrf.mxu0
    %3456 = vdwg.mxu0
    %3457 = vmatprep.subr.bf16.mxu0 0
    %3458 = vmatpush1.bf16.msra.mxu0 0
    %3459 = vmatprep.subr.bf16.mxu0 %v2240
    %3460 = vmatpush1.bf16.msra.mxu0 %v2239
    %3461 = vmatprep.subr.bf16.mxu0 %v2176
    %3462 = vmatpush1.bf16.msra.mxu0 %v2175
    %3463 = vmatprep.subr.bf16.mxu0 %v2112
    %3464 = vmatpush1.bf16.msra.mxu0 %v2111
    %3465 = vmatprep.subr.bf16.mxu0 %v2048
    %3466 = vmatpush1.bf16.msra.mxu0 %v2047
    %3467 = vmatprep.subr.bf16.mxu0 %v1984
    %3468 = vmatpush1.bf16.msra.mxu0 %v1983
    %3469 = vmatprep.subr.bf16.mxu0 %v1920
    %3470 = vmatpush1.bf16.msra.mxu0 %v1919
    %3471 = vmatprep.subr.bf16.mxu0 %v1856
    %3472 = vmatpush1.bf16.msra.mxu0 %v1855
    %3473 = vmatprep.subr.bf16.mxu0 0
    %3474 = vmatpush2.bf16.msra.mxu0 0
    %3475 = vmatprep.subr.bf16.mxu0 0
    %3476 = vmatpush2.bf16.msra.mxu0 0
    %3477 = vmatprep.subr.bf16.mxu0 0
    %3478 = vmatpush2.bf16.msra.mxu0 0
    %3479 = vmatprep.subr.bf16.mxu0 0
    %3480 = vmatpush2.bf16.msra.mxu0 0
    %3481 = vmatprep.subr.bf16.mxu0 0
    %3482 = vmatpush2.bf16.msra.mxu0 0
    %3483 = vmatprep.subr.bf16.mxu0 0
    %3484 = vmatpush2.bf16.msra.mxu0 0
    %3485 = vmatprep.subr.bf16.mxu0 0
    %3486 = vmatpush2.bf16.msra.mxu0 0
    %3487 = vmatprep.subr.bf16.mxu0 0
    %3488 = vmatpush2.bf16.msra.mxu0 0
    %3489 = vmatprep.mubr.bf16.mxu0 0
    %3490 = vmatmul.mubr.bf16.gmra.mxu0 %v2717
    %v3491 = vpop.f32.mrf.mxu0
    %v3492 = vadd.f32 0.0, %v3491
    %v3493 = vpop.f32.mrf.mxu0
    %v3494 = vadd.f32 0.0, %v3493
    %v3495 = vpop.f32.mrf.mxu0
    %v3496 = vpop.f32.mrf.mxu0
    %3497 = vdwg.mxu0
    %3498 = vmatprep.subr.bf16.mxu0 0
    %3499 = vmatpush1.bf16.msra.mxu0 0
    %3500 = vmatprep.subr.bf16.mxu0 %v2242
    %3501 = vmatpush1.bf16.msra.mxu0 %v2241
    %3502 = vmatprep.subr.bf16.mxu0 %v2178
    %3503 = vmatpush1.bf16.msra.mxu0 %v2177
    %3504 = vmatprep.subr.bf16.mxu0 %v2114
    %3505 = vmatpush1.bf16.msra.mxu0 %v2113
    %3506 = vmatprep.subr.bf16.mxu0 %v2050
    %3507 = vmatpush1.bf16.msra.mxu0 %v2049
    %3508 = vmatprep.subr.bf16.mxu0 %v1986
    %3509 = vmatpush1.bf16.msra.mxu0 %v1985
    %3510 = vmatprep.subr.bf16.mxu0 %v1922
    %3511 = vmatpush1.bf16.msra.mxu0 %v1921
    %3512 = vmatprep.subr.bf16.mxu0 %v1858
    %3513 = vmatpush1.bf16.msra.mxu0 %v1857
    %3514 = vmatprep.subr.bf16.mxu0 0
    %3515 = vmatpush2.bf16.msra.mxu0 0
    %3516 = vmatprep.subr.bf16.mxu0 0
    %3517 = vmatpush2.bf16.msra.mxu0 0
    %3518 = vmatprep.subr.bf16.mxu0 0
    %3519 = vmatpush2.bf16.msra.mxu0 0
    %3520 = vmatprep.subr.bf16.mxu0 0
    %3521 = vmatpush2.bf16.msra.mxu0 0
    %3522 = vmatprep.subr.bf16.mxu0 0
    %3523 = vmatpush2.bf16.msra.mxu0 0
    %3524 = vmatprep.subr.bf16.mxu0 0
    %3525 = vmatpush2.bf16.msra.mxu0 0
    %3526 = vmatprep.subr.bf16.mxu0 0
    %3527 = vmatpush2.bf16.msra.mxu0 0
    %3528 = vmatprep.subr.bf16.mxu0 0
    %3529 = vmatpush2.bf16.msra.mxu0 0
    %3530 = vmatprep.mubr.bf16.mxu0 0
    %3531 = vmatmul.mubr.bf16.gmra.mxu0 %v2717
    %v3532 = vpop.f32.mrf.mxu0
    %v3533 = vadd.f32 0.0, %v3532
    %v3534 = vpop.f32.mrf.mxu0
    %v3535 = vadd.f32 0.0, %v3534
    %v3536 = vpop.f32.mrf.mxu0
    %v3537 = vpop.f32.mrf.mxu0
    %3538 = vdwg.mxu0
    %3539 = vmatprep.subr.bf16.mxu0 0
    %3540 = vmatpush1.bf16.msra.mxu0 0
    %3541 = vmatprep.subr.bf16.mxu0 %v2244
    %3542 = vmatpush1.bf16.msra.mxu0 %v2243
    %3543 = vmatprep.subr.bf16.mxu0 %v2180
    %3544 = vmatpush1.bf16.msra.mxu0 %v2179
    %3545 = vmatprep.subr.bf16.mxu0 %v2116
    %3546 = vmatpush1.bf16.msra.mxu0 %v2115
    %3547 = vmatprep.subr.bf16.mxu0 %v2052
    %3548 = vmatpush1.bf16.msra.mxu0 %v2051
    %3549 = vmatprep.subr.bf16.mxu0 %v1988
    %3550 = vmatpush1.bf16.msra.mxu0 %v1987
    %3551 = vmatprep.subr.bf16.mxu0 %v1924
    %3552 = vmatpush1.bf16.msra.mxu0 %v1923
    %3553 = vmatprep.subr.bf16.mxu0 %v1860
    %3554 = vmatpush1.bf16.msra.mxu0 %v1859
    %3555 = vmatprep.subr.bf16.mxu0 0
    %3556 = vmatpush2.bf16.msra.mxu0 0
    %3557 = vmatprep.subr.bf16.mxu0 0
    %3558 = vmatpush2.bf16.msra.mxu0 0
    %3559 = vmatprep.subr.bf16.mxu0 0
    %3560 = vmatpush2.bf16.msra.mxu0 0
    %3561 = vmatprep.subr.bf16.mxu0 0
    %3562 = vmatpush2.bf16.msra.mxu0 0
    %3563 = vmatprep.subr.bf16.mxu0 0
    %3564 = vmatpush2.bf16.msra.mxu0 0
    %3565 = vmatprep.subr.bf16.mxu0 0
    %3566 = vmatpush2.bf16.msra.mxu0 0
    %3567 = vmatprep.subr.bf16.mxu0 0
    %3568 = vmatpush2.bf16.msra.mxu0 0
    %3569 = vmatprep.subr.bf16.mxu0 0
    %3570 = vmatpush2.bf16.msra.mxu0 0
    %3571 = vmatprep.mubr.bf16.mxu0 0
    %3572 = vmatmul.mubr.bf16.gmra.mxu0 %v2717
    %v3573 = vpop.f32.mrf.mxu0
    %v3574 = vadd.f32 0.0, %v3573
    %v3575 = vpop.f32.mrf.mxu0
    %v3576 = vadd.f32 0.0, %v3575
    %v3577 = vpop.f32.mrf.mxu0
    %v3578 = vpop.f32.mrf.mxu0
    %3579 = vdwg.mxu0
    %3580 = vmatprep.subr.bf16.mxu0 0
    %3581 = vmatpush1.bf16.msra.mxu0 0
    %3582 = vmatprep.subr.bf16.mxu0 %v2246
    %3583 = vmatpush1.bf16.msra.mxu0 %v2245
    %3584 = vmatprep.subr.bf16.mxu0 %v2182
    %3585 = vmatpush1.bf16.msra.mxu0 %v2181
    %3586 = vmatprep.subr.bf16.mxu0 %v2118
    %3587 = vmatpush1.bf16.msra.mxu0 %v2117
    %3588 = vmatprep.subr.bf16.mxu0 %v2054
    %3589 = vmatpush1.bf16.msra.mxu0 %v2053
    %3590 = vmatprep.subr.bf16.mxu0 %v1990
    %3591 = vmatpush1.bf16.msra.mxu0 %v1989
    %3592 = vmatprep.subr.bf16.mxu0 %v1926
    %3593 = vmatpush1.bf16.msra.mxu0 %v1925
    %3594 = vmatprep.subr.bf16.mxu0 %v1862
    %3595 = vmatpush1.bf16.msra.mxu0 %v1861
    %3596 = vmatprep.subr.bf16.mxu0 0
    %3597 = vmatpush2.bf16.msra.mxu0 0
    %3598 = vmatprep.subr.bf16.mxu0 0
    %3599 = vmatpush2.bf16.msra.mxu0 0
    %3600 = vmatprep.subr.bf16.mxu0 0
    %3601 = vmatpush2.bf16.msra.mxu0 0
    %3602 = vmatprep.subr.bf16.mxu0 0
    %3603 = vmatpush2.bf16.msra.mxu0 0
    %3604 = vmatprep.subr.bf16.mxu0 0
    %3605 = vmatpush2.bf16.msra.mxu0 0
    %3606 = vmatprep.subr.bf16.mxu0 0
    %3607 = vmatpush2.bf16.msra.mxu0 0
    %3608 = vmatprep.subr.bf16.mxu0 0
    %3609 = vmatpush2.bf16.msra.mxu0 0
    %3610 = vmatprep.subr.bf16.mxu0 0
    %3611 = vmatpush2.bf16.msra.mxu0 0
    %3612 = vmatprep.mubr.bf16.mxu0 0
    %3613 = vmatmul.mubr.bf16.gmra.mxu0 %v2717
    %v3614 = vpop.f32.mrf.mxu0
    %v3615 = vadd.f32 0.0, %v3614
    %v3616 = vpop.f32.mrf.mxu0
    %v3617 = vadd.f32 0.0, %v3616
    %v3618 = vpop.f32.mrf.mxu0
    %v3619 = vpop.f32.mrf.mxu0
    %3620 = vdwg.mxu0
    %3621 = vmatprep.subr.bf16.mxu0 0
    %3622 = vmatpush1.bf16.msra.mxu0 0
    %3623 = vmatprep.subr.bf16.mxu0 %v2248
    %3624 = vmatpush1.bf16.msra.mxu0 %v2247
    %3625 = vmatprep.subr.bf16.mxu0 %v2184
    %3626 = vmatpush1.bf16.msra.mxu0 %v2183
    %3627 = vmatprep.subr.bf16.mxu0 %v2120
    %3628 = vmatpush1.bf16.msra.mxu0 %v2119
    %3629 = vmatprep.subr.bf16.mxu0 %v2056
    %3630 = vmatpush1.bf16.msra.mxu0 %v2055
    %3631 = vmatprep.subr.bf16.mxu0 %v1992
    %3632 = vmatpush1.bf16.msra.mxu0 %v1991
    %3633 = vmatprep.subr.bf16.mxu0 %v1928
    %3634 = vmatpush1.bf16.msra.mxu0 %v1927
    %3635 = vmatprep.subr.bf16.mxu0 %v1864
    %3636 = vmatpush1.bf16.msra.mxu0 %v1863
    %3637 = vmatprep.subr.bf16.mxu0 0
    %3638 = vmatpush2.bf16.msra.mxu0 0
    %3639 = vmatprep.subr.bf16.mxu0 0
    %3640 = vmatpush2.bf16.msra.mxu0 0
    %3641 = vmatprep.subr.bf16.mxu0 0
    %3642 = vmatpush2.bf16.msra.mxu0 0
    %3643 = vmatprep.subr.bf16.mxu0 0
    %3644 = vmatpush2.bf16.msra.mxu0 0
    %3645 = vmatprep.subr.bf16.mxu0 0
    %3646 = vmatpush2.bf16.msra.mxu0 0
    %3647 = vmatprep.subr.bf16.mxu0 0
    %3648 = vmatpush2.bf16.msra.mxu0 0
    %3649 = vmatprep.subr.bf16.mxu0 0
    %3650 = vmatpush2.bf16.msra.mxu0 0
    %3651 = vmatprep.subr.bf16.mxu0 0
    %3652 = vmatpush2.bf16.msra.mxu0 0
    %3653 = vmatprep.mubr.bf16.mxu0 0
    %3654 = vmatmul.mubr.bf16.gmra.mxu0 %v2717
    %v3655 = vpop.f32.mrf.mxu0
    %v3656 = vadd.f32 0.0, %v3655
    %v3657 = vpop.f32.mrf.mxu0
    %v3658 = vadd.f32 0.0, %v3657
    %v3659 = vpop.f32.mrf.mxu0
    %v3660 = vpop.f32.mrf.mxu0
    %3661 = vdwg.mxu0
    %3662 = vmatprep.subr.bf16.mxu0 0
    %3663 = vmatpush1.bf16.msra.mxu0 0
    %3664 = vmatprep.subr.bf16.mxu0 %v2250
    %3665 = vmatpush1.bf16.msra.mxu0 %v2249
    %3666 = vmatprep.subr.bf16.mxu0 %v2186
    %3667 = vmatpush1.bf16.msra.mxu0 %v2185
    %3668 = vmatprep.subr.bf16.mxu0 %v2122
    %3669 = vmatpush1.bf16.msra.mxu0 %v2121
    %3670 = vmatprep.subr.bf16.mxu0 %v2058
    %3671 = vmatpush1.bf16.msra.mxu0 %v2057
    %3672 = vmatprep.subr.bf16.mxu0 %v1994
    %3673 = vmatpush1.bf16.msra.mxu0 %v1993
    %3674 = vmatprep.subr.bf16.mxu0 %v1930
    %3675 = vmatpush1.bf16.msra.mxu0 %v1929
    %3676 = vmatprep.subr.bf16.mxu0 %v1866
    %3677 = vmatpush1.bf16.msra.mxu0 %v1865
    %3678 = vmatprep.subr.bf16.mxu0 0
    %3679 = vmatpush2.bf16.msra.mxu0 0
    %3680 = vmatprep.subr.bf16.mxu0 0
    %3681 = vmatpush2.bf16.msra.mxu0 0
    %3682 = vmatprep.subr.bf16.mxu0 0
    %3683 = vmatpush2.bf16.msra.mxu0 0
    %3684 = vmatprep.subr.bf16.mxu0 0
    %3685 = vmatpush2.bf16.msra.mxu0 0
    %3686 = vmatprep.subr.bf16.mxu0 0
    %3687 = vmatpush2.bf16.msra.mxu0 0
    %3688 = vmatprep.subr.bf16.mxu0 0
    %3689 = vmatpush2.bf16.msra.mxu0 0
    %3690 = vmatprep.subr.bf16.mxu0 0
    %3691 = vmatpush2.bf16.msra.mxu0 0
    %3692 = vmatprep.subr.bf16.mxu0 0
    %3693 = vmatpush2.bf16.msra.mxu0 0
    %3694 = vmatprep.mubr.bf16.mxu0 0
    %3695 = vmatmul.mubr.bf16.gmra.mxu0 %v2717
    %v3696 = vpop.f32.mrf.mxu0
    %v3697 = vadd.f32 0.0, %v3696
    %v3698 = vpop.f32.mrf.mxu0
    %v3699 = vadd.f32 0.0, %v3698
    %v3700 = vpop.f32.mrf.mxu0
    %v3701 = vpop.f32.mrf.mxu0
    %3702 = vdwg.mxu0
    %3703 = vmatprep.subr.bf16.mxu0 0
    %3704 = vmatpush1.bf16.msra.mxu0 0
    %3705 = vmatprep.subr.bf16.mxu0 %v2252
    %3706 = vmatpush1.bf16.msra.mxu0 %v2251
    %3707 = vmatprep.subr.bf16.mxu0 %v2188
    %3708 = vmatpush1.bf16.msra.mxu0 %v2187
    %3709 = vmatprep.subr.bf16.mxu0 %v2124
    %3710 = vmatpush1.bf16.msra.mxu0 %v2123
    %3711 = vmatprep.subr.bf16.mxu0 %v2060
    %3712 = vmatpush1.bf16.msra.mxu0 %v2059
    %3713 = vmatprep.subr.bf16.mxu0 %v1996
    %3714 = vmatpush1.bf16.msra.mxu0 %v1995
    %3715 = vmatprep.subr.bf16.mxu0 %v1932
    %3716 = vmatpush1.bf16.msra.mxu0 %v1931
    %3717 = vmatprep.subr.bf16.mxu0 %v1868
    %3718 = vmatpush1.bf16.msra.mxu0 %v1867
    %3719 = vmatprep.subr.bf16.mxu0 0
    %3720 = vmatpush2.bf16.msra.mxu0 0
    %3721 = vmatprep.subr.bf16.mxu0 0
    %3722 = vmatpush2.bf16.msra.mxu0 0
    %3723 = vmatprep.subr.bf16.mxu0 0
    %3724 = vmatpush2.bf16.msra.mxu0 0
    %3725 = vmatprep.subr.bf16.mxu0 0
    %3726 = vmatpush2.bf16.msra.mxu0 0
    %3727 = vmatprep.subr.bf16.mxu0 0
    %3728 = vmatpush2.bf16.msra.mxu0 0
    %3729 = vmatprep.subr.bf16.mxu0 0
    %3730 = vmatpush2.bf16.msra.mxu0 0
    %3731 = vmatprep.subr.bf16.mxu0 0
    %3732 = vmatpush2.bf16.msra.mxu0 0
    %3733 = vmatprep.subr.bf16.mxu0 0
    %3734 = vmatpush2.bf16.msra.mxu0 0
    %3735 = vmatprep.mubr.bf16.mxu0 0
    %3736 = vmatmul.mubr.bf16.gmra.mxu0 %v2717
    %v3737 = vpop.f32.mrf.mxu0
    %v3738 = vadd.f32 0.0, %v3737
    %v3739 = vpop.f32.mrf.mxu0
    %v3740 = vadd.f32 0.0, %v3739
    %v3741 = vpop.f32.mrf.mxu0
    %v3742 = vpop.f32.mrf.mxu0
    %3743 = vdwg.mxu0
    %3744 = vmatprep.subr.bf16.mxu0 0
    %3745 = vmatpush1.bf16.msra.mxu0 0
    %3746 = vmatprep.subr.bf16.mxu0 %v2254
    %3747 = vmatpush1.bf16.msra.mxu0 %v2253
    %3748 = vmatprep.subr.bf16.mxu0 %v2190
    %3749 = vmatpush1.bf16.msra.mxu0 %v2189
    %3750 = vmatprep.subr.bf16.mxu0 %v2126
    %3751 = vmatpush1.bf16.msra.mxu0 %v2125
    %3752 = vmatprep.subr.bf16.mxu0 %v2062
    %3753 = vmatpush1.bf16.msra.mxu0 %v2061
    %3754 = vmatprep.subr.bf16.mxu0 %v1998
    %3755 = vmatpush1.bf16.msra.mxu0 %v1997
    %3756 = vmatprep.subr.bf16.mxu0 %v1934
    %3757 = vmatpush1.bf16.msra.mxu0 %v1933
    %3758 = vmatprep.subr.bf16.mxu0 %v1870
    %3759 = vmatpush1.bf16.msra.mxu0 %v1869
    %3760 = vmatprep.subr.bf16.mxu0 0
    %3761 = vmatpush2.bf16.msra.mxu0 0
    %3762 = vmatprep.subr.bf16.mxu0 0
    %3763 = vmatpush2.bf16.msra.mxu0 0
    %3764 = vmatprep.subr.bf16.mxu0 0
    %3765 = vmatpush2.bf16.msra.mxu0 0
    %3766 = vmatprep.subr.bf16.mxu0 0
    %3767 = vmatpush2.bf16.msra.mxu0 0
    %3768 = vmatprep.subr.bf16.mxu0 0
    %3769 = vmatpush2.bf16.msra.mxu0 0
    %3770 = vmatprep.subr.bf16.mxu0 0
    %3771 = vmatpush2.bf16.msra.mxu0 0
    %3772 = vmatprep.subr.bf16.mxu0 0
    %3773 = vmatpush2.bf16.msra.mxu0 0
    %3774 = vmatprep.subr.bf16.mxu0 0
    %3775 = vmatpush2.bf16.msra.mxu0 0
    %3776 = vmatprep.mubr.bf16.mxu0 0
    %3777 = vmatmul.mubr.bf16.gmra.mxu0 %v2717
    %v3778 = vpop.f32.mrf.mxu0
    %v3779 = vadd.f32 0.0, %v3778
    %v3780 = vpop.f32.mrf.mxu0
    %v3781 = vadd.f32 0.0, %v3780
    %v3782 = vpop.f32.mrf.mxu0
    %v3783 = vpop.f32.mrf.mxu0
    %3784 = vdwg.mxu0
    %3785 = vmatprep.subr.bf16.mxu0 0
    %3786 = vmatpush1.bf16.msra.mxu0 0
    %3787 = vmatprep.subr.bf16.mxu0 %v2256
    %3788 = vmatpush1.bf16.msra.mxu0 %v2255
    %3789 = vmatprep.subr.bf16.mxu0 %v2192
    %3790 = vmatpush1.bf16.msra.mxu0 %v2191
    %3791 = vmatprep.subr.bf16.mxu0 %v2128
    %3792 = vmatpush1.bf16.msra.mxu0 %v2127
    %3793 = vmatprep.subr.bf16.mxu0 %v2064
    %3794 = vmatpush1.bf16.msra.mxu0 %v2063
    %3795 = vmatprep.subr.bf16.mxu0 %v2000
    %3796 = vmatpush1.bf16.msra.mxu0 %v1999
    %3797 = vmatprep.subr.bf16.mxu0 %v1936
    %3798 = vmatpush1.bf16.msra.mxu0 %v1935
    %3799 = vmatprep.subr.bf16.mxu0 %v1872
    %3800 = vmatpush1.bf16.msra.mxu0 %v1871
    %3801 = vmatprep.subr.bf16.mxu0 0
    %3802 = vmatpush2.bf16.msra.mxu0 0
    %3803 = vmatprep.subr.bf16.mxu0 0
    %3804 = vmatpush2.bf16.msra.mxu0 0
    %3805 = vmatprep.subr.bf16.mxu0 0
    %3806 = vmatpush2.bf16.msra.mxu0 0
    %3807 = vmatprep.subr.bf16.mxu0 0
    %3808 = vmatpush2.bf16.msra.mxu0 0
    %3809 = vmatprep.subr.bf16.mxu0 0
    %3810 = vmatpush2.bf16.msra.mxu0 0
    %3811 = vmatprep.subr.bf16.mxu0 0
    %3812 = vmatpush2.bf16.msra.mxu0 0
    %3813 = vmatprep.subr.bf16.mxu0 0
    %3814 = vmatpush2.bf16.msra.mxu0 0
    %3815 = vmatprep.subr.bf16.mxu0 0
    %3816 = vmatpush2.bf16.msra.mxu0 0
    %3817 = vmatprep.mubr.bf16.mxu0 0
    %3818 = vmatmul.mubr.bf16.gmra.mxu0 %v2717
    %v3819 = vpop.f32.mrf.mxu0
    %v3820 = vadd.f32 0.0, %v3819
    %v3821 = vpop.f32.mrf.mxu0
    %v3822 = vadd.f32 0.0, %v3821
    %v3823 = vpop.f32.mrf.mxu0
    %v3824 = vpop.f32.mrf.mxu0
    %3825 = vdwg.mxu0
    %3826 = vmatprep.subr.bf16.mxu0 0
    %3827 = vmatpush1.bf16.msra.mxu0 0
    %3828 = vmatprep.subr.bf16.mxu0 %v2258
    %3829 = vmatpush1.bf16.msra.mxu0 %v2257
    %3830 = vmatprep.subr.bf16.mxu0 %v2194
    %3831 = vmatpush1.bf16.msra.mxu0 %v2193
    %3832 = vmatprep.subr.bf16.mxu0 %v2130
    %3833 = vmatpush1.bf16.msra.mxu0 %v2129
    %3834 = vmatprep.subr.bf16.mxu0 %v2066
    %3835 = vmatpush1.bf16.msra.mxu0 %v2065
    %3836 = vmatprep.subr.bf16.mxu0 %v2002
    %3837 = vmatpush1.bf16.msra.mxu0 %v2001
    %3838 = vmatprep.subr.bf16.mxu0 %v1938
    %3839 = vmatpush1.bf16.msra.mxu0 %v1937
    %3840 = vmatprep.subr.bf16.mxu0 %v1874
    %3841 = vmatpush1.bf16.msra.mxu0 %v1873
    %3842 = vmatprep.subr.bf16.mxu0 0
    %3843 = vmatpush2.bf16.msra.mxu0 0
    %3844 = vmatprep.subr.bf16.mxu0 0
    %3845 = vmatpush2.bf16.msra.mxu0 0
    %3846 = vmatprep.subr.bf16.mxu0 0
    %3847 = vmatpush2.bf16.msra.mxu0 0
    %3848 = vmatprep.subr.bf16.mxu0 0
    %3849 = vmatpush2.bf16.msra.mxu0 0
    %3850 = vmatprep.subr.bf16.mxu0 0
    %3851 = vmatpush2.bf16.msra.mxu0 0
    %3852 = vmatprep.subr.bf16.mxu0 0
    %3853 = vmatpush2.bf16.msra.mxu0 0
    %3854 = vmatprep.subr.bf16.mxu0 0
    %3855 = vmatpush2.bf16.msra.mxu0 0
    %3856 = vmatprep.subr.bf16.mxu0 0
    %3857 = vmatpush2.bf16.msra.mxu0 0
    %3858 = vmatprep.mubr.bf16.mxu0 0
    %3859 = vmatmul.mubr.bf16.gmra.mxu0 %v2717
    %v3860 = vpop.f32.mrf.mxu0
    %v3861 = vadd.f32 0.0, %v3860
    %v3862 = vpop.f32.mrf.mxu0
    %v3863 = vadd.f32 0.0, %v3862
    %v3864 = vpop.f32.mrf.mxu0
    %v3865 = vpop.f32.mrf.mxu0
    %3866 = vdwg.mxu0
    %3867 = vmatprep.subr.bf16.mxu0 0
    %3868 = vmatpush1.bf16.msra.mxu0 0
    %3869 = vmatprep.subr.bf16.mxu0 %v2260
    %3870 = vmatpush1.bf16.msra.mxu0 %v2259
    %3871 = vmatprep.subr.bf16.mxu0 %v2196
    %3872 = vmatpush1.bf16.msra.mxu0 %v2195
    %3873 = vmatprep.subr.bf16.mxu0 %v2132
    %3874 = vmatpush1.bf16.msra.mxu0 %v2131
    %3875 = vmatprep.subr.bf16.mxu0 %v2068
    %3876 = vmatpush1.bf16.msra.mxu0 %v2067
    %3877 = vmatprep.subr.bf16.mxu0 %v2004
    %3878 = vmatpush1.bf16.msra.mxu0 %v2003
    %3879 = vmatprep.subr.bf16.mxu0 %v1940
    %3880 = vmatpush1.bf16.msra.mxu0 %v1939
    %3881 = vmatprep.subr.bf16.mxu0 %v1876
    %3882 = vmatpush1.bf16.msra.mxu0 %v1875
    %3883 = vmatprep.subr.bf16.mxu0 0
    %3884 = vmatpush2.bf16.msra.mxu0 0
    %3885 = vmatprep.subr.bf16.mxu0 0
    %3886 = vmatpush2.bf16.msra.mxu0 0
    %3887 = vmatprep.subr.bf16.mxu0 0
    %3888 = vmatpush2.bf16.msra.mxu0 0
    %3889 = vmatprep.subr.bf16.mxu0 0
    %3890 = vmatpush2.bf16.msra.mxu0 0
    %3891 = vmatprep.subr.bf16.mxu0 0
    %3892 = vmatpush2.bf16.msra.mxu0 0
    %3893 = vmatprep.subr.bf16.mxu0 0
    %3894 = vmatpush2.bf16.msra.mxu0 0
    %3895 = vmatprep.subr.bf16.mxu0 0
    %3896 = vmatpush2.bf16.msra.mxu0 0
    %3897 = vmatprep.subr.bf16.mxu0 0
    %3898 = vmatpush2.bf16.msra.mxu0 0
    %3899 = vmatprep.mubr.bf16.mxu0 0
    %3900 = vmatmul.mubr.bf16.gmra.mxu0 %v2717
    %v3901 = vpop.f32.mrf.mxu0
    %v3902 = vadd.f32 0.0, %v3901
    %v3903 = vpop.f32.mrf.mxu0
    %v3904 = vadd.f32 0.0, %v3903
    %v3905 = vpop.f32.mrf.mxu0
    %v3906 = vpop.f32.mrf.mxu0
    %3907 = vdwg.mxu0
    %3908 = vmatprep.subr.bf16.mxu0 0
    %3909 = vmatpush1.bf16.msra.mxu0 0
    %3910 = vmatprep.subr.bf16.mxu0 %v2262
    %3911 = vmatpush1.bf16.msra.mxu0 %v2261
    %3912 = vmatprep.subr.bf16.mxu0 %v2198
    %3913 = vmatpush1.bf16.msra.mxu0 %v2197
    %3914 = vmatprep.subr.bf16.mxu0 %v2134
    %3915 = vmatpush1.bf16.msra.mxu0 %v2133
    %3916 = vmatprep.subr.bf16.mxu0 %v2070
    %3917 = vmatpush1.bf16.msra.mxu0 %v2069
    %3918 = vmatprep.subr.bf16.mxu0 %v2006
    %3919 = vmatpush1.bf16.msra.mxu0 %v2005
    %3920 = vmatprep.subr.bf16.mxu0 %v1942
    %3921 = vmatpush1.bf16.msra.mxu0 %v1941
    %3922 = vmatprep.subr.bf16.mxu0 %v1878
    %3923 = vmatpush1.bf16.msra.mxu0 %v1877
    %3924 = vmatprep.subr.bf16.mxu0 0
    %3925 = vmatpush2.bf16.msra.mxu0 0
    %3926 = vmatprep.subr.bf16.mxu0 0
    %3927 = vmatpush2.bf16.msra.mxu0 0
    %3928 = vmatprep.subr.bf16.mxu0 0
    %3929 = vmatpush2.bf16.msra.mxu0 0
    %3930 = vmatprep.subr.bf16.mxu0 0
    %3931 = vmatpush2.bf16.msra.mxu0 0
    %3932 = vmatprep.subr.bf16.mxu0 0
    %3933 = vmatpush2.bf16.msra.mxu0 0
    %3934 = vmatprep.subr.bf16.mxu0 0
    %3935 = vmatpush2.bf16.msra.mxu0 0
    %3936 = vmatprep.subr.bf16.mxu0 0
    %3937 = vmatpush2.bf16.msra.mxu0 0
    %3938 = vmatprep.subr.bf16.mxu0 0
    %3939 = vmatpush2.bf16.msra.mxu0 0
    %3940 = vmatprep.mubr.bf16.mxu0 0
    %3941 = vmatmul.mubr.bf16.gmra.mxu0 %v2717
    %v3942 = vpop.f32.mrf.mxu0
    %v3943 = vadd.f32 0.0, %v3942
    %v3944 = vpop.f32.mrf.mxu0
    %v3945 = vadd.f32 0.0, %v3944
    %v3946 = vpop.f32.mrf.mxu0
    %v3947 = vpop.f32.mrf.mxu0
    %3948 = vdwg.mxu0
    %3949 = vmatprep.subr.bf16.mxu0 0
    %3950 = vmatpush1.bf16.msra.mxu0 0
    %3951 = vmatprep.subr.bf16.mxu0 %v2264
    %3952 = vmatpush1.bf16.msra.mxu0 %v2263
    %3953 = vmatprep.subr.bf16.mxu0 %v2200
    %3954 = vmatpush1.bf16.msra.mxu0 %v2199
    %3955 = vmatprep.subr.bf16.mxu0 %v2136
    %3956 = vmatpush1.bf16.msra.mxu0 %v2135
    %3957 = vmatprep.subr.bf16.mxu0 %v2072
    %3958 = vmatpush1.bf16.msra.mxu0 %v2071
    %3959 = vmatprep.subr.bf16.mxu0 %v2008
    %3960 = vmatpush1.bf16.msra.mxu0 %v2007
    %3961 = vmatprep.subr.bf16.mxu0 %v1944
    %3962 = vmatpush1.bf16.msra.mxu0 %v1943
    %3963 = vmatprep.subr.bf16.mxu0 %v1880
    %3964 = vmatpush1.bf16.msra.mxu0 %v1879
    %3965 = vmatprep.subr.bf16.mxu0 0
    %3966 = vmatpush2.bf16.msra.mxu0 0
    %3967 = vmatprep.subr.bf16.mxu0 0
    %3968 = vmatpush2.bf16.msra.mxu0 0
    %3969 = vmatprep.subr.bf16.mxu0 0
    %3970 = vmatpush2.bf16.msra.mxu0 0
    %3971 = vmatprep.subr.bf16.mxu0 0
    %3972 = vmatpush2.bf16.msra.mxu0 0
    %3973 = vmatprep.subr.bf16.mxu0 0
    %3974 = vmatpush2.bf16.msra.mxu0 0
    %3975 = vmatprep.subr.bf16.mxu0 0
    %3976 = vmatpush2.bf16.msra.mxu0 0
    %3977 = vmatprep.subr.bf16.mxu0 0
    %3978 = vmatpush2.bf16.msra.mxu0 0
    %3979 = vmatprep.subr.bf16.mxu0 0
    %3980 = vmatpush2.bf16.msra.mxu0 0
    %3981 = vmatprep.mubr.bf16.mxu0 0
    %3982 = vmatmul.mubr.bf16.gmra.mxu0 %v2717
    %v3983 = vpop.f32.mrf.mxu0
    %v3984 = vadd.f32 0.0, %v3983
    %v3985 = vpop.f32.mrf.mxu0
    %v3986 = vadd.f32 0.0, %v3985
    %v3987 = vpop.f32.mrf.mxu0
    %v3988 = vpop.f32.mrf.mxu0
    %3989 = vdwg.mxu0
    %3990 = vmatprep.subr.bf16.mxu0 0
    %3991 = vmatpush1.bf16.msra.mxu0 0
    %3992 = vmatprep.subr.bf16.mxu0 %v2266
    %3993 = vmatpush1.bf16.msra.mxu0 %v2265
    %3994 = vmatprep.subr.bf16.mxu0 %v2202
    %3995 = vmatpush1.bf16.msra.mxu0 %v2201
    %3996 = vmatprep.subr.bf16.mxu0 %v2138
    %3997 = vmatpush1.bf16.msra.mxu0 %v2137
    %3998 = vmatprep.subr.bf16.mxu0 %v2074
    %3999 = vmatpush1.bf16.msra.mxu0 %v2073
    %4000 = vmatprep.subr.bf16.mxu0 %v2010
    %4001 = vmatpush1.bf16.msra.mxu0 %v2009
    %4002 = vmatprep.subr.bf16.mxu0 %v1946
    %4003 = vmatpush1.bf16.msra.mxu0 %v1945
    %4004 = vmatprep.subr.bf16.mxu0 %v1882
    %4005 = vmatpush1.bf16.msra.mxu0 %v1881
    %4006 = vmatprep.subr.bf16.mxu0 0
    %4007 = vmatpush2.bf16.msra.mxu0 0
    %4008 = vmatprep.subr.bf16.mxu0 0
    %4009 = vmatpush2.bf16.msra.mxu0 0
    %4010 = vmatprep.subr.bf16.mxu0 0
    %4011 = vmatpush2.bf16.msra.mxu0 0
    %4012 = vmatprep.subr.bf16.mxu0 0
    %4013 = vmatpush2.bf16.msra.mxu0 0
    %4014 = vmatprep.subr.bf16.mxu0 0
    %4015 = vmatpush2.bf16.msra.mxu0 0
    %4016 = vmatprep.subr.bf16.mxu0 0
    %4017 = vmatpush2.bf16.msra.mxu0 0
    %4018 = vmatprep.subr.bf16.mxu0 0
    %4019 = vmatpush2.bf16.msra.mxu0 0
    %4020 = vmatprep.subr.bf16.mxu0 0
    %4021 = vmatpush2.bf16.msra.mxu0 0
    %4022 = vmatprep.mubr.bf16.mxu0 0
    %4023 = vmatmul.mubr.bf16.gmra.mxu0 %v2717
    %v4024 = vpop.f32.mrf.mxu0
    %v4025 = vadd.f32 0.0, %v4024
    %v4026 = vpop.f32.mrf.mxu0
    %v4027 = vadd.f32 0.0, %v4026
    %v4028 = vpop.f32.mrf.mxu0
    %v4029 = vpop.f32.mrf.mxu0
    %4030 = vdwg.mxu0
    %v4095 = vcombine.low %v2754, %v2756
    %v4096 = vcombine.low %v2795, %v2797
    %v4098 = vunpack.c.l.s4 1983009808
    %v4099 = vunpack.c.0.s8 %v4098
    %v4100 = vlaneseq
    %v4101 = vshrl.u32 %v4100, 7
    %v4102 = vsub.s32 %v4099, %v4101
    %v4103 = vrot.slane %v4095, %v4102
    %v4105 = vunpack.c.l.s4 1983009808
    %v4106 = vunpack.c.0.s8 %v4105
    %v4107 = vlaneseq
    %v4108 = vshrl.u32 %v4107, 7
    %v4109 = vsub.s32 %v4106, %v4108
    %v4110 = vrot.slane %v4096, %v4109
    %v4111 = vcombine.low %v4103, %v4110
    %v4112 = vcombine.low %v2836, %v2838
    %v4113 = vcombine.low %v2877, %v2879
    %v4115 = vunpack.c.l.s4 1983009808
    %v4116 = vunpack.c.0.s8 %v4115
    %v4117 = vlaneseq
    %v4118 = vshrl.u32 %v4117, 7
    %v4119 = vsub.s32 %v4116, %v4118
    %v4120 = vrot.slane %v4112, %v4119
    %v4122 = vunpack.c.l.s4 1983009808
    %v4123 = vunpack.c.0.s8 %v4122
    %v4124 = vlaneseq
    %v4125 = vshrl.u32 %v4124, 7
    %v4126 = vsub.s32 %v4123, %v4125
    %v4127 = vrot.slane %v4113, %v4126
    %v4128 = vcombine.low %v4120, %v4127
    %v4129 = vcombine.low %v2918, %v2920
    %v4130 = vcombine.low %v2959, %v2961
    %v4132 = vunpack.c.l.s4 1983009808
    %v4133 = vunpack.c.0.s8 %v4132
    %v4134 = vlaneseq
    %v4135 = vshrl.u32 %v4134, 7
    %v4136 = vsub.s32 %v4133, %v4135
    %v4137 = vrot.slane %v4129, %v4136
    %v4139 = vunpack.c.l.s4 1983009808
    %v4140 = vunpack.c.0.s8 %v4139
    %v4141 = vlaneseq
    %v4142 = vshrl.u32 %v4141, 7
    %v4143 = vsub.s32 %v4140, %v4142
    %v4144 = vrot.slane %v4130, %v4143
    %v4145 = vcombine.low %v4137, %v4144
    %v4146 = vcombine.low %v3000, %v3002
    %v4147 = vcombine.low %v3041, %v3043
    %v4149 = vunpack.c.l.s4 1983009808
    %v4150 = vunpack.c.0.s8 %v4149
    %v4151 = vlaneseq
    %v4152 = vshrl.u32 %v4151, 7
    %v4153 = vsub.s32 %v4150, %v4152
    %v4154 = vrot.slane %v4146, %v4153
    %v4156 = vunpack.c.l.s4 1983009808
    %v4157 = vunpack.c.0.s8 %v4156
    %v4158 = vlaneseq
    %v4159 = vshrl.u32 %v4158, 7
    %v4160 = vsub.s32 %v4157, %v4159
    %v4161 = vrot.slane %v4147, %v4160
    %v4162 = vcombine.low %v4154, %v4161
    %v4163 = vcombine.low %v3082, %v3084
    %v4164 = vcombine.low %v3123, %v3125
    %v4166 = vunpack.c.l.s4 1983009808
    %v4167 = vunpack.c.0.s8 %v4166
    %v4168 = vlaneseq
    %v4169 = vshrl.u32 %v4168, 7
    %v4170 = vsub.s32 %v4167, %v4169
    %v4171 = vrot.slane %v4163, %v4170
    %v4173 = vunpack.c.l.s4 1983009808
    %v4174 = vunpack.c.0.s8 %v4173
    %v4175 = vlaneseq
    %v4176 = vshrl.u32 %v4175, 7
    %v4177 = vsub.s32 %v4174, %v4176
    %v4178 = vrot.slane %v4164, %v4177
    %v4179 = vcombine.low %v4171, %v4178
    %v4180 = vcombine.low %v3164, %v3166
    %v4181 = vcombine.low %v3205, %v3207
    %v4183 = vunpack.c.l.s4 1983009808
    %v4184 = vunpack.c.0.s8 %v4183
    %v4185 = vlaneseq
    %v4186 = vshrl.u32 %v4185, 7
    %v4187 = vsub.s32 %v4184, %v4186
    %v4188 = vrot.slane %v4180, %v4187
    %v4190 = vunpack.c.l.s4 1983009808
    %v4191 = vunpack.c.0.s8 %v4190
    %v4192 = vlaneseq
    %v4193 = vshrl.u32 %v4192, 7
    %v4194 = vsub.s32 %v4191, %v4193
    %v4195 = vrot.slane %v4181, %v4194
    %v4196 = vcombine.low %v4188, %v4195
    %v4197 = vcombine.low %v3246, %v3248
    %v4198 = vcombine.low %v3287, %v3289
    %v4200 = vunpack.c.l.s4 1983009808
    %v4201 = vunpack.c.0.s8 %v4200
    %v4202 = vlaneseq
    %v4203 = vshrl.u32 %v4202, 7
    %v4204 = vsub.s32 %v4201, %v4203
    %v4205 = vrot.slane %v4197, %v4204
    %v4207 = vunpack.c.l.s4 1983009808
    %v4208 = vunpack.c.0.s8 %v4207
    %v4209 = vlaneseq
    %v4210 = vshrl.u32 %v4209, 7
    %v4211 = vsub.s32 %v4208, %v4210
    %v4212 = vrot.slane %v4198, %v4211
    %v4213 = vcombine.low %v4205, %v4212
    %v4214 = vcombine.low %v3328, %v3330
    %v4215 = vcombine.low %v3369, %v3371
    %v4217 = vunpack.c.l.s4 1983009808
    %v4218 = vunpack.c.0.s8 %v4217
    %v4219 = vlaneseq
    %v4220 = vshrl.u32 %v4219, 7
    %v4221 = vsub.s32 %v4218, %v4220
    %v4222 = vrot.slane %v4214, %v4221
    %v4224 = vunpack.c.l.s4 1983009808
    %v4225 = vunpack.c.0.s8 %v4224
    %v4226 = vlaneseq
    %v4227 = vshrl.u32 %v4226, 7
    %v4228 = vsub.s32 %v4225, %v4227
    %v4229 = vrot.slane %v4215, %v4228
    %v4230 = vcombine.low %v4222, %v4229
    %v4231 = vcombine.low %v3410, %v3412
    %v4232 = vcombine.low %v3451, %v3453
    %v4234 = vunpack.c.l.s4 1983009808
    %v4235 = vunpack.c.0.s8 %v4234
    %v4236 = vlaneseq
    %v4237 = vshrl.u32 %v4236, 7
    %v4238 = vsub.s32 %v4235, %v4237
    %v4239 = vrot.slane %v4231, %v4238
    %v4241 = vunpack.c.l.s4 1983009808
    %v4242 = vunpack.c.0.s8 %v4241
    %v4243 = vlaneseq
    %v4244 = vshrl.u32 %v4243, 7
    %v4245 = vsub.s32 %v4242, %v4244
    %v4246 = vrot.slane %v4232, %v4245
    %v4247 = vcombine.low %v4239, %v4246
    %v4248 = vcombine.low %v3492, %v3494
    %v4249 = vcombine.low %v3533, %v3535
    %v4251 = vunpack.c.l.s4 1983009808
    %v4252 = vunpack.c.0.s8 %v4251
    %v4253 = vlaneseq
    %v4254 = vshrl.u32 %v4253, 7
    %v4255 = vsub.s32 %v4252, %v4254
    %v4256 = vrot.slane %v4248, %v4255
    %v4258 = vunpack.c.l.s4 1983009808
    %v4259 = vunpack.c.0.s8 %v4258
    %v4260 = vlaneseq
    %v4261 = vshrl.u32 %v4260, 7
    %v4262 = vsub.s32 %v4259, %v4261
    %v4263 = vrot.slane %v4249, %v4262
    %v4264 = vcombine.low %v4256, %v4263
    %v4265 = vcombine.low %v3574, %v3576
    %v4266 = vcombine.low %v3615, %v3617
    %v4268 = vunpack.c.l.s4 1983009808
    %v4269 = vunpack.c.0.s8 %v4268
    %v4270 = vlaneseq
    %v4271 = vshrl.u32 %v4270, 7
    %v4272 = vsub.s32 %v4269, %v4271
    %v4273 = vrot.slane %v4265, %v4272
    %v4275 = vunpack.c.l.s4 1983009808
    %v4276 = vunpack.c.0.s8 %v4275
    %v4277 = vlaneseq
    %v4278 = vshrl.u32 %v4277, 7
    %v4279 = vsub.s32 %v4276, %v4278
    %v4280 = vrot.slane %v4266, %v4279
    %v4281 = vcombine.low %v4273, %v4280
    %v4282 = vcombine.low %v3656, %v3658
    %v4283 = vcombine.low %v3697, %v3699
    %v4285 = vunpack.c.l.s4 1983009808
    %v4286 = vunpack.c.0.s8 %v4285
    %v4287 = vlaneseq
    %v4288 = vshrl.u32 %v4287, 7
    %v4289 = vsub.s32 %v4286, %v4288
    %v4290 = vrot.slane %v4282, %v4289
    %v4292 = vunpack.c.l.s4 1983009808
    %v4293 = vunpack.c.0.s8 %v4292
    %v4294 = vlaneseq
    %v4295 = vshrl.u32 %v4294, 7
    %v4296 = vsub.s32 %v4293, %v4295
    %v4297 = vrot.slane %v4283, %v4296
    %v4298 = vcombine.low %v4290, %v4297
    %v4299 = vcombine.low %v3738, %v3740
    %v4300 = vcombine.low %v3779, %v3781
    %v4302 = vunpack.c.l.s4 1983009808
    %v4303 = vunpack.c.0.s8 %v4302
    %v4304 = vlaneseq
    %v4305 = vshrl.u32 %v4304, 7
    %v4306 = vsub.s32 %v4303, %v4305
    %v4307 = vrot.slane %v4299, %v4306
    %v4309 = vunpack.c.l.s4 1983009808
    %v4310 = vunpack.c.0.s8 %v4309
    %v4311 = vlaneseq
    %v4312 = vshrl.u32 %v4311, 7
    %v4313 = vsub.s32 %v4310, %v4312
    %v4314 = vrot.slane %v4300, %v4313
    %v4315 = vcombine.low %v4307, %v4314
    %v4316 = vcombine.low %v3820, %v3822
    %v4317 = vcombine.low %v3861, %v3863
    %v4319 = vunpack.c.l.s4 1983009808
    %v4320 = vunpack.c.0.s8 %v4319
    %v4321 = vlaneseq
    %v4322 = vshrl.u32 %v4321, 7
    %v4323 = vsub.s32 %v4320, %v4322
    %v4324 = vrot.slane %v4316, %v4323
    %v4326 = vunpack.c.l.s4 1983009808
    %v4327 = vunpack.c.0.s8 %v4326
    %v4328 = vlaneseq
    %v4329 = vshrl.u32 %v4328, 7
    %v4330 = vsub.s32 %v4327, %v4329
    %v4331 = vrot.slane %v4317, %v4330
    %v4332 = vcombine.low %v4324, %v4331
    %v4333 = vcombine.low %v3902, %v3904
    %v4334 = vcombine.low %v3943, %v3945
    %v4336 = vunpack.c.l.s4 1983009808
    %v4337 = vunpack.c.0.s8 %v4336
    %v4338 = vlaneseq
    %v4339 = vshrl.u32 %v4338, 7
    %v4340 = vsub.s32 %v4337, %v4339
    %v4341 = vrot.slane %v4333, %v4340
    %v4343 = vunpack.c.l.s4 1983009808
    %v4344 = vunpack.c.0.s8 %v4343
    %v4345 = vlaneseq
    %v4346 = vshrl.u32 %v4345, 7
    %v4347 = vsub.s32 %v4344, %v4346
    %v4348 = vrot.slane %v4334, %v4347
    %v4349 = vcombine.low %v4341, %v4348
    %v4350 = vcombine.low %v3984, %v3986
    %v4351 = vcombine.low %v4025, %v4027
    %v4353 = vunpack.c.l.s4 1983009808
    %v4354 = vunpack.c.0.s8 %v4353
    %v4355 = vlaneseq
    %v4356 = vshrl.u32 %v4355, 7
    %v4357 = vsub.s32 %v4354, %v4356
    %v4358 = vrot.slane %v4350, %v4357
    %v4360 = vunpack.c.l.s4 1983009808
    %v4361 = vunpack.c.0.s8 %v4360
    %v4362 = vlaneseq
    %v4363 = vshrl.u32 %v4362, 7
    %v4364 = vsub.s32 %v4361, %v4363
    %v4365 = vrot.slane %v4351, %v4364
    %v4366 = vcombine.low %v4358, %v4365
    %4383 = vst [vmem:[%s2] sm:$0xff] %v4111
    %4384 = vst [vmem:[%s2 + $0x8] sm:$0xff] %v4128
    %4385 = vst [vmem:[%s2 + $0x10] sm:$0xff] %v4145
    %4386 = vst [vmem:[%s2 + $0x18] sm:$0xff] %v4162
    %4387 = vst [vmem:[%s2 + $0x20] sm:$0xff] %v4179
    %4388 = vst [vmem:[%s2 + $0x28] sm:$0xff] %v4196
    %4389 = vst [vmem:[%s2 + $0x30] sm:$0xff] %v4213
    %4390 = vst [vmem:[%s2 + $0x38] sm:$0xff] %v4230
    %4391 = vst [vmem:[%s2 + $0x40] sm:$0xff] %v4247
    %4392 = vst [vmem:[%s2 + $0x48] sm:$0xff] %v4264
    %4393 = vst [vmem:[%s2 + $0x50] sm:$0xff] %v4281
    %4394 = vst [vmem:[%s2 + $0x58] sm:$0xff] %v4298
    %4395 = vst [vmem:[%s2 + $0x60] sm:$0xff] %v4315
    %4396 = vst [vmem:[%s2 + $0x68] sm:$0xff] %v4332
    %4397 = vst [vmem:[%s2 + $0x70] sm:$0xff] %v4349
    %4398 = vst [vmem:[%s2 + $0x78] sm:$0xff] %v4366
    // Predicated region
    $region14: #{project_forward.1} parent=1 // pred_check
      _
    $region15: #{project_forward.1} parent=1 // pred_check_branch
      %4400 = sbr.rel (0) target = $region17
    $region16: #{project_forward.1} parent=1 // pred_region
      _
    $region17: #{project_forward.1} parent=1 // pred_fallthru
      _
    // Predicated region
    $region18: #{project_forward.1} parent=1 // pred_check
      _
    $region19: #{project_forward.1} parent=1 // pred_check_branch
      %4402 = sbr.rel (0) target = $region21
    $region20: #{project_forward.1} parent=1 // pred_region
      _
    $region21: #{project_forward.1} parent=1 // pred_fallthru
      _
    %4403 = vsyncpa [#allocation3], 1

</llo_original>
